<compile_context>
chip_gen: v7x
topology: tpu7x:2x2x1
jax: 0.10.0
libtpu: 0.0.40
codegen_flags: <defaults>
</compile_context>

<pallas_src>
import functools

import jax
import jax.numpy as jnp
from jax.experimental import pallas as pl
from jax.experimental.pallas import tpu as pltpu

INPUT_SIZE = 784
HIDDEN_SIZE = 500
OUTPUT_SIZE = 10

HIDDEN_PAD = 512   # 500 -> 512 (4 x 128 lanes)
OUT_PAD = 128      # 10  -> 128 (1 x 128 lanes)
STAT_ROWS = 8      # per-tile stats stored as sublane-aligned (8,128) blocks


def _round_up(n, m):
    return ((n + m - 1) // m) * m


def _choose_tiling(batch, batch_tile):
    """Right-size the batch tile so a non-aligned B doesn't pad 40%+ of the work.

    Keeps the tile count even when multi-tile so the "parallel" batch axis can
    be split across v7x's two TensorCores.
    """
    n_tiles = pl.cdiv(batch, batch_tile)
    if n_tiles > 1 and n_tiles % 2 == 1:
        n_tiles += 1
    tb = max(_round_up(pl.cdiv(batch, n_tiles), 8), 8)
    b_pad = n_tiles * tb
    return n_tiles, tb, b_pad


# ---------------------------------------------------------------------------
# Pass 1: logits = (dropout(x) @ W1^T + b1) @ W2^T + b2, batch-tiled, plus
# per-tile column max and sum-of-exp for the dim-0 softmax.
# ---------------------------------------------------------------------------
def logits_stats_kernel(x_ref, w1_ref, b1_ref, w2_ref, b2_ref,
                        y_ref, tmax_ref, tsum_ref, *, b_valid, tb):
    """x: (tb,784), w1: (784,512) bf16, b1: (1,512) f32, w2: (512,128) bf16,
    b2: (1,128) f32, y: (tb,128) f32, tmax/tsum: (8,128) f32 per tile."""
    i = pl.program_id(0)

    # Dropout: eval-mode identity.
    # TODO(synk): training-mode dropout (p=0.5, 2x scale) would need
    # pltpu.prng_seed / pltpu.prng_random_bits; eval semantics used here.
    x = x_ref[...].astype(jnp.bfloat16)            # no-op if caller feeds bf16
    h = jnp.dot(x, w1_ref[...], preferred_element_type=jnp.float32) + b1_ref[...]
    y = jnp.dot(h.astype(jnp.bfloat16), w2_ref[...],
                preferred_element_type=jnp.float32) + b2_ref[...]
    y_ref[...] = y

    # Per-tile column statistics (batch-padding rows masked out).
    rows = jax.lax.broadcasted_iota(jnp.int32, (tb, OUT_PAD), 0) + i * tb
    valid = rows < b_valid
    tmax = jnp.max(jnp.where(valid, y, -jnp.inf), axis=0, keepdims=True)   # (1,128)
    tsum = jnp.sum(jnp.where(valid, jnp.exp(y - tmax), 0.0),
                   axis=0, keepdims=True)                                  # (1,128)

    # Store as sublane-aligned (8,128) blocks: max duplicated over all 8 rows
    # (idempotent under max), sum only in row 0 (zeros elsewhere), so the
    # wrapper combines with plain max/sum over all rows.
    tmax_ref[...] = jnp.broadcast_to(tmax, (STAT_ROWS, OUT_PAD))
    srow = jax.lax.broadcasted_iota(jnp.int32, (STAT_ROWS, OUT_PAD), 0)
    tsum_ref[...] = jnp.where(srow == 0, tsum, 0.0)


# ---------------------------------------------------------------------------
# Pass 2: single-phase dim-0 softmax normalize using the precombined global
# column max and reciprocal denominator.  Each output block written once.
# ---------------------------------------------------------------------------
def softmax_normalize_kernel(y_ref, gmax_ref, ginv_ref, o_ref, *, b_valid, tb):
    i = pl.program_id(0)
    rows = jax.lax.broadcasted_iota(jnp.int32, (tb, OUT_PAD), 0) + i * tb
    valid = rows < b_valid
    p = jnp.exp(y_ref[...] - gmax_ref[...]) * ginv_ref[...]
    o_ref[...] = jnp.where(valid, p, 0.0).astype(o_ref.dtype)


# ---------------------------------------------------------------------------
# One-time parameter preparation (NOT per forward call): transpose to (in,out),
# lane-pad 500->512 / 10->128 with zeros (numerically exact), bf16 weights.
# ---------------------------------------------------------------------------
def prepare_params(w1, b1, w2, b2):
    w1t = jnp.pad(jnp.transpose(w1), ((0, 0), (0, HIDDEN_PAD - HIDDEN_SIZE)))
    w2t = jnp.pad(jnp.transpose(w2), ((0, HIDDEN_PAD - HIDDEN_SIZE),
                                      (0, OUT_PAD - OUTPUT_SIZE)))
    b1p = jnp.pad(b1, (0, HIDDEN_PAD - HIDDEN_SIZE)).reshape(1, HIDDEN_PAD)
    b2p = jnp.pad(b2, (0, OUT_PAD - OUTPUT_SIZE)).reshape(1, OUT_PAD)
    return (w1t.astype(jnp.bfloat16), b1p.astype(jnp.float32),
            w2t.astype(jnp.bfloat16), b2p.astype(jnp.float32))


def simple_mnist_forward(x, params, *, batch_tile=512,
                         vmem_limit_bytes=32 * 1024 * 1024):
    """x: (B, 784) float32 or bfloat16; params from prepare_params -> (B,10) f32.

    Feeding bf16 activations halves the dominant HBM stream (cast at the
    producer, not as a separate XLA pass here).  For large-batch inference on
    v5e/v6e raise batch_tile to 1024-2048 and vmem_limit_bytes toward 64 MiB;
    on v7x keep the per-call VMEM footprint under ~40 MiB (of 64 MiB physical)
    and, if pushing batch_tile above ~2048, consider pipeline_mode=
    pl.Buffered(1) on the constant-index weight specs.
    """
    w1t, b1p, w2t, b2p = params
    B = x.shape[0]
    n_tiles, tb, b_pad = _choose_tiling(B, batch_tile)
    if b_pad != B:
        x = jnp.pad(x, ((0, b_pad - B), (0, 0)))

    x_bytes = x.dtype.itemsize
    w_bytes = ((INPUT_SIZE * HIDDEN_PAD + HIDDEN_PAD * OUT_PAD) * 2
               + (HIDDEN_PAD + OUT_PAD) * 4)

    # --- Pass 1: batch-tiled MLP -> lane-padded logits + per-tile stats -----
    logits, tmax, tsum = pl.pallas_call(
        functools.partial(logits_stats_kernel, b_valid=B, tb=tb),
        out_shape=(
            jax.ShapeDtypeStruct((b_pad, OUT_PAD), jnp.float32),
            jax.ShapeDtypeStruct((n_tiles * STAT_ROWS, OUT_PAD), jnp.float32),
            jax.ShapeDtypeStruct((n_tiles * STAT_ROWS, OUT_PAD), jnp.float32),
        ),
        grid_spec=pltpu.PrefetchScalarGridSpec(
            num_scalar_prefetch=0,
            grid=(n_tiles,),
            in_specs=[
                pl.BlockSpec((tb, INPUT_SIZE), lambda i: (i, 0)),          # x tile
                pl.BlockSpec((INPUT_SIZE, HIDDEN_PAD), lambda i: (0, 0)),  # W1 resident
                pl.BlockSpec((1, HIDDEN_PAD), lambda i: (0, 0)),           # b1 resident
                pl.BlockSpec((HIDDEN_PAD, OUT_PAD), lambda i: (0, 0)),     # W2 resident
                pl.BlockSpec((1, OUT_PAD), lambda i: (0, 0)),              # b2 resident
            ],
            out_specs=[
                pl.BlockSpec((tb, OUT_PAD), lambda i: (i, 0)),             # logits
                pl.BlockSpec((STAT_ROWS, OUT_PAD), lambda i: (i, 0)),      # tile max
                pl.BlockSpec((STAT_ROWS, OUT_PAD), lambda i: (i, 0)),      # tile sumexp
            ],
        ),
        compiler_params=pltpu.CompilerParams(
            dimension_semantics=("parallel",),        # megacore-shardable (v7x)
            vmem_limit_bytes=vmem_limit_bytes),
        cost_estimate=pl.CostEstimate(
            flops=2 * b_pad * (INPUT_SIZE * HIDDEN_PAD + HIDDEN_PAD * OUT_PAD),
            transcendentals=b_pad * OUT_PAD,
            bytes_accessed=(b_pad * INPUT_SIZE * x_bytes + w_bytes
                            + b_pad * OUT_PAD * 4
                            + 2 * n_tiles * STAT_ROWS * OUT_PAD * 4)),
    )(x, w1t, b1p, w2t, b2p)

    # Tiny (n_tiles*8, 128) combine in plain JAX: global column max + 1/denom.
    gmax = jnp.max(tmax, axis=0, keepdims=True)                             # (1,128)
    denom = jnp.sum(jnp.exp(tmax - gmax) * tsum, axis=0, keepdims=True)     # (1,128)
    ginv = 1.0 / denom     # exact (downstream KL wants normalized probabilities)

    # --- Pass 2: single-phase normalize (logits read once, output written once)
    probs = pl.pallas_call(
        functools.partial(softmax_normalize_kernel, b_valid=B, tb=tb),
        out_shape=jax.ShapeDtypeStruct((b_pad, OUT_PAD), jnp.float32),
        grid_spec=pltpu.PrefetchScalarGridSpec(
            num_scalar_prefetch=0,
            grid=(n_tiles,),
            in_specs=[
                pl.BlockSpec((tb, OUT_PAD), lambda i: (i, 0)),     # logits tile
                pl.BlockSpec((1, OUT_PAD), lambda i: (0, 0)),      # global max
                pl.BlockSpec((1, OUT_PAD), lambda i: (0, 0)),      # global 1/denom
            ],
            out_specs=pl.BlockSpec((tb, OUT_PAD), lambda i: (i, 0)),
        ),
        compiler_params=pltpu.CompilerParams(
            dimension_semantics=("parallel",),
            vmem_limit_bytes=vmem_limit_bytes),
        cost_estimate=pl.CostEstimate(
            flops=3 * b_pad * OUT_PAD,
            transcendentals=b_pad * OUT_PAD,
            bytes_accessed=2 * b_pad * OUT_PAD * 4 + 2 * OUT_PAD * 4),
    )(logits, gmax, ginv)

    # Slice off lane padding (10 real classes) and batch padding.
    return probs[:B, :OUTPUT_SIZE]


def init_params(key):
    """nn.Linear-style init: U(-1/sqrt(fan_in), 1/sqrt(fan_in))."""
    k1, k2, k3, k4 = jax.random.split(key, 4)
    bound1 = 1.0 / jnp.sqrt(jnp.float32(INPUT_SIZE))
    bound2 = 1.0 / jnp.sqrt(jnp.float32(HIDDEN_SIZE))
    w1 = jax.random.uniform(k1, (HIDDEN_SIZE, INPUT_SIZE), jnp.float32,
                            -bound1, bound1)
    b1 = jax.random.uniform(k2, (HIDDEN_SIZE,), jnp.float32, -bound1, bound1)
    w2 = jax.random.uniform(k3, (OUTPUT_SIZE, HIDDEN_SIZE), jnp.float32,
                            -bound2, bound2)
    b2 = jax.random.uniform(k4, (OUTPUT_SIZE,), jnp.float32, -bound2, bound2)
    return w1, b1, w2, b2


if __name__ == "__main__":
    key = jax.random.PRNGKey(0)
    kx, kp = jax.random.split(key)

    # B=600 with batch_tile=512 -> 2 tiles of 304 rows (only 8 padded rows),
    # exercising the multi-tile grid, resident weights, per-tile softmax stats
    # and the batch-padding mask.
    B = 600
    x = jax.random.normal(kx, (B, INPUT_SIZE), dtype=jnp.float32)
    w1, b1, w2, b2 = init_params(kp)

    params = prepare_params(w1, b1, w2, b2)   # one-time layout / dtype prep

    out = simple_mnist_forward(x, params)
    out = jax.block_until_ready(out)
    assert out.shape == (B, OUTPUT_SIZE)

    # Pure-JAX f32 reference of the same forward pass (dropout = identity).
    h_ref = x @ w1.T + b1
    y_ref = h_ref @ w2.T + b2
    ref = jax.nn.softmax(y_ref, axis=0)
    max_err = float(jnp.max(jnp.abs(out - ref)))
    assert max_err < 5e-3, f"max abs error vs reference: {max_err}"

    # Softmax over dim=0 -> each column sums to 1 (exact reciprocal now).
    col_sums = jnp.sum(out, axis=0)
    assert jnp.allclose(col_sums, jnp.ones((OUTPUT_SIZE,)), atol=1e-3), col_sums

    print("KERNEL_OK")
</pallas_src>

<mosaic_0001>
module attributes {stable_mosaic.version = 11 : i64} {
  func.func @logits_stats_kernel(%arg0: i32, %arg1: memref<304x784xf32, #tpu.memory_space<vmem>>, %arg2: memref<784x512xbf16, #tpu.memory_space<vmem>>, %arg3: memref<1x512xf32, #tpu.memory_space<vmem>>, %arg4: memref<512x128xbf16, #tpu.memory_space<vmem>>, %arg5: memref<1x128xf32, #tpu.memory_space<vmem>>, %arg6: memref<304x128xf32, #tpu.memory_space<vmem>>, %arg7: memref<8x128xf32, #tpu.memory_space<vmem>>, %arg8: memref<8x128xf32, #tpu.memory_space<vmem>>) attributes {dimension_semantics = [#tpu.dimension_semantics<parallel>], iteration_bounds = array<i64: 2>, scalar_prefetch = 0 : i64, scratch_operands = 0 : i64, tpu.core_type = #tpu.core_type<tc>, window_params = [{transform_indices = @transform_0, window_bounds = array<i64: 304, 784>}, {pipeline_mode = #tpu.pipeline_mode<synchronous>, transform_indices = @transform_1, window_bounds = array<i64: 784, 512>}, {pipeline_mode = #tpu.pipeline_mode<synchronous>, transform_indices = @transform_2, window_bounds = array<i64: 1, 512>}, {pipeline_mode = #tpu.pipeline_mode<synchronous>, transform_indices = @transform_3, window_bounds = array<i64: 512, 128>}, {pipeline_mode = #tpu.pipeline_mode<synchronous>, transform_indices = @transform_4, window_bounds = array<i64: 1, 128>}, {transform_indices = @transform_5, window_bounds = array<i64: 304, 128>}, {transform_indices = @transform_6, window_bounds = array<i64: 8, 128>}, {transform_indices = @transform_7, window_bounds = array<i64: 8, 128>}]} {
    %c0 = arith.constant 0 : index
    %c0_0 = arith.constant 0 : index
    %0 = vector.load %arg1[%c0, %c0_0] : memref<304x784xf32, #tpu.memory_space<vmem>>, vector<304x784xf32>
    %1 = arith.truncf %0 : vector<304x784xf32> to vector<304x784xbf16>
    %c0_1 = arith.constant 0 : index
    %c0_2 = arith.constant 0 : index
    %2 = vector.load %arg2[%c0_1, %c0_2] : memref<784x512xbf16, #tpu.memory_space<vmem>>, vector<784x512xbf16>
    %cst = arith.constant dense<0.000000e+00> : vector<304x512xf32>
    %3 = tpu.matmul %1, %2, %cst {dimension_numbers = #tpu.dot_dimension_numbers<[1], [0], [0], [1], [0, 0, 1, 1], [], []>} : vector<304x784xbf16>, vector<784x512xbf16>, vector<304x512xf32> -> vector<304x512xf32>
    %c0_3 = arith.constant 0 : index
    %c0_4 = arith.constant 0 : index
    %4 = vector.load %arg3[%c0_3, %c0_4] : memref<1x512xf32, #tpu.memory_space<vmem>>, vector<1x512xf32>
    %5 = vector.broadcast %4 : vector<1x512xf32> to vector<304x512xf32>
    %6 = arith.addf %3, %5 : vector<304x512xf32>
    %7 = arith.truncf %6 : vector<304x512xf32> to vector<304x512xbf16>
    %c0_5 = arith.constant 0 : index
    %c0_6 = arith.constant 0 : index
    %8 = vector.load %arg4[%c0_5, %c0_6] : memref<512x128xbf16, #tpu.memory_space<vmem>>, vector<512x128xbf16>
    %cst_7 = arith.constant dense<0.000000e+00> : vector<304x128xf32>
    %9 = tpu.matmul %7, %8, %cst_7 {dimension_numbers = #tpu.dot_dimension_numbers<[1], [0], [0], [1], [0, 0, 1, 1], [], []>} : vector<304x512xbf16>, vector<512x128xbf16>, vector<304x128xf32> -> vector<304x128xf32>
    %c0_8 = arith.constant 0 : index
    %c0_9 = arith.constant 0 : index
    %10 = vector.load %arg5[%c0_8, %c0_9] : memref<1x128xf32, #tpu.memory_space<vmem>>, vector<1x128xf32>
    %11 = vector.broadcast %10 : vector<1x128xf32> to vector<304x128xf32>
    %12 = arith.addf %9, %11 : vector<304x128xf32>
    %c0_10 = arith.constant 0 : index
    %c0_11 = arith.constant 0 : index
    %13 = vector.load %arg6[%c0_10, %c0_11] : memref<304x128xf32, #tpu.memory_space<vmem>>, vector<304x128xf32>
    tpu.vector_store %arg6[%c0_10, %c0_11], %12 {strides = array<i32>} : memref<304x128xf32, #tpu.memory_space<vmem>>, vector<304x128xf32>,
    %14 = tpu.iota {dimensions = array<i32: 0>} : vector<304x128xi32>
    %c304_i32 = arith.constant 304 : i32
    %15 = arith.muli %arg0, %c304_i32 : i32
    %16 = vector.broadcast %15 : i32 to vector<304x128xi32>
    %17 = arith.addi %14, %16 : vector<304x128xi32>
    %c600_i32 = arith.constant 600 : i32
    %18 = vector.broadcast %c600_i32 : i32 to vector<304x128xi32>
    %19 = arith.cmpi slt, %17, %18 : vector<304x128xi32>
    %cst_12 = arith.constant 0xFF800000 : f32
    %20 = vector.broadcast %cst_12 : f32 to vector<304x128xf32>
    %21 = arith.select %19, %12, %20 : vector<304x128xi1>, vector<304x128xf32>
    %cst_13 = arith.constant dense<0xFF800000> : vector<128xf32>
    %22 = vector.multi_reduction <maximumf>, %21, %cst_13 [0] : vector<304x128xf32> to vector<128xf32>
    %23 = vector.shape_cast %22 : vector<128xf32> to vector<1x128xf32>
    %24 = vector.broadcast %23 : vector<1x128xf32> to vector<304x128xf32>
    %25 = arith.subf %12, %24 : vector<304x128xf32>
    %26 = math.exp %25 : vector<304x128xf32>
    %cst_14 = arith.constant 0.000000e+00 : f32
    %27 = vector.broadcast %cst_14 : f32 to vector<304x128xf32>
    %28 = arith.select %19, %26, %27 : vector<304x128xi1>, vector<304x128xf32>
    %cst_15 = arith.constant dense<0.000000e+00> : vector<128xf32>
    %29 = vector.multi_reduction <add>, %28, %cst_15 [0] : vector<304x128xf32> to vector<128xf32>
    %30 = vector.shape_cast %29 : vector<128xf32> to vector<1x128xf32>
    %31 = vector.shape_cast %23 : vector<1x128xf32> to vector<1x128xf32>
    %32 = vector.broadcast %31 : vector<1x128xf32> to vector<8x128xf32>
    %c0_16 = arith.constant 0 : index
    %c0_17 = arith.constant 0 : index
    %33 = vector.load %arg7[%c0_16, %c0_17] : memref<8x128xf32, #tpu.memory_space<vmem>>, vector<8x128xf32>
    tpu.vector_store %arg7[%c0_16, %c0_17], %32 {strides = array<i32>} : memref<8x128xf32, #tpu.memory_space<vmem>>, vector<8x128xf32>,
    %34 = tpu.iota {dimensions = array<i32: 0>} : vector<8x128xi32>
    %c0_i32 = arith.constant 0 : i32
    %35 = vector.broadcast %c0_i32 : i32 to vector<8x128xi32>
    %36 = arith.cmpi eq, %34, %35 : vector<8x128xi32>
    %cst_18 = arith.constant 0.000000e+00 : f32
    %37 = vector.shape_cast %30 : vector<1x128xf32> to vector<1x128xf32>
    %38 = vector.broadcast %37 : vector<1x128xf32> to vector<8x128xf32>
    %39 = vector.broadcast %cst_18 : f32 to vector<8x128xf32>
    %40 = arith.select %36, %38, %39 : vector<8x128xi1>, vector<8x128xf32>
    %c0_19 = arith.constant 0 : index
    %c0_20 = arith.constant 0 : index
    %41 = vector.load %arg8[%c0_19, %c0_20] : memref<8x128xf32, #tpu.memory_space<vmem>>, vector<8x128xf32>
    tpu.vector_store %arg8[%c0_19, %c0_20], %40 {strides = array<i32>} : memref<8x128xf32, #tpu.memory_space<vmem>>, vector<8x128xf32>,
    return
  }
  func.func @transform_0(%arg0: i32) -> (i32, i32) {
    %c0_i32 = arith.constant 0 : i32
    %c0_i32_0 = arith.constant 0 : i32
    return %arg0, %c0_i32 : i32, i32
  }
  func.func @transform_1(%arg0: i32) -> (i32, i32) {
    %c0_i32 = arith.constant 0 : i32
    %c0_i32_0 = arith.constant 0 : i32
    %c0_i32_1 = arith.constant 0 : i32
    return %c0_i32, %c0_i32_0 : i32, i32
  }
  func.func @transform_2(%arg0: i32) -> (i32, i32) {
    %c0_i32 = arith.constant 0 : i32
    %c0_i32_0 = arith.constant 0 : i32
    %c0_i32_1 = arith.constant 0 : i32
    return %c0_i32, %c0_i32_0 : i32, i32
  }
  func.func @transform_3(%arg0: i32) -> (i32, i32) {
    %c0_i32 = arith.constant 0 : i32
    %c0_i32_0 = arith.constant 0 : i32
    %c0_i32_1 = arith.constant 0 : i32
    return %c0_i32, %c0_i32_0 : i32, i32
  }
  func.func @transform_4(%arg0: i32) -> (i32, i32) {
    %c0_i32 = arith.constant 0 : i32
    %c0_i32_0 = arith.constant 0 : i32
    %c0_i32_1 = arith.constant 0 : i32
    return %c0_i32, %c0_i32_0 : i32, i32
  }
  func.func @transform_5(%arg0: i32) -> (i32, i32) {
    %c0_i32 = arith.constant 0 : i32
    %c0_i32_0 = arith.constant 0 : i32
    return %arg0, %c0_i32 : i32, i32
  }
  func.func @transform_6(%arg0: i32) -> (i32, i32) {
    %c0_i32 = arith.constant 0 : i32
    %c0_i32_0 = arith.constant 0 : i32
    return %arg0, %c0_i32 : i32, i32
  }
  func.func @transform_7(%arg0: i32) -> (i32, i32) {
    %c0_i32 = arith.constant 0 : i32
    %c0_i32_0 = arith.constant 0 : i32
    return %arg0, %c0_i32 : i32, i32
  }
}

</mosaic_0001>

<llo_original>
// kernel: tpu_custom_call.1
$region0: #{tpu_custom_call.1}
  #allocation0 [shape = 'u32[]', space=smem, size = 0x4, offset = 0x4, fixed_abs, tag = 'smem constant byte address 0x4 - core index']
  #allocation1 [shape = 'u32[144,128]{1,0:T(1,128)}', space=vmem, size = 0x12000, scoped, tag = 'internal scratch']
  %s0 = inlined_call_operand.vmem [shape: f32[608,784], index: 0, kind: input, shape index: {}]
  %s1 = inlined_call_operand.vmem [shape: bf16[784,512], index: 1, kind: input, shape index: {}]
  %s2 = inlined_call_operand.vmem [shape: f32[1,512], index: 2, kind: input, shape index: {}]
  %s3 = inlined_call_operand.vmem [shape: bf16[512,128], index: 3, kind: input, shape index: {}]
  %s4 = inlined_call_operand.vmem [shape: f32[1,128], index: 4, kind: input, shape index: {}]
  %s5 = inlined_call_operand.hbm [shape: f32[608,128], index: 5, kind: output, shape index: {0}]
  %s6 = inlined_call_operand.hbm [shape: f32[16,128], index: 6, kind: output, shape index: {1}]
  %s7 = inlined_call_operand.hbm [shape: f32[16,128], index: 7, kind: output, shape index: {2}]
  %8 = xla_tuple %s5, %s6, %s7
  %s9 = sld [smem:[#allocation0]]
  $region69: #{tpu_custom_call.1} parent=0
    _
  %s11 = ssub.s32 1, %s9
  %s12 = scalar_select 0, %s11, %s9
  $region1: #{tpu_custom_call.1} parent=0
    #allocation2 [shape = 'u8[311296]{0}', space=vmem, size = 0x4c000, scoped, tag = 'output window, operand 0']
    #allocation3 [shape = 's32[2]{0}', space=sflag, size = 0x8, scoped, tag = 'scoped memory for tpu_custom_call.1']
    #allocation4 [shape = 'u8[8192]{0}', space=vmem, size = 0x2000, scoped, tag = 'output window, operand 1']
    #allocation5 [shape = 's32[2]{0}', space=sflag, size = 0x8, scoped, tag = 'scoped memory for tpu_custom_call.1']
    #allocation6 [shape = 'u8[8192]{0}', space=vmem, size = 0x2000, scoped, tag = 'output window, operand 2']
    %13 = vsyncpa [#allocation3], 0
    %s14 = scalar_lea.sflag [#allocation3], 1
    %15 = vsyncpa %s14, 0
    %16 = vsyncpa [#allocation5], 0
    %s17 = scalar_lea.sflag [#allocation5], 1
    %18 = vsyncpa %s17, 0
    loop: start=0, step=1, limit=4
    $region2: #{tpu_custom_call.1} parent=1 // loop_pre_header
      _
    $region3: #{tpu_custom_call.1} parent=1 // loop_header
      %s20 = sphi 0, %s24
      %p21 = scmp.ge.s32.totalorder %s20, 4
      %s30 = sphi 0, %s32
      %s33 = sphi 0, %s30
      %s34 = sphi 0, %s33
      %s50 = sphi 0, %s34
      %s54 = sphi 0, %s54
      %s56 = sphi 0, %s54
      %s57 = sphi 0, %s56
      %s71 = sphi 0, %s57
      %s75 = sphi 0, %s75
      %s77 = sphi 0, %s75
      %s78 = sphi 0, %s77
      %s92 = sphi 0, %s78
      %s96 = sphi 0, %s96
      %s98 = sphi 0, %s96
      %s99 = sphi 0, %s98
      %s113 = sphi 0, %s99
      %s117 = sphi 0, %s117
      %s119 = sphi 0, %s117
      %s120 = sphi 0, %s119
      %s134 = sphi 0, %s120
      %s140 = sphi 0, %s142
      %s143 = sphi 0, %s140
      %s144 = sphi 0, %s143
      %s160 = sphi 0, %s144
      %s166 = sphi 0, %s168
      %s169 = sphi 0, %s166
      %s170 = sphi 0, %s169
      %s186 = sphi 0, %s170
      %s192 = sphi 0, %s194
      %s195 = sphi 0, %s192
      %s196 = sphi 0, %s195
      %s212 = sphi 0, %s196
    $region4: #{tpu_custom_call.1} parent=1 // loop_header_branch
      %23 = sbr.rel (%p21) target = $region8
    $region5: #{tpu_custom_call.1} parent=1 // loop_body
      %s25 = ssub.s32 %s20, 1
      %s26 = ssub.s32 %s20, 2
      %s27 = sadd.s32 %s20, 1
      %s28 = ssub.s32 %s20, %s27
      %p29 = scmp.eq.s32.totalorder %s28, 0
      %s31 = sadd.s32 %s30, 1
      %s32 = scalar_select %p29, %s30, %s31
      %p35 = pneg %p29
      %p36 = scmp.eq.s32.totalorder %s20, 1
      %p37 = por %p35, %p36
      %p38 = scmp.ne.s32.totalorder %s30, %s33
      %p39 = scmp.eq.s32.totalorder %s20, 0
      %p40 = por %p38, %p39
      %p41 = scmp.ne.s32.totalorder %s30, %s33
      %p42 = scmp.eq.s32.totalorder %s25, 1
      %p43 = por %p41, %p42
      %p44 = scmp.ne.s32.totalorder %s33, %s34
      %p45 = scmp.eq.s32.totalorder %s25, 0
      %p46 = por %p44, %p45
      %p47 = scmp.ne.s32.totalorder %s33, %s34
      %p48 = scmp.eq.s32.totalorder %s26, 1
      %p49 = por %p47, %p48
      %p51 = scmp.ne.s32.totalorder %s34, %s50
      %p52 = scmp.eq.s32.totalorder %s26, 0
      %p53 = por %p51, %p52
      %s55 = sadd.s32 %s54, 1
      %p58 = scmp.eq.s32.totalorder %s20, 1
      %p59 = scmp.ne.s32.totalorder %s54, %s56
      %p60 = scmp.eq.s32.totalorder %s20, 0
      %p61 = por %p59, %p60
      %p62 = scmp.ne.s32.totalorder %s54, %s56
      %p63 = scmp.eq.s32.totalorder %s25, 1
      %p64 = por %p62, %p63
      %p65 = scmp.ne.s32.totalorder %s56, %s57
      %p66 = scmp.eq.s32.totalorder %s25, 0
      %p67 = por %p65, %p66
      %p68 = scmp.ne.s32.totalorder %s56, %s57
      %p69 = scmp.eq.s32.totalorder %s26, 1
      %p70 = por %p68, %p69
      %p72 = scmp.ne.s32.totalorder %s57, %s71
      %p73 = scmp.eq.s32.totalorder %s26, 0
      %p74 = por %p72, %p73
      %s76 = sadd.s32 %s75, 1
      %p79 = scmp.eq.s32.totalorder %s20, 1
      %p80 = scmp.ne.s32.totalorder %s75, %s77
      %p81 = scmp.eq.s32.totalorder %s20, 0
      %p82 = por %p80, %p81
      %p83 = scmp.ne.s32.totalorder %s75, %s77
      %p84 = scmp.eq.s32.totalorder %s25, 1
      %p85 = por %p83, %p84
      %p86 = scmp.ne.s32.totalorder %s77, %s78
      %p87 = scmp.eq.s32.totalorder %s25, 0
      %p88 = por %p86, %p87
      %p89 = scmp.ne.s32.totalorder %s77, %s78
      %p90 = scmp.eq.s32.totalorder %s26, 1
      %p91 = por %p89, %p90
      %p93 = scmp.ne.s32.totalorder %s78, %s92
      %p94 = scmp.eq.s32.totalorder %s26, 0
      %p95 = por %p93, %p94
      %s97 = sadd.s32 %s96, 1
      %p100 = scmp.eq.s32.totalorder %s20, 1
      %p101 = scmp.ne.s32.totalorder %s96, %s98
      %p102 = scmp.eq.s32.totalorder %s20, 0
      %p103 = por %p101, %p102
      %p104 = scmp.ne.s32.totalorder %s96, %s98
      %p105 = scmp.eq.s32.totalorder %s25, 1
      %p106 = por %p104, %p105
      %p107 = scmp.ne.s32.totalorder %s98, %s99
      %p108 = scmp.eq.s32.totalorder %s25, 0
      %p109 = por %p107, %p108
      %p110 = scmp.ne.s32.totalorder %s98, %s99
      %p111 = scmp.eq.s32.totalorder %s26, 1
      %p112 = por %p110, %p111
      %p114 = scmp.ne.s32.totalorder %s99, %s113
      %p115 = scmp.eq.s32.totalorder %s26, 0
      %p116 = por %p114, %p115
      %s118 = sadd.s32 %s117, 1
      %p121 = scmp.eq.s32.totalorder %s20, 1
      %p122 = scmp.ne.s32.totalorder %s117, %s119
      %p123 = scmp.eq.s32.totalorder %s20, 0
      %p124 = por %p122, %p123
      %p125 = scmp.ne.s32.totalorder %s117, %s119
      %p126 = scmp.eq.s32.totalorder %s25, 1
      %p127 = por %p125, %p126
      %p128 = scmp.ne.s32.totalorder %s119, %s120
      %p129 = scmp.eq.s32.totalorder %s25, 0
      %p130 = por %p128, %p129
      %p131 = scmp.ne.s32.totalorder %s119, %s120
      %p132 = scmp.eq.s32.totalorder %s26, 1
      %p133 = por %p131, %p132
      %p135 = scmp.ne.s32.totalorder %s120, %s134
      %p136 = scmp.eq.s32.totalorder %s26, 0
      %p137 = por %p135, %p136
      %s138 = ssub.s32 %s20, %s27
      %p139 = scmp.eq.s32.totalorder %s138, 0
      %s141 = sadd.s32 %s140, 1
      %s142 = scalar_select %p139, %s140, %s141
      %p145 = pneg %p139
      %p146 = scmp.eq.s32.totalorder %s20, 1
      %p147 = por %p145, %p146
      %p148 = scmp.ne.s32.totalorder %s140, %s143
      %p149 = scmp.eq.s32.totalorder %s20, 0
      %p150 = por %p148, %p149
      %p151 = scmp.ne.s32.totalorder %s140, %s143
      %p152 = scmp.eq.s32.totalorder %s25, 1
      %p153 = por %p151, %p152
      %p154 = scmp.ne.s32.totalorder %s143, %s144
      %p155 = scmp.eq.s32.totalorder %s25, 0
      %p156 = por %p154, %p155
      %p157 = scmp.ne.s32.totalorder %s143, %s144
      %p158 = scmp.eq.s32.totalorder %s26, 1
      %p159 = por %p157, %p158
      %p161 = scmp.ne.s32.totalorder %s144, %s160
      %p162 = scmp.eq.s32.totalorder %s26, 0
      %p163 = por %p161, %p162
      %s164 = ssub.s32 %s20, %s27
      %p165 = scmp.eq.s32.totalorder %s164, 0
      %s167 = sadd.s32 %s166, 1
      %s168 = scalar_select %p165, %s166, %s167
      %p171 = pneg %p165
      %p172 = scmp.eq.s32.totalorder %s20, 1
      %p173 = por %p171, %p172
      %p174 = scmp.ne.s32.totalorder %s166, %s169
      %p175 = scmp.eq.s32.totalorder %s20, 0
      %p176 = por %p174, %p175
      %p177 = scmp.ne.s32.totalorder %s166, %s169
      %p178 = scmp.eq.s32.totalorder %s25, 1
      %p179 = por %p177, %p178
      %p180 = scmp.ne.s32.totalorder %s169, %s170
      %p181 = scmp.eq.s32.totalorder %s25, 0
      %p182 = por %p180, %p181
      %p183 = scmp.ne.s32.totalorder %s169, %s170
      %p184 = scmp.eq.s32.totalorder %s26, 1
      %p185 = por %p183, %p184
      %p187 = scmp.ne.s32.totalorder %s170, %s186
      %p188 = scmp.eq.s32.totalorder %s26, 0
      %p189 = por %p187, %p188
      %s190 = ssub.s32 %s20, %s27
      %p191 = scmp.eq.s32.totalorder %s190, 0
      %s193 = sadd.s32 %s192, 1
      %s194 = scalar_select %p191, %s192, %s193
      %p197 = pneg %p191
      %p198 = scmp.eq.s32.totalorder %s20, 1
      %p199 = por %p197, %p198
      %p200 = scmp.ne.s32.totalorder %s192, %s195
      %p201 = scmp.eq.s32.totalorder %s20, 0
      %p202 = por %p200, %p201
      %p203 = scmp.ne.s32.totalorder %s192, %s195
      %p204 = scmp.eq.s32.totalorder %s25, 1
      %p205 = por %p203, %p204
      %p206 = scmp.ne.s32.totalorder %s195, %s196
      %p207 = scmp.eq.s32.totalorder %s25, 0
      %p208 = por %p206, %p207
      %p209 = scmp.ne.s32.totalorder %s195, %s196
      %p210 = scmp.eq.s32.totalorder %s26, 1
      %p211 = por %p209, %p210
      %p213 = scmp.ne.s32.totalorder %s196, %s212
      %p214 = scmp.eq.s32.totalorder %s26, 0
      %p215 = por %p213, %p214
      %p216 = scmp.le.s32.totalorder 1, %s20
      %p217 = scmp.lt.s32.totalorder %s20, 3
      %p218 = pnand %p216, %p217
      %p219 = pneg %p218
      // Predicated region
      $region9: #{tpu_custom_call.1} parent=5 // pred_check
        _
      $region10: #{tpu_custom_call.1} parent=5 // pred_check_branch
        %221 = sbr.rel (%p218) target = $region12
      $region11: #{tpu_custom_call.1} parent=5 // pred_region
        %s222 = ssub.s32 %s20, 1
        // Predicated region
        $region13: #{tpu_custom_call.1} parent=11 // pred_check
          %p223 = pneg %p67
        $region14: #{tpu_custom_call.1} parent=11 // pred_check_branch
          %225 = sbr.rel (%p223) target = $region16
        $region15: #{tpu_custom_call.1} parent=11 // pred_region
          _
        $region16: #{tpu_custom_call.1} parent=11 // pred_fallthru
          _
        // Predicated region
        $region17: #{tpu_custom_call.1} parent=11 // pred_check
          %p226 = pneg %p88
        $region18: #{tpu_custom_call.1} parent=11 // pred_check_branch
          %228 = sbr.rel (%p226) target = $region20
        $region19: #{tpu_custom_call.1} parent=11 // pred_region
          _
        $region20: #{tpu_custom_call.1} parent=11 // pred_fallthru
          _
        // Predicated region
        $region21: #{tpu_custom_call.1} parent=11 // pred_check
          %p229 = pneg %p109
        $region22: #{tpu_custom_call.1} parent=11 // pred_check_branch
          %231 = sbr.rel (%p229) target = $region24
        $region23: #{tpu_custom_call.1} parent=11 // pred_region
          _
        $region24: #{tpu_custom_call.1} parent=11 // pred_fallthru
          _
        // Predicated region
        $region25: #{tpu_custom_call.1} parent=11 // pred_check
          %p232 = pneg %p130
        $region26: #{tpu_custom_call.1} parent=11 // pred_check_branch
          %234 = sbr.rel (%p232) target = $region28
        $region27: #{tpu_custom_call.1} parent=11 // pred_region
          _
        $region28: #{tpu_custom_call.1} parent=11 // pred_fallthru
          _
      $region12: #{tpu_custom_call.1} parent=5 // pred_fallthru
        _
      %p235 = scmp.lt.s32.totalorder %s20, 2
      // Predicated region
      $region29: #{tpu_custom_call.1} parent=5 // pred_check
        %p236 = pneg %p235
      $region30: #{tpu_custom_call.1} parent=5 // pred_check_branch
        %238 = sbr.rel (%p236) target = $region32
      $region31: #{tpu_custom_call.1} parent=5 // pred_region
        // Predicated region
        $region33: #{tpu_custom_call.1} parent=31 // pred_check
          %p239 = pneg %p40
        $region34: #{tpu_custom_call.1} parent=31 // pred_check_branch
          %241 = sbr.rel (%p239) target = $region36
        $region35: #{tpu_custom_call.1} parent=31 // pred_region
          %s242 = smul.u32 38, %s20
          %p243 = scmp.lt.s32.totalorder %s242, 75
          %s244 = scalar_select %p243, %s242, 75
          %s245 = smul.addr %s244, 7
          %s246 = smul.addr %s245, 8
          %s247 = scalar_lea.vmem %s0, %s246
          %s248 = smul.u32 38, %s20
        $region36: #{tpu_custom_call.1} parent=31 // pred_fallthru
          _
      $region32: #{tpu_custom_call.1} parent=5 // pred_fallthru
        _
      %p249 = scmp.le.s32.totalorder 1, %s20
      %p250 = scmp.lt.s32.totalorder %s20, 3
      %p251 = pnand %p249, %p250
      %p252 = pneg %p251
      // Predicated region
      $region37: #{tpu_custom_call.1} parent=5 // pred_check
        _
      $region38: #{tpu_custom_call.1} parent=5 // pred_check_branch
        %254 = sbr.rel (%p251) target = $region40
      $region39: #{tpu_custom_call.1} parent=5 // pred_region
        %s255 = ssub.s32 %s20, 1
        %s256 = smul.u32 38, %s25
        %p257 = scmp.lt.s32.totalorder %s256, 75
        %s258 = scalar_select %p257, %s256, 75
        %s259 = smul.addr %s258, 7
        %s260 = smul.addr %s259, 8
        %s261 = scalar_lea.vmem %s0, %s260
        %p262 = pneg %p46
        %p263 = pneg %p43
        %p264 = pneg %p67
        %p265 = pneg %p64
        %p266 = pneg %p88
        %p267 = pneg %p85
        %p268 = pneg %p109
        %p269 = pneg %p106
        %p270 = pneg %p130
        %p271 = pneg %p127
        %p272 = pneg %p156
        %p273 = pneg %p153
        %s274 = sand.u32 %s143, 1
        %s275 = scalar_lea.sflag [#allocation3], %s274
        %s276 = sand.u32 %s143, 1
        %s277 = smul.addr %s276, 304
        %s278 = scalar_lea.vmem [#allocation2], %s277
        %p279 = pneg %p182
        %p280 = pneg %p179
        %s281 = sand.u32 %s25, 1
        %s282 = scalar_lea.sflag [#allocation5], %s281
        %s283 = sand.u32 %s169, 1
        %s284 = smul.addr %s283, 8
        %s285 = scalar_lea.vmem [#allocation4], %s284
        %p286 = pneg %p208
        %p287 = pneg %p205
        %s288 = sand.u32 %s25, 1
        %s289 = scalar_lea.sflag [#allocation5], %s288
        %s290 = sand.u32 %s195, 1
        %s291 = smul.addr %s290, 8
        %s292 = scalar_lea.vmem [#allocation6], %s291
        %s293 = smul.u32 38, %s25
        %p294 = scmp.lt.s32.totalorder %s293, 75
        %s295 = scalar_select %p294, %s293, 75
        %s296 = smul.addr %s295, 7
        %s297 = smul.addr %s296, 8
        %s298 = scalar_lea.vmem %s0, %s297
        %s299 = smul.u32 38, %s25
        %s300 = smul.u32 38, %s25
        %v302 = vld [vmem:[%s298] sm:$0xff]
        %v303 = vld [vmem:[%s298 + $0x8] sm:$0xff]
        %v304 = vld [vmem:[%s298 + $0x10] sm:$0xff]
        %v305 = vld [vmem:[%s298 + $0x18] sm:$0xff]
        %v306 = vld [vmem:[%s298 + $0x20] sm:$0xff]
        %v307 = vld [vmem:[%s298 + $0x28] sm:$0xff]
        %v308 = vld [vmem:[%s298 + $0x30] sm:$0xff]
        %v309 = vld [vmem:[%s298 + $0x38] sm:$0xff]
        %v310 = vld [vmem:[%s298 + $0x40] sm:$0xff]
        %v311 = vld [vmem:[%s298 + $0x48] sm:$0xff]
        %v312 = vld [vmem:[%s298 + $0x50] sm:$0xff]
        %v313 = vld [vmem:[%s298 + $0x58] sm:$0xff]
        %v314 = vld [vmem:[%s298 + $0x60] sm:$0xff]
        %v315 = vld [vmem:[%s298 + $0x68] sm:$0xff]
        %v316 = vld [vmem:[%s298 + $0x70] sm:$0xff]
        %v317 = vld [vmem:[%s298 + $0x78] sm:$0xff]
        %v318 = vld [vmem:[%s298 + $0x80] sm:$0xff]
        %v319 = vld [vmem:[%s298 + $0x88] sm:$0xff]
        %v320 = vld [vmem:[%s298 + $0x90] sm:$0xff]
        %v321 = vld [vmem:[%s298 + $0x98] sm:$0xff]
        %v322 = vld [vmem:[%s298 + $0xa0] sm:$0xff]
        %v323 = vld [vmem:[%s298 + $0xa8] sm:$0xff]
        %v324 = vld [vmem:[%s298 + $0xb0] sm:$0xff]
        %v325 = vld [vmem:[%s298 + $0xb8] sm:$0xff]
        %v326 = vld [vmem:[%s298 + $0xc0] sm:$0xff]
        %v327 = vld [vmem:[%s298 + $0xc8] sm:$0xff]
        %v328 = vld [vmem:[%s298 + $0xd0] sm:$0xff]
        %v329 = vld [vmem:[%s298 + $0xd8] sm:$0xff]
        %v330 = vld [vmem:[%s298 + $0xe0] sm:$0xff]
        %v331 = vld [vmem:[%s298 + $0xe8] sm:$0xff]
        %v332 = vld [vmem:[%s298 + $0xf0] sm:$0xff]
        %v333 = vld [vmem:[%s298 + $0xf8] sm:$0xff]
        %v334 = vld [vmem:[%s298 + $0x100] sm:$0xff]
        %v335 = vld [vmem:[%s298 + $0x108] sm:$0xff]
        %v336 = vld [vmem:[%s298 + $0x110] sm:$0xff]
        %v337 = vld [vmem:[%s298 + $0x118] sm:$0xff]
        %v338 = vld [vmem:[%s298 + $0x120] sm:$0xff]
        %v339 = vld [vmem:[%s298 + $0x128] sm:$0xff]
        %v340 = vld [vmem:[%s298 + $0x130] sm:$0xff]
        %v341 = vld [vmem:[%s298 + $0x138] sm:$0xff]
        %v342 = vld [vmem:[%s298 + $0x140] sm:$0xff]
        %v343 = vld [vmem:[%s298 + $0x148] sm:$0xff]
        %v344 = vld [vmem:[%s298 + $0x150] sm:$0xff]
        %v345 = vld [vmem:[%s298 + $0x158] sm:$0xff]
        %v346 = vld [vmem:[%s298 + $0x160] sm:$0xff]
        %v347 = vld [vmem:[%s298 + $0x168] sm:$0xff]
        %v348 = vld [vmem:[%s298 + $0x170] sm:$0xff]
        %v349 = vld [vmem:[%s298 + $0x178] sm:$0xff]
        %v350 = vld [vmem:[%s298 + $0x180] sm:$0xff]
        %v351 = vld [vmem:[%s298 + $0x188] sm:$0xff]
        %v352 = vld [vmem:[%s298 + $0x190] sm:$0xff]
        %v353 = vld [vmem:[%s298 + $0x198] sm:$0xff]
        %v354 = vld [vmem:[%s298 + $0x1a0] sm:$0xff]
        %v355 = vld [vmem:[%s298 + $0x1a8] sm:$0xff]
        %v356 = vld [vmem:[%s298 + $0x1b0] sm:$0xff]
        %v357 = vld [vmem:[%s298 + $0x1b8] sm:$0xff]
        %v358 = vld [vmem:[%s298 + $0x1c0] sm:$0xff]
        %v359 = vld [vmem:[%s298 + $0x1c8] sm:$0xff]
        %v360 = vld [vmem:[%s298 + $0x1d0] sm:$0xff]
        %v361 = vld [vmem:[%s298 + $0x1d8] sm:$0xff]
        %v362 = vld [vmem:[%s298 + $0x1e0] sm:$0xff]
        %v363 = vld [vmem:[%s298 + $0x1e8] sm:$0xff]
        %v364 = vld [vmem:[%s298 + $0x1f0] sm:$0xff]
        %v365 = vld [vmem:[%s298 + $0x1f8] sm:$0xff]
        %v366 = vld [vmem:[%s298 + $0x200] sm:$0xff]
        %v367 = vld [vmem:[%s298 + $0x208] sm:$0xff]
        %v368 = vld [vmem:[%s298 + $0x210] sm:$0xff]
        %v369 = vld [vmem:[%s298 + $0x218] sm:$0xff]
        %v370 = vld [vmem:[%s298 + $0x220] sm:$0xff]
        %v371 = vld [vmem:[%s298 + $0x228] sm:$0xff]
        %v372 = vld [vmem:[%s298 + $0x230] sm:$0xff]
        %v373 = vld [vmem:[%s298 + $0x238] sm:$0xff]
        %v374 = vld [vmem:[%s298 + $0x240] sm:$0xff]
        %v375 = vld [vmem:[%s298 + $0x248] sm:$0xff]
        %v376 = vld [vmem:[%s298 + $0x250] sm:$0xff]
        %v377 = vld [vmem:[%s298 + $0x258] sm:$0xff]
        %v378 = vld [vmem:[%s298 + $0x260] sm:$0xff]
        %v379 = vld [vmem:[%s298 + $0x268] sm:$0xff]
        %v380 = vld [vmem:[%s298 + $0x270] sm:$0xff]
        %v381 = vld [vmem:[%s298 + $0x278] sm:$0xff]
        %v382 = vld [vmem:[%s298 + $0x280] sm:$0xff]
        %v383 = vld [vmem:[%s298 + $0x288] sm:$0xff]
        %v384 = vld [vmem:[%s298 + $0x290] sm:$0xff]
        %v385 = vld [vmem:[%s298 + $0x298] sm:$0xff]
        %v386 = vld [vmem:[%s298 + $0x2a0] sm:$0xff]
        %v387 = vld [vmem:[%s298 + $0x2a8] sm:$0xff]
        %v388 = vld [vmem:[%s298 + $0x2b0] sm:$0xff]
        %v389 = vld [vmem:[%s298 + $0x2b8] sm:$0xff]
        %v390 = vld [vmem:[%s298 + $0x2c0] sm:$0xff]
        %v391 = vld [vmem:[%s298 + $0x2c8] sm:$0xff]
        %v392 = vld [vmem:[%s298 + $0x2d0] sm:$0xff]
        %v393 = vld [vmem:[%s298 + $0x2d8] sm:$0xff]
        %v394 = vld [vmem:[%s298 + $0x2e0] sm:$0xff]
        %v395 = vld [vmem:[%s298 + $0x2e8] sm:$0xff]
        %v396 = vld [vmem:[%s298 + $0x2f0] sm:$0xff]
        %v397 = vld [vmem:[%s298 + $0x2f8] sm:$0xff]
        %v398 = vld [vmem:[%s298 + $0x300] sm:$0xff]
        %v399 = vld [vmem:[%s298 + $0x308] sm:$0xff]
        %v400 = vld [vmem:[%s298 + $0x310] sm:$0xff]
        %v401 = vld [vmem:[%s298 + $0x318] sm:$0xff]
        %v402 = vld [vmem:[%s298 + $0x320] sm:$0xff]
        %v403 = vld [vmem:[%s298 + $0x328] sm:$0xff]
        %v404 = vld [vmem:[%s298 + $0x330] sm:$0xff]
        %v405 = vld [vmem:[%s298 + $0x338] sm:$0xff]
        %v406 = vld [vmem:[%s298 + $0x340] sm:$0xff]
        %v407 = vld [vmem:[%s298 + $0x348] sm:$0xff]
        %v408 = vld [vmem:[%s298 + $0x350] sm:$0xff]
        %v409 = vld [vmem:[%s298 + $0x358] sm:$0xff]
        %v410 = vld [vmem:[%s298 + $0x360] sm:$0xff]
        %v411 = vld [vmem:[%s298 + $0x368] sm:$0xff]
        %v412 = vld [vmem:[%s298 + $0x370] sm:$0xff]
        %v413 = vld [vmem:[%s298 + $0x378] sm:$0xff]
        %v414 = vld [vmem:[%s298 + $0x380] sm:$0xff]
        %v415 = vld [vmem:[%s298 + $0x388] sm:$0xff]
        %v416 = vld [vmem:[%s298 + $0x390] sm:$0xff]
        %v417 = vld [vmem:[%s298 + $0x398] sm:$0xff]
        %v418 = vld [vmem:[%s298 + $0x3a0] sm:$0xff]
        %v419 = vld [vmem:[%s298 + $0x3a8] sm:$0xff]
        %v420 = vld [vmem:[%s298 + $0x3b0] sm:$0xff]
        %v421 = vld [vmem:[%s298 + $0x3b8] sm:$0xff]
        %v422 = vld [vmem:[%s298 + $0x3c0] sm:$0xff]
        %v423 = vld [vmem:[%s298 + $0x3c8] sm:$0xff]
        %v424 = vld [vmem:[%s298 + $0x3d0] sm:$0xff]
        %v425 = vld [vmem:[%s298 + $0x3d8] sm:$0xff]
        %v426 = vld [vmem:[%s298 + $0x3e0] sm:$0xff]
        %v427 = vld [vmem:[%s298 + $0x3e8] sm:$0xff]
        %v428 = vld [vmem:[%s298 + $0x3f0] sm:$0xff]
        %v429 = vld [vmem:[%s298 + $0x3f8] sm:$0xff]
        %v430 = vld [vmem:[%s298 + $0x400] sm:$0xff]
        %v431 = vld [vmem:[%s298 + $0x408] sm:$0xff]
        %v432 = vld [vmem:[%s298 + $0x410] sm:$0xff]
        %v433 = vld [vmem:[%s298 + $0x418] sm:$0xff]
        %v434 = vld [vmem:[%s298 + $0x420] sm:$0xff]
        %v435 = vld [vmem:[%s298 + $0x428] sm:$0xff]
        %v436 = vld [vmem:[%s298 + $0x430] sm:$0xff]
        %v437 = vld [vmem:[%s298 + $0x438] sm:$0xff]
        %v438 = vld [vmem:[%s298 + $0x440] sm:$0xff]
        %v439 = vld [vmem:[%s298 + $0x448] sm:$0xff]
        %v440 = vld [vmem:[%s298 + $0x450] sm:$0xff]
        %v441 = vld [vmem:[%s298 + $0x458] sm:$0xff]
        %v442 = vld [vmem:[%s298 + $0x460] sm:$0xff]
        %v443 = vld [vmem:[%s298 + $0x468] sm:$0xff]
        %v444 = vld [vmem:[%s298 + $0x470] sm:$0xff]
        %v445 = vld [vmem:[%s298 + $0x478] sm:$0xff]
        %v446 = vld [vmem:[%s298 + $0x480] sm:$0xff]
        %v447 = vld [vmem:[%s298 + $0x488] sm:$0xff]
        %v448 = vld [vmem:[%s298 + $0x490] sm:$0xff]
        %v449 = vld [vmem:[%s298 + $0x498] sm:$0xff]
        %v450 = vld [vmem:[%s298 + $0x4a0] sm:$0xff]
        %v451 = vld [vmem:[%s298 + $0x4a8] sm:$0xff]
        %v452 = vld [vmem:[%s298 + $0x4b0] sm:$0xff]
        %v453 = vld [vmem:[%s298 + $0x4b8] sm:$0xff]
        %v454 = vld [vmem:[%s298 + $0x4c0] sm:$0xff]
        %v455 = vld [vmem:[%s298 + $0x4c8] sm:$0xff]
        %v456 = vld [vmem:[%s298 + $0x4d0] sm:$0xff]
        %v457 = vld [vmem:[%s298 + $0x4d8] sm:$0xff]
        %v458 = vld [vmem:[%s298 + $0x4e0] sm:$0xff]
        %v459 = vld [vmem:[%s298 + $0x4e8] sm:$0xff]
        %v460 = vld [vmem:[%s298 + $0x4f0] sm:$0xff]
        %v461 = vld [vmem:[%s298 + $0x4f8] sm:$0xff]
        %v462 = vld [vmem:[%s298 + $0x500] sm:$0xff]
        %v463 = vld [vmem:[%s298 + $0x508] sm:$0xff]
        %v464 = vld [vmem:[%s298 + $0x510] sm:$0xff]
        %v465 = vld [vmem:[%s298 + $0x518] sm:$0xff]
        %v466 = vld [vmem:[%s298 + $0x520] sm:$0xff]
        %v467 = vld [vmem:[%s298 + $0x528] sm:$0xff]
        %v468 = vld [vmem:[%s298 + $0x530] sm:$0xff]
        %v469 = vld [vmem:[%s298 + $0x538] sm:$0xff]
        %v470 = vld [vmem:[%s298 + $0x540] sm:$0xff]
        %v471 = vld [vmem:[%s298 + $0x548] sm:$0xff]
        %v472 = vld [vmem:[%s298 + $0x550] sm:$0xff]
        %v473 = vld [vmem:[%s298 + $0x558] sm:$0xff]
        %v474 = vld [vmem:[%s298 + $0x560] sm:$0xff]
        %v475 = vld [vmem:[%s298 + $0x568] sm:$0xff]
        %v476 = vld [vmem:[%s298 + $0x570] sm:$0xff]
        %v477 = vld [vmem:[%s298 + $0x578] sm:$0xff]
        %v478 = vld [vmem:[%s298 + $0x580] sm:$0xff]
        %v479 = vld [vmem:[%s298 + $0x588] sm:$0xff]
        %v480 = vld [vmem:[%s298 + $0x590] sm:$0xff]
        %v481 = vld [vmem:[%s298 + $0x598] sm:$0xff]
        %v482 = vld [vmem:[%s298 + $0x5a0] sm:$0xff]
        %v483 = vld [vmem:[%s298 + $0x5a8] sm:$0xff]
        %v484 = vld [vmem:[%s298 + $0x5b0] sm:$0xff]
        %v485 = vld [vmem:[%s298 + $0x5b8] sm:$0xff]
        %v486 = vld [vmem:[%s298 + $0x5c0] sm:$0xff]
        %v487 = vld [vmem:[%s298 + $0x5c8] sm:$0xff]
        %v488 = vld [vmem:[%s298 + $0x5d0] sm:$0xff]
        %v489 = vld [vmem:[%s298 + $0x5d8] sm:$0xff]
        %v490 = vld [vmem:[%s298 + $0x5e0] sm:$0xff]
        %v491 = vld [vmem:[%s298 + $0x5e8] sm:$0xff]
        %v492 = vld [vmem:[%s298 + $0x5f0] sm:$0xff]
        %v493 = vld [vmem:[%s298 + $0x5f8] sm:$0xff]
        %v494 = vld [vmem:[%s298 + $0x600] sm:$0xff]
        %v495 = vld [vmem:[%s298 + $0x608] sm:$0xff]
        %v496 = vld [vmem:[%s298 + $0x610] sm:$0xff]
        %v497 = vld [vmem:[%s298 + $0x618] sm:$0xff]
        %v498 = vld [vmem:[%s298 + $0x620] sm:$0xff]
        %v499 = vld [vmem:[%s298 + $0x628] sm:$0xff]
        %v500 = vld [vmem:[%s298 + $0x630] sm:$0xff]
        %v501 = vld [vmem:[%s298 + $0x638] sm:$0xff]
        %v502 = vld [vmem:[%s298 + $0x640] sm:$0xff]
        %v503 = vld [vmem:[%s298 + $0x648] sm:$0xff]
        %v504 = vld [vmem:[%s298 + $0x650] sm:$0xff]
        %v505 = vld [vmem:[%s298 + $0x658] sm:$0xff]
        %v506 = vld [vmem:[%s298 + $0x660] sm:$0xff]
        %v507 = vld [vmem:[%s298 + $0x668] sm:$0xff]
        %v508 = vld [vmem:[%s298 + $0x670] sm:$0xff]
        %v509 = vld [vmem:[%s298 + $0x678] sm:$0xff]
        %v510 = vld [vmem:[%s298 + $0x680] sm:$0xff]
        %v511 = vld [vmem:[%s298 + $0x688] sm:$0xff]
        %v512 = vld [vmem:[%s298 + $0x690] sm:$0xff]
        %v513 = vld [vmem:[%s298 + $0x698] sm:$0xff]
        %v514 = vld [vmem:[%s298 + $0x6a0] sm:$0xff]
        %v515 = vld [vmem:[%s298 + $0x6a8] sm:$0xff]
        %v516 = vld [vmem:[%s298 + $0x6b0] sm:$0xff]
        %v517 = vld [vmem:[%s298 + $0x6b8] sm:$0xff]
        %v518 = vld [vmem:[%s298 + $0x6c0] sm:$0xff]
        %v519 = vld [vmem:[%s298 + $0x6c8] sm:$0xff]
        %v520 = vld [vmem:[%s298 + $0x6d0] sm:$0xff]
        %v521 = vld [vmem:[%s298 + $0x6d8] sm:$0xff]
        %v522 = vld [vmem:[%s298 + $0x6e0] sm:$0xff]
        %v523 = vld [vmem:[%s298 + $0x6e8] sm:$0xff]
        %v524 = vld [vmem:[%s298 + $0x6f0] sm:$0xff]
        %v525 = vld [vmem:[%s298 + $0x6f8] sm:$0xff]
        %v526 = vld [vmem:[%s298 + $0x700] sm:$0xff]
        %v527 = vld [vmem:[%s298 + $0x708] sm:$0xff]
        %v528 = vld [vmem:[%s298 + $0x710] sm:$0xff]
        %v529 = vld [vmem:[%s298 + $0x718] sm:$0xff]
        %v530 = vld [vmem:[%s298 + $0x720] sm:$0xff]
        %v531 = vld [vmem:[%s298 + $0x728] sm:$0xff]
        %v532 = vld [vmem:[%s298 + $0x730] sm:$0xff]
        %v533 = vld [vmem:[%s298 + $0x738] sm:$0xff]
        %v534 = vld [vmem:[%s298 + $0x740] sm:$0xff]
        %v535 = vld [vmem:[%s298 + $0x748] sm:$0xff]
        %v536 = vld [vmem:[%s298 + $0x750] sm:$0xff]
        %v537 = vld [vmem:[%s298 + $0x758] sm:$0xff]
        %v538 = vld [vmem:[%s298 + $0x760] sm:$0xff]
        %v539 = vld [vmem:[%s298 + $0x768] sm:$0xff]
        %v540 = vld [vmem:[%s298 + $0x770] sm:$0xff]
        %v541 = vld [vmem:[%s298 + $0x778] sm:$0xff]
        %v542 = vld [vmem:[%s298 + $0x780] sm:$0xff]
        %v543 = vld [vmem:[%s298 + $0x788] sm:$0xff]
        %v544 = vld [vmem:[%s298 + $0x790] sm:$0xff]
        %v545 = vld [vmem:[%s298 + $0x798] sm:$0xff]
        %v546 = vld [vmem:[%s298 + $0x7a0] sm:$0xff]
        %v547 = vld [vmem:[%s298 + $0x7a8] sm:$0xff]
        %v548 = vld [vmem:[%s298 + $0x7b0] sm:$0xff]
        %v549 = vld [vmem:[%s298 + $0x7b8] sm:$0xff]
        %v550 = vld [vmem:[%s298 + $0x7c0] sm:$0xff]
        %v551 = vld [vmem:[%s298 + $0x7c8] sm:$0xff]
        %v552 = vld [vmem:[%s298 + $0x7d0] sm:$0xff]
        %v553 = vld [vmem:[%s298 + $0x7d8] sm:$0xff]
        %v554 = vld [vmem:[%s298 + $0x7e0] sm:$0xff]
        %v555 = vld [vmem:[%s298 + $0x7e8] sm:$0xff]
        %v556 = vld [vmem:[%s298 + $0x7f0] sm:$0xff]
        %v557 = vld [vmem:[%s298 + $0x7f8] sm:$0xff]
        %v558 = vld [vmem:[%s298 + $0x800] sm:$0xff]
        %v559 = vld [vmem:[%s298 + $0x808] sm:$0xff]
        %v560 = vld [vmem:[%s298 + $0x810] sm:$0xff]
        %v561 = vld [vmem:[%s298 + $0x818] sm:$0xff]
        %v562 = vld [vmem:[%s298 + $0x820] sm:$0xff]
        %v563 = vld [vmem:[%s298 + $0x828] sm:$0xff]
        %v564 = vld [vmem:[%s298 + $0x830] sm:$0xff]
        %v565 = vld [vmem:[%s298 + $0x838] sm:$0xff]
        %v566 = vld [vmem:[%s298 + $0x840] sm:$0xff]
        %v567 = vld [vmem:[%s298 + $0x848] sm:$0xff]
        %v568 = vpack.c.bf16 %v309, %v302
        %v569 = vpack.c.bf16 %v310, %v303
        %v570 = vpack.c.bf16 %v311, %v304
        %v571 = vpack.c.bf16 %v312, %v305
        %v572 = vpack.c.bf16 %v313, %v306
        %v573 = vpack.c.bf16 %v314, %v307
        %v574 = vpack.c.bf16 %v315, %v308
        %v575 = vpack.c.bf16 %v323, %v316
        %v576 = vpack.c.bf16 %v324, %v317
        %v577 = vpack.c.bf16 %v325, %v318
        %v578 = vpack.c.bf16 %v326, %v319
        %v579 = vpack.c.bf16 %v327, %v320
        %v580 = vpack.c.bf16 %v328, %v321
        %v581 = vpack.c.bf16 %v329, %v322
        %v582 = vpack.c.bf16 %v337, %v330
        %v583 = vpack.c.bf16 %v338, %v331
        %v584 = vpack.c.bf16 %v339, %v332
        %v585 = vpack.c.bf16 %v340, %v333
        %v586 = vpack.c.bf16 %v341, %v334
        %v587 = vpack.c.bf16 %v342, %v335
        %v588 = vpack.c.bf16 %v343, %v336
        %v589 = vpack.c.bf16 %v351, %v344
        %v590 = vpack.c.bf16 %v352, %v345
        %v591 = vpack.c.bf16 %v353, %v346
        %v592 = vpack.c.bf16 %v354, %v347
        %v593 = vpack.c.bf16 %v355, %v348
        %v594 = vpack.c.bf16 %v356, %v349
        %v595 = vpack.c.bf16 %v357, %v350
        %v596 = vpack.c.bf16 %v365, %v358
        %v597 = vpack.c.bf16 %v366, %v359
        %v598 = vpack.c.bf16 %v367, %v360
        %v599 = vpack.c.bf16 %v368, %v361
        %v600 = vpack.c.bf16 %v369, %v362
        %v601 = vpack.c.bf16 %v370, %v363
        %v602 = vpack.c.bf16 %v371, %v364
        %v603 = vpack.c.bf16 %v379, %v372
        %v604 = vpack.c.bf16 %v380, %v373
        %v605 = vpack.c.bf16 %v381, %v374
        %v606 = vpack.c.bf16 %v382, %v375
        %v607 = vpack.c.bf16 %v383, %v376
        %v608 = vpack.c.bf16 %v384, %v377
        %v609 = vpack.c.bf16 %v385, %v378
        %v610 = vpack.c.bf16 %v393, %v386
        %v611 = vpack.c.bf16 %v394, %v387
        %v612 = vpack.c.bf16 %v395, %v388
        %v613 = vpack.c.bf16 %v396, %v389
        %v614 = vpack.c.bf16 %v397, %v390
        %v615 = vpack.c.bf16 %v398, %v391
        %v616 = vpack.c.bf16 %v399, %v392
        %v617 = vpack.c.bf16 %v407, %v400
        %v618 = vpack.c.bf16 %v408, %v401
        %v619 = vpack.c.bf16 %v409, %v402
        %v620 = vpack.c.bf16 %v410, %v403
        %v621 = vpack.c.bf16 %v411, %v404
        %v622 = vpack.c.bf16 %v412, %v405
        %v623 = vpack.c.bf16 %v413, %v406
        %v624 = vpack.c.bf16 %v421, %v414
        %v625 = vpack.c.bf16 %v422, %v415
        %v626 = vpack.c.bf16 %v423, %v416
        %v627 = vpack.c.bf16 %v424, %v417
        %v628 = vpack.c.bf16 %v425, %v418
        %v629 = vpack.c.bf16 %v426, %v419
        %v630 = vpack.c.bf16 %v427, %v420
        %v631 = vpack.c.bf16 %v435, %v428
        %v632 = vpack.c.bf16 %v436, %v429
        %v633 = vpack.c.bf16 %v437, %v430
        %v634 = vpack.c.bf16 %v438, %v431
        %v635 = vpack.c.bf16 %v439, %v432
        %v636 = vpack.c.bf16 %v440, %v433
        %v637 = vpack.c.bf16 %v441, %v434
        %v638 = vpack.c.bf16 %v449, %v442
        %v639 = vpack.c.bf16 %v450, %v443
        %v640 = vpack.c.bf16 %v451, %v444
        %v641 = vpack.c.bf16 %v452, %v445
        %v642 = vpack.c.bf16 %v453, %v446
        %v643 = vpack.c.bf16 %v454, %v447
        %v644 = vpack.c.bf16 %v455, %v448
        %v645 = vpack.c.bf16 %v463, %v456
        %v646 = vpack.c.bf16 %v464, %v457
        %v647 = vpack.c.bf16 %v465, %v458
        %v648 = vpack.c.bf16 %v466, %v459
        %v649 = vpack.c.bf16 %v467, %v460
        %v650 = vpack.c.bf16 %v468, %v461
        %v651 = vpack.c.bf16 %v469, %v462
        %v652 = vpack.c.bf16 %v477, %v470
        %v653 = vpack.c.bf16 %v478, %v471
        %v654 = vpack.c.bf16 %v479, %v472
        %v655 = vpack.c.bf16 %v480, %v473
        %v656 = vpack.c.bf16 %v481, %v474
        %v657 = vpack.c.bf16 %v482, %v475
        %v658 = vpack.c.bf16 %v483, %v476
        %v659 = vpack.c.bf16 %v491, %v484
        %v660 = vpack.c.bf16 %v492, %v485
        %v661 = vpack.c.bf16 %v493, %v486
        %v662 = vpack.c.bf16 %v494, %v487
        %v663 = vpack.c.bf16 %v495, %v488
        %v664 = vpack.c.bf16 %v496, %v489
        %v665 = vpack.c.bf16 %v497, %v490
        %v666 = vpack.c.bf16 %v505, %v498
        %v667 = vpack.c.bf16 %v506, %v499
        %v668 = vpack.c.bf16 %v507, %v500
        %v669 = vpack.c.bf16 %v508, %v501
        %v670 = vpack.c.bf16 %v509, %v502
        %v671 = vpack.c.bf16 %v510, %v503
        %v672 = vpack.c.bf16 %v511, %v504
        %v673 = vpack.c.bf16 %v519, %v512
        %v674 = vpack.c.bf16 %v520, %v513
        %v675 = vpack.c.bf16 %v521, %v514
        %v676 = vpack.c.bf16 %v522, %v515
        %v677 = vpack.c.bf16 %v523, %v516
        %v678 = vpack.c.bf16 %v524, %v517
        %v679 = vpack.c.bf16 %v525, %v518
        %v680 = vpack.c.bf16 %v533, %v526
        %v681 = vpack.c.bf16 %v534, %v527
        %v682 = vpack.c.bf16 %v535, %v528
        %v683 = vpack.c.bf16 %v536, %v529
        %v684 = vpack.c.bf16 %v537, %v530
        %v685 = vpack.c.bf16 %v538, %v531
        %v686 = vpack.c.bf16 %v539, %v532
        %v687 = vpack.c.bf16 %v547, %v540
        %v688 = vpack.c.bf16 %v548, %v541
        %v689 = vpack.c.bf16 %v549, %v542
        %v690 = vpack.c.bf16 %v550, %v543
        %v691 = vpack.c.bf16 %v551, %v544
        %v692 = vpack.c.bf16 %v552, %v545
        %v693 = vpack.c.bf16 %v553, %v546
        %v694 = vpack.c.bf16 %v561, %v554
        %v695 = vpack.c.bf16 %v562, %v555
        %v696 = vpack.c.bf16 %v563, %v556
        %v697 = vpack.c.bf16 %v564, %v557
        %v698 = vpack.c.bf16 %v565, %v558
        %v699 = vpack.c.bf16 %v566, %v559
        %v700 = vpack.c.bf16 %v567, %v560
        %v701 = vld [vmem:[%s1] sm:$0xff]
        %v702 = vld [vmem:[%s1 + $0x8] sm:$0xff]
        %v703 = vld [vmem:[%s1 + $0x10] sm:$0xff]
        %v704 = vld [vmem:[%s1 + $0x18] sm:$0xff]
        %v705 = vld [vmem:[%s1 + $0x20] sm:$0xff]
        %v706 = vld [vmem:[%s1 + $0x28] sm:$0xff]
        %v707 = vld [vmem:[%s1 + $0x30] sm:$0xff]
        %v708 = vld [vmem:[%s1 + $0x38] sm:$0xff]
        %v709 = vld [vmem:[%s1 + $0x40] sm:$0xff]
        %v710 = vld [vmem:[%s1 + $0x48] sm:$0xff]
        %v711 = vld [vmem:[%s1 + $0x50] sm:$0xff]
        %v712 = vld [vmem:[%s1 + $0x58] sm:$0xff]
        %v713 = vld [vmem:[%s1 + $0x60] sm:$0xff]
        %v714 = vld [vmem:[%s1 + $0x68] sm:$0xff]
        %v715 = vld [vmem:[%s1 + $0x70] sm:$0xff]
        %v716 = vld [vmem:[%s1 + $0x78] sm:$0xff]
        %v717 = vld [vmem:[%s1 + $0x80] sm:$0xff]
        %v718 = vld [vmem:[%s1 + $0x88] sm:$0xff]
        %v719 = vld [vmem:[%s1 + $0x90] sm:$0xff]
        %v720 = vld [vmem:[%s1 + $0x98] sm:$0xff]
        %v721 = vld [vmem:[%s1 + $0xa0] sm:$0xff]
        %v722 = vld [vmem:[%s1 + $0xa8] sm:$0xff]
        %v723 = vld [vmem:[%s1 + $0xb0] sm:$0xff]
        %v724 = vld [vmem:[%s1 + $0xb8] sm:$0xff]
        %v725 = vld [vmem:[%s1 + $0xc0] sm:$0xff]
        %v726 = vld [vmem:[%s1 + $0xc8] sm:$0xff]
        %v727 = vld [vmem:[%s1 + $0xd0] sm:$0xff]
        %v728 = vld [vmem:[%s1 + $0xd8] sm:$0xff]
        %v729 = vld [vmem:[%s1 + $0xe0] sm:$0xff]
        %v730 = vld [vmem:[%s1 + $0xe8] sm:$0xff]
        %v731 = vld [vmem:[%s1 + $0xf0] sm:$0xff]
        %v732 = vld [vmem:[%s1 + $0xf8] sm:$0xff]
        %v733 = vld [vmem:[%s1 + $0x100] sm:$0xff]
        %v734 = vld [vmem:[%s1 + $0x108] sm:$0xff]
        %v735 = vld [vmem:[%s1 + $0x110] sm:$0xff]
        %v736 = vld [vmem:[%s1 + $0x118] sm:$0xff]
        %v737 = vld [vmem:[%s1 + $0x120] sm:$0xff]
        %v738 = vld [vmem:[%s1 + $0x128] sm:$0xff]
        %v739 = vld [vmem:[%s1 + $0x130] sm:$0xff]
        %v740 = vld [vmem:[%s1 + $0x138] sm:$0xff]
        %v741 = vld [vmem:[%s1 + $0x140] sm:$0xff]
        %v742 = vld [vmem:[%s1 + $0x148] sm:$0xff]
        %v743 = vld [vmem:[%s1 + $0x150] sm:$0xff]
        %v744 = vld [vmem:[%s1 + $0x158] sm:$0xff]
        %v745 = vld [vmem:[%s1 + $0x160] sm:$0xff]
        %v746 = vld [vmem:[%s1 + $0x168] sm:$0xff]
        %v747 = vld [vmem:[%s1 + $0x170] sm:$0xff]
        %v748 = vld [vmem:[%s1 + $0x178] sm:$0xff]
        %v749 = vld [vmem:[%s1 + $0x180] sm:$0xff]
        %v750 = vld [vmem:[%s1 + $0x188] sm:$0xff]
        %v751 = vld [vmem:[%s1 + $0x190] sm:$0xff]
        %v752 = vld [vmem:[%s1 + $0x198] sm:$0xff]
        %v753 = vld [vmem:[%s1 + $0x1a0] sm:$0xff]
        %v754 = vld [vmem:[%s1 + $0x1a8] sm:$0xff]
        %v755 = vld [vmem:[%s1 + $0x1b0] sm:$0xff]
        %v756 = vld [vmem:[%s1 + $0x1b8] sm:$0xff]
        %v757 = vld [vmem:[%s1 + $0x1c0] sm:$0xff]
        %v758 = vld [vmem:[%s1 + $0x1c8] sm:$0xff]
        %v759 = vld [vmem:[%s1 + $0x1d0] sm:$0xff]
        %v760 = vld [vmem:[%s1 + $0x1d8] sm:$0xff]
        %v761 = vld [vmem:[%s1 + $0x1e0] sm:$0xff]
        %v762 = vld [vmem:[%s1 + $0x1e8] sm:$0xff]
        %v763 = vld [vmem:[%s1 + $0x1f0] sm:$0xff]
        %v764 = vld [vmem:[%s1 + $0x1f8] sm:$0xff]
        %v765 = vld [vmem:[%s1 + $0x200] sm:$0xff]
        %v766 = vld [vmem:[%s1 + $0x208] sm:$0xff]
        %v767 = vld [vmem:[%s1 + $0x210] sm:$0xff]
        %v768 = vld [vmem:[%s1 + $0x218] sm:$0xff]
        %v769 = vld [vmem:[%s1 + $0x220] sm:$0xff]
        %v770 = vld [vmem:[%s1 + $0x228] sm:$0xff]
        %v771 = vld [vmem:[%s1 + $0x230] sm:$0xff]
        %v772 = vld [vmem:[%s1 + $0x238] sm:$0xff]
        %v773 = vld [vmem:[%s1 + $0x240] sm:$0xff]
        %v774 = vld [vmem:[%s1 + $0x248] sm:$0xff]
        %v775 = vld [vmem:[%s1 + $0x250] sm:$0xff]
        %v776 = vld [vmem:[%s1 + $0x258] sm:$0xff]
        %v777 = vld [vmem:[%s1 + $0x260] sm:$0xff]
        %v778 = vld [vmem:[%s1 + $0x268] sm:$0xff]
        %v779 = vld [vmem:[%s1 + $0x270] sm:$0xff]
        %v780 = vld [vmem:[%s1 + $0x278] sm:$0xff]
        %v781 = vld [vmem:[%s1 + $0x280] sm:$0xff]
        %v782 = vld [vmem:[%s1 + $0x288] sm:$0xff]
        %v783 = vld [vmem:[%s1 + $0x290] sm:$0xff]
        %v784 = vld [vmem:[%s1 + $0x298] sm:$0xff]
        %v785 = vld [vmem:[%s1 + $0x2a0] sm:$0xff]
        %v786 = vld [vmem:[%s1 + $0x2a8] sm:$0xff]
        %v787 = vld [vmem:[%s1 + $0x2b0] sm:$0xff]
        %v788 = vld [vmem:[%s1 + $0x2b8] sm:$0xff]
        %v789 = vld [vmem:[%s1 + $0x2c0] sm:$0xff]
        %v790 = vld [vmem:[%s1 + $0x2c8] sm:$0xff]
        %v791 = vld [vmem:[%s1 + $0x2d0] sm:$0xff]
        %v792 = vld [vmem:[%s1 + $0x2d8] sm:$0xff]
        %v793 = vld [vmem:[%s1 + $0x2e0] sm:$0xff]
        %v794 = vld [vmem:[%s1 + $0x2e8] sm:$0xff]
        %v795 = vld [vmem:[%s1 + $0x2f0] sm:$0xff]
        %v796 = vld [vmem:[%s1 + $0x2f8] sm:$0xff]
        %v797 = vld [vmem:[%s1 + $0x300] sm:$0xff]
        %v798 = vld [vmem:[%s1 + $0x308] sm:$0xff]
        %v799 = vld [vmem:[%s1 + $0x310] sm:$0xff]
        %v800 = vld [vmem:[%s1 + $0x318] sm:$0xff]
        %v801 = vld [vmem:[%s1 + $0x320] sm:$0xff]
        %v802 = vld [vmem:[%s1 + $0x328] sm:$0xff]
        %v803 = vld [vmem:[%s1 + $0x330] sm:$0xff]
        %v804 = vld [vmem:[%s1 + $0x338] sm:$0xff]
        %v805 = vld [vmem:[%s1 + $0x340] sm:$0xff]
        %v806 = vld [vmem:[%s1 + $0x348] sm:$0xff]
        %v807 = vld [vmem:[%s1 + $0x350] sm:$0xff]
        %v808 = vld [vmem:[%s1 + $0x358] sm:$0xff]
        %v809 = vld [vmem:[%s1 + $0x360] sm:$0xff]
        %v810 = vld [vmem:[%s1 + $0x368] sm:$0xff]
        %v811 = vld [vmem:[%s1 + $0x370] sm:$0xff]
        %v812 = vld [vmem:[%s1 + $0x378] sm:$0xff]
        %v813 = vld [vmem:[%s1 + $0x380] sm:$0xff]
        %v814 = vld [vmem:[%s1 + $0x388] sm:$0xff]
        %v815 = vld [vmem:[%s1 + $0x390] sm:$0xff]
        %v816 = vld [vmem:[%s1 + $0x398] sm:$0xff]
        %v817 = vld [vmem:[%s1 + $0x3a0] sm:$0xff]
        %v818 = vld [vmem:[%s1 + $0x3a8] sm:$0xff]
        %v819 = vld [vmem:[%s1 + $0x3b0] sm:$0xff]
        %v820 = vld [vmem:[%s1 + $0x3b8] sm:$0xff]
        %v821 = vld [vmem:[%s1 + $0x3c0] sm:$0xff]
        %v822 = vld [vmem:[%s1 + $0x3c8] sm:$0xff]
        %v823 = vld [vmem:[%s1 + $0x3d0] sm:$0xff]
        %v824 = vld [vmem:[%s1 + $0x3d8] sm:$0xff]
        %v825 = vld [vmem:[%s1 + $0x3e0] sm:$0xff]
        %v826 = vld [vmem:[%s1 + $0x3e8] sm:$0xff]
        %v827 = vld [vmem:[%s1 + $0x3f0] sm:$0xff]
        %v828 = vld [vmem:[%s1 + $0x3f8] sm:$0xff]
        %v829 = vld [vmem:[%s1 + $0x400] sm:$0xff]
        %v830 = vld [vmem:[%s1 + $0x408] sm:$0xff]
        %v831 = vld [vmem:[%s1 + $0x410] sm:$0xff]
        %v832 = vld [vmem:[%s1 + $0x418] sm:$0xff]
        %v833 = vld [vmem:[%s1 + $0x420] sm:$0xff]
        %v834 = vld [vmem:[%s1 + $0x428] sm:$0xff]
        %v835 = vld [vmem:[%s1 + $0x430] sm:$0xff]
        %v836 = vld [vmem:[%s1 + $0x438] sm:$0xff]
        %v837 = vld [vmem:[%s1 + $0x440] sm:$0xff]
        %v838 = vld [vmem:[%s1 + $0x448] sm:$0xff]
        %v839 = vld [vmem:[%s1 + $0x450] sm:$0xff]
        %v840 = vld [vmem:[%s1 + $0x458] sm:$0xff]
        %v841 = vld [vmem:[%s1 + $0x460] sm:$0xff]
        %v842 = vld [vmem:[%s1 + $0x468] sm:$0xff]
        %v843 = vld [vmem:[%s1 + $0x470] sm:$0xff]
        %v844 = vld [vmem:[%s1 + $0x478] sm:$0xff]
        %v845 = vld [vmem:[%s1 + $0x480] sm:$0xff]
        %v846 = vld [vmem:[%s1 + $0x488] sm:$0xff]
        %v847 = vld [vmem:[%s1 + $0x490] sm:$0xff]
        %v848 = vld [vmem:[%s1 + $0x498] sm:$0xff]
        %v849 = vld [vmem:[%s1 + $0x4a0] sm:$0xff]
        %v850 = vld [vmem:[%s1 + $0x4a8] sm:$0xff]
        %v851 = vld [vmem:[%s1 + $0x4b0] sm:$0xff]
        %v852 = vld [vmem:[%s1 + $0x4b8] sm:$0xff]
        %v853 = vld [vmem:[%s1 + $0x4c0] sm:$0xff]
        %v854 = vld [vmem:[%s1 + $0x4c8] sm:$0xff]
        %v855 = vld [vmem:[%s1 + $0x4d0] sm:$0xff]
        %v856 = vld [vmem:[%s1 + $0x4d8] sm:$0xff]
        %v857 = vld [vmem:[%s1 + $0x4e0] sm:$0xff]
        %v858 = vld [vmem:[%s1 + $0x4e8] sm:$0xff]
        %v859 = vld [vmem:[%s1 + $0x4f0] sm:$0xff]
        %v860 = vld [vmem:[%s1 + $0x4f8] sm:$0xff]
        %v861 = vld [vmem:[%s1 + $0x500] sm:$0xff]
        %v862 = vld [vmem:[%s1 + $0x508] sm:$0xff]
        %v863 = vld [vmem:[%s1 + $0x510] sm:$0xff]
        %v864 = vld [vmem:[%s1 + $0x518] sm:$0xff]
        %v865 = vld [vmem:[%s1 + $0x520] sm:$0xff]
        %v866 = vld [vmem:[%s1 + $0x528] sm:$0xff]
        %v867 = vld [vmem:[%s1 + $0x530] sm:$0xff]
        %v868 = vld [vmem:[%s1 + $0x538] sm:$0xff]
        %v869 = vld [vmem:[%s1 + $0x540] sm:$0xff]
        %v870 = vld [vmem:[%s1 + $0x548] sm:$0xff]
        %v871 = vld [vmem:[%s1 + $0x550] sm:$0xff]
        %v872 = vld [vmem:[%s1 + $0x558] sm:$0xff]
        %v873 = vld [vmem:[%s1 + $0x560] sm:$0xff]
        %v874 = vld [vmem:[%s1 + $0x568] sm:$0xff]
        %v875 = vld [vmem:[%s1 + $0x570] sm:$0xff]
        %v876 = vld [vmem:[%s1 + $0x578] sm:$0xff]
        %v877 = vld [vmem:[%s1 + $0x580] sm:$0xff]
        %v878 = vld [vmem:[%s1 + $0x588] sm:$0xff]
        %v879 = vld [vmem:[%s1 + $0x590] sm:$0xff]
        %v880 = vld [vmem:[%s1 + $0x598] sm:$0xff]
        %v881 = vld [vmem:[%s1 + $0x5a0] sm:$0xff]
        %v882 = vld [vmem:[%s1 + $0x5a8] sm:$0xff]
        %v883 = vld [vmem:[%s1 + $0x5b0] sm:$0xff]
        %v884 = vld [vmem:[%s1 + $0x5b8] sm:$0xff]
        %v885 = vld [vmem:[%s1 + $0x5c0] sm:$0xff]
        %v886 = vld [vmem:[%s1 + $0x5c8] sm:$0xff]
        %v887 = vld [vmem:[%s1 + $0x5d0] sm:$0xff]
        %v888 = vld [vmem:[%s1 + $0x5d8] sm:$0xff]
        %v889 = vld [vmem:[%s1 + $0x5e0] sm:$0xff]
        %v890 = vld [vmem:[%s1 + $0x5e8] sm:$0xff]
        %v891 = vld [vmem:[%s1 + $0x5f0] sm:$0xff]
        %v892 = vld [vmem:[%s1 + $0x5f8] sm:$0xff]
        %v893 = vld [vmem:[%s1 + $0x600] sm:$0xff]
        %v894 = vld [vmem:[%s1 + $0x608] sm:$0xff]
        %v895 = vld [vmem:[%s1 + $0x610] sm:$0xff]
        %v896 = vld [vmem:[%s1 + $0x618] sm:$0xff]
        %v897 = vld [vmem:[%s2] sm:$0xf]
        %v899 = vlaneseq
        %v900 = vshrl.u32 %v899, 7
        %v901 = vsub.s32 0, %v900
        %v902 = vrot.slane %v897, %v901
        %v903 = vlaneseq
        %v904 = vshrl.u32 %v903, 7
        %v905 = vsub.s32 1, %v904
        %v906 = vrot.slane %v897, %v905
        %v907 = vlaneseq
        %v908 = vshrl.u32 %v907, 7
        %v909 = vsub.s32 2, %v908
        %v910 = vrot.slane %v897, %v909
        %v911 = vlaneseq
        %v912 = vshrl.u32 %v911, 7
        %v913 = vsub.s32 3, %v912
        %v914 = vrot.slane %v897, %v913
        %v1115 = vunpack.c.l.b16 %v701
        %v1116 = vunpack.c.h.b16 %v701
        %v1117 = vunpack.c.l.b16 %v702
        %v1118 = vunpack.c.h.b16 %v702
        %v1119 = vunpack.c.l.b16 %v703
        %v1120 = vunpack.c.h.b16 %v703
        %v1121 = vunpack.c.l.b16 %v704
        %v1122 = vunpack.c.h.b16 %v704
        %v1123 = vunpack.c.l.b16 %v705
        %v1124 = vunpack.c.h.b16 %v705
        %v1125 = vunpack.c.l.b16 %v706
        %v1126 = vunpack.c.h.b16 %v706
        %v1127 = vunpack.c.l.b16 %v707
        %v1128 = vunpack.c.h.b16 %v707
        %v1129 = vunpack.c.l.b16 %v708
        %v1130 = vunpack.c.h.b16 %v708
        %v1131 = vunpack.c.l.b16 %v709
        %v1132 = vunpack.c.h.b16 %v709
        %v1133 = vunpack.c.l.b16 %v710
        %v1134 = vunpack.c.h.b16 %v710
        %v1135 = vunpack.c.l.b16 %v711
        %v1136 = vunpack.c.h.b16 %v711
        %v1137 = vunpack.c.l.b16 %v712
        %v1138 = vunpack.c.h.b16 %v712
        %v1139 = vunpack.c.l.b16 %v713
        %v1140 = vunpack.c.h.b16 %v713
        %v1141 = vunpack.c.l.b16 %v714
        %v1142 = vunpack.c.h.b16 %v714
        %v1143 = vunpack.c.l.b16 %v715
        %v1144 = vunpack.c.h.b16 %v715
        %v1145 = vunpack.c.l.b16 %v716
        %v1146 = vunpack.c.h.b16 %v716
        %v1147 = vunpack.c.l.b16 %v717
        %v1148 = vunpack.c.h.b16 %v717
        %v1149 = vunpack.c.l.b16 %v718
        %v1150 = vunpack.c.h.b16 %v718
        %v1151 = vunpack.c.l.b16 %v719
        %v1152 = vunpack.c.h.b16 %v719
        %v1153 = vunpack.c.l.b16 %v720
        %v1154 = vunpack.c.h.b16 %v720
        %v1155 = vunpack.c.l.b16 %v721
        %v1156 = vunpack.c.h.b16 %v721
        %v1157 = vunpack.c.l.b16 %v722
        %v1158 = vunpack.c.h.b16 %v722
        %v1159 = vunpack.c.l.b16 %v723
        %v1160 = vunpack.c.h.b16 %v723
        %v1161 = vunpack.c.l.b16 %v724
        %v1162 = vunpack.c.h.b16 %v724
        %v1163 = vunpack.c.l.b16 %v725
        %v1164 = vunpack.c.h.b16 %v725
        %v1165 = vunpack.c.l.b16 %v726
        %v1166 = vunpack.c.h.b16 %v726
        %v1167 = vunpack.c.l.b16 %v727
        %v1168 = vunpack.c.h.b16 %v727
        %v1169 = vunpack.c.l.b16 %v728
        %v1170 = vunpack.c.h.b16 %v728
        %v1171 = vunpack.c.l.b16 %v729
        %v1172 = vunpack.c.h.b16 %v729
        %v1173 = vunpack.c.l.b16 %v730
        %v1174 = vunpack.c.h.b16 %v730
        %v1175 = vunpack.c.l.b16 %v731
        %v1176 = vunpack.c.h.b16 %v731
        %v1177 = vunpack.c.l.b16 %v732
        %v1178 = vunpack.c.h.b16 %v732
        %v1179 = vunpack.c.l.b16 %v733
        %v1180 = vunpack.c.h.b16 %v733
        %v1181 = vunpack.c.l.b16 %v734
        %v1182 = vunpack.c.h.b16 %v734
        %v1183 = vunpack.c.l.b16 %v735
        %v1184 = vunpack.c.h.b16 %v735
        %v1185 = vunpack.c.l.b16 %v736
        %v1186 = vunpack.c.h.b16 %v736
        %v1187 = vunpack.c.l.b16 %v737
        %v1188 = vunpack.c.h.b16 %v737
        %v1189 = vunpack.c.l.b16 %v738
        %v1190 = vunpack.c.h.b16 %v738
        %v1191 = vunpack.c.l.b16 %v739
        %v1192 = vunpack.c.h.b16 %v739
        %v1193 = vunpack.c.l.b16 %v740
        %v1194 = vunpack.c.h.b16 %v740
        %v1195 = vunpack.c.l.b16 %v741
        %v1196 = vunpack.c.h.b16 %v741
        %v1197 = vunpack.c.l.b16 %v742
        %v1198 = vunpack.c.h.b16 %v742
        %v1199 = vunpack.c.l.b16 %v743
        %v1200 = vunpack.c.h.b16 %v743
        %v1201 = vunpack.c.l.b16 %v744
        %v1202 = vunpack.c.h.b16 %v744
        %v1203 = vunpack.c.l.b16 %v745
        %v1204 = vunpack.c.h.b16 %v745
        %v1205 = vunpack.c.l.b16 %v746
        %v1206 = vunpack.c.h.b16 %v746
        %v1207 = vunpack.c.l.b16 %v747
        %v1208 = vunpack.c.h.b16 %v747
        %v1209 = vunpack.c.l.b16 %v748
        %v1210 = vunpack.c.h.b16 %v748
        %v1211 = vunpack.c.l.b16 %v749
        %v1212 = vunpack.c.h.b16 %v749
        %v1213 = vunpack.c.l.b16 %v750
        %v1214 = vunpack.c.h.b16 %v750
        %v1215 = vunpack.c.l.b16 %v751
        %v1216 = vunpack.c.h.b16 %v751
        %v1217 = vunpack.c.l.b16 %v752
        %v1218 = vunpack.c.h.b16 %v752
        %v1219 = vunpack.c.l.b16 %v753
        %v1220 = vunpack.c.h.b16 %v753
        %v1221 = vunpack.c.l.b16 %v754
        %v1222 = vunpack.c.h.b16 %v754
        %v1223 = vunpack.c.l.b16 %v755
        %v1224 = vunpack.c.h.b16 %v755
        %v1225 = vunpack.c.l.b16 %v756
        %v1226 = vunpack.c.h.b16 %v756
        %v1227 = vunpack.c.l.b16 %v757
        %v1228 = vunpack.c.h.b16 %v757
        %v1229 = vunpack.c.l.b16 %v758
        %v1230 = vunpack.c.h.b16 %v758
        %v1231 = vunpack.c.l.b16 %v759
        %v1232 = vunpack.c.h.b16 %v759
        %v1233 = vunpack.c.l.b16 %v760
        %v1234 = vunpack.c.h.b16 %v760
        %v1235 = vunpack.c.l.b16 %v761
        %v1236 = vunpack.c.h.b16 %v761
        %v1237 = vunpack.c.l.b16 %v762
        %v1238 = vunpack.c.h.b16 %v762
        %v1239 = vunpack.c.l.b16 %v763
        %v1240 = vunpack.c.h.b16 %v763
        %v1241 = vunpack.c.l.b16 %v764
        %v1242 = vunpack.c.h.b16 %v764
        %v1243 = vunpack.c.l.b16 %v765
        %v1244 = vunpack.c.h.b16 %v765
        %v1245 = vunpack.c.l.b16 %v766
        %v1246 = vunpack.c.h.b16 %v766
        %v1247 = vunpack.c.l.b16 %v767
        %v1248 = vunpack.c.h.b16 %v767
        %v1249 = vunpack.c.l.b16 %v768
        %v1250 = vunpack.c.h.b16 %v768
        %v1251 = vunpack.c.l.b16 %v769
        %v1252 = vunpack.c.h.b16 %v769
        %v1253 = vunpack.c.l.b16 %v770
        %v1254 = vunpack.c.h.b16 %v770
        %v1255 = vunpack.c.l.b16 %v771
        %v1256 = vunpack.c.h.b16 %v771
        %v1257 = vunpack.c.l.b16 %v772
        %v1258 = vunpack.c.h.b16 %v772
        %v1259 = vunpack.c.l.b16 %v773
        %v1260 = vunpack.c.h.b16 %v773
        %v1261 = vunpack.c.l.b16 %v774
        %v1262 = vunpack.c.h.b16 %v774
        %v1263 = vunpack.c.l.b16 %v775
        %v1264 = vunpack.c.h.b16 %v775
        %v1265 = vunpack.c.l.b16 %v776
        %v1266 = vunpack.c.h.b16 %v776
        %v1267 = vunpack.c.l.b16 %v777
        %v1268 = vunpack.c.h.b16 %v777
        %v1269 = vunpack.c.l.b16 %v778
        %v1270 = vunpack.c.h.b16 %v778
        %v1271 = vunpack.c.l.b16 %v779
        %v1272 = vunpack.c.h.b16 %v779
        %v1273 = vunpack.c.l.b16 %v780
        %v1274 = vunpack.c.h.b16 %v780
        %v1275 = vunpack.c.l.b16 %v781
        %v1276 = vunpack.c.h.b16 %v781
        %v1277 = vunpack.c.l.b16 %v782
        %v1278 = vunpack.c.h.b16 %v782
        %v1279 = vunpack.c.l.b16 %v783
        %v1280 = vunpack.c.h.b16 %v783
        %v1281 = vunpack.c.l.b16 %v784
        %v1282 = vunpack.c.h.b16 %v784
        %v1283 = vunpack.c.l.b16 %v785
        %v1284 = vunpack.c.h.b16 %v785
        %v1285 = vunpack.c.l.b16 %v786
        %v1286 = vunpack.c.h.b16 %v786
        %v1287 = vunpack.c.l.b16 %v787
        %v1288 = vunpack.c.h.b16 %v787
        %v1289 = vunpack.c.l.b16 %v788
        %v1290 = vunpack.c.h.b16 %v788
        %v1291 = vunpack.c.l.b16 %v789
        %v1292 = vunpack.c.h.b16 %v789
        %v1293 = vunpack.c.l.b16 %v790
        %v1294 = vunpack.c.h.b16 %v790
        %v1295 = vunpack.c.l.b16 %v791
        %v1296 = vunpack.c.h.b16 %v791
        %v1297 = vunpack.c.l.b16 %v792
        %v1298 = vunpack.c.h.b16 %v792
        %v1299 = vunpack.c.l.b16 %v793
        %v1300 = vunpack.c.h.b16 %v793
        %v1301 = vunpack.c.l.b16 %v794
        %v1302 = vunpack.c.h.b16 %v794
        %v1303 = vunpack.c.l.b16 %v795
        %v1304 = vunpack.c.h.b16 %v795
        %v1305 = vunpack.c.l.b16 %v796
        %v1306 = vunpack.c.h.b16 %v796
        %v1307 = vunpack.c.l.b16 %v797
        %v1308 = vunpack.c.h.b16 %v797
        %v1309 = vunpack.c.l.b16 %v798
        %v1310 = vunpack.c.h.b16 %v798
        %v1311 = vunpack.c.l.b16 %v799
        %v1312 = vunpack.c.h.b16 %v799
        %v1313 = vunpack.c.l.b16 %v800
        %v1314 = vunpack.c.h.b16 %v800
        %v1315 = vunpack.c.l.b16 %v801
        %v1316 = vunpack.c.h.b16 %v801
        %v1317 = vunpack.c.l.b16 %v802
        %v1318 = vunpack.c.h.b16 %v802
        %v1319 = vunpack.c.l.b16 %v803
        %v1320 = vunpack.c.h.b16 %v803
        %v1321 = vunpack.c.l.b16 %v804
        %v1322 = vunpack.c.h.b16 %v804
        %v1323 = vunpack.c.l.b16 %v805
        %v1324 = vunpack.c.h.b16 %v805
        %v1325 = vunpack.c.l.b16 %v806
        %v1326 = vunpack.c.h.b16 %v806
        %v1327 = vunpack.c.l.b16 %v807
        %v1328 = vunpack.c.h.b16 %v807
        %v1329 = vunpack.c.l.b16 %v808
        %v1330 = vunpack.c.h.b16 %v808
        %v1331 = vunpack.c.l.b16 %v809
        %v1332 = vunpack.c.h.b16 %v809
        %v1333 = vunpack.c.l.b16 %v810
        %v1334 = vunpack.c.h.b16 %v810
        %v1335 = vunpack.c.l.b16 %v811
        %v1336 = vunpack.c.h.b16 %v811
        %v1337 = vunpack.c.l.b16 %v812
        %v1338 = vunpack.c.h.b16 %v812
        %v1339 = vunpack.c.l.b16 %v813
        %v1340 = vunpack.c.h.b16 %v813
        %v1341 = vunpack.c.l.b16 %v814
        %v1342 = vunpack.c.h.b16 %v814
        %v1343 = vunpack.c.l.b16 %v815
        %v1344 = vunpack.c.h.b16 %v815
        %v1345 = vunpack.c.l.b16 %v816
        %v1346 = vunpack.c.h.b16 %v816
        %v1347 = vunpack.c.l.b16 %v817
        %v1348 = vunpack.c.h.b16 %v817
        %v1349 = vunpack.c.l.b16 %v818
        %v1350 = vunpack.c.h.b16 %v818
        %v1351 = vunpack.c.l.b16 %v819
        %v1352 = vunpack.c.h.b16 %v819
        %v1353 = vunpack.c.l.b16 %v820
        %v1354 = vunpack.c.h.b16 %v820
        %v1355 = vunpack.c.l.b16 %v821
        %v1356 = vunpack.c.h.b16 %v821
        %v1357 = vunpack.c.l.b16 %v822
        %v1358 = vunpack.c.h.b16 %v822
        %v1359 = vunpack.c.l.b16 %v823
        %v1360 = vunpack.c.h.b16 %v823
        %v1361 = vunpack.c.l.b16 %v824
        %v1362 = vunpack.c.h.b16 %v824
        %v1363 = vunpack.c.l.b16 %v825
        %v1364 = vunpack.c.h.b16 %v825
        %v1365 = vunpack.c.l.b16 %v826
        %v1366 = vunpack.c.h.b16 %v826
        %v1367 = vunpack.c.l.b16 %v827
        %v1368 = vunpack.c.h.b16 %v827
        %v1369 = vunpack.c.l.b16 %v828
        %v1370 = vunpack.c.h.b16 %v828
        %v1371 = vunpack.c.l.b16 %v829
        %v1372 = vunpack.c.h.b16 %v829
        %v1373 = vunpack.c.l.b16 %v830
        %v1374 = vunpack.c.h.b16 %v830
        %v1375 = vunpack.c.l.b16 %v831
        %v1376 = vunpack.c.h.b16 %v831
        %v1377 = vunpack.c.l.b16 %v832
        %v1378 = vunpack.c.h.b16 %v832
        %v1379 = vunpack.c.l.b16 %v833
        %v1380 = vunpack.c.h.b16 %v833
        %v1381 = vunpack.c.l.b16 %v834
        %v1382 = vunpack.c.h.b16 %v834
        %v1383 = vunpack.c.l.b16 %v835
        %v1384 = vunpack.c.h.b16 %v835
        %v1385 = vunpack.c.l.b16 %v836
        %v1386 = vunpack.c.h.b16 %v836
        %v1387 = vunpack.c.l.b16 %v837
        %v1388 = vunpack.c.h.b16 %v837
        %v1389 = vunpack.c.l.b16 %v838
        %v1390 = vunpack.c.h.b16 %v838
        %v1391 = vunpack.c.l.b16 %v839
        %v1392 = vunpack.c.h.b16 %v839
        %v1393 = vunpack.c.l.b16 %v840
        %v1394 = vunpack.c.h.b16 %v840
        %v1395 = vunpack.c.l.b16 %v841
        %v1396 = vunpack.c.h.b16 %v841
        %v1397 = vunpack.c.l.b16 %v842
        %v1398 = vunpack.c.h.b16 %v842
        %v1399 = vunpack.c.l.b16 %v843
        %v1400 = vunpack.c.h.b16 %v843
        %v1401 = vunpack.c.l.b16 %v844
        %v1402 = vunpack.c.h.b16 %v844
        %v1403 = vunpack.c.l.b16 %v845
        %v1404 = vunpack.c.h.b16 %v845
        %v1405 = vunpack.c.l.b16 %v846
        %v1406 = vunpack.c.h.b16 %v846
        %v1407 = vunpack.c.l.b16 %v847
        %v1408 = vunpack.c.h.b16 %v847
        %v1409 = vunpack.c.l.b16 %v848
        %v1410 = vunpack.c.h.b16 %v848
        %v1411 = vunpack.c.l.b16 %v849
        %v1412 = vunpack.c.h.b16 %v849
        %v1413 = vunpack.c.l.b16 %v850
        %v1414 = vunpack.c.h.b16 %v850
        %v1415 = vunpack.c.l.b16 %v851
        %v1416 = vunpack.c.h.b16 %v851
        %v1417 = vunpack.c.l.b16 %v852
        %v1418 = vunpack.c.h.b16 %v852
        %v1419 = vunpack.c.l.b16 %v853
        %v1420 = vunpack.c.h.b16 %v853
        %v1421 = vunpack.c.l.b16 %v854
        %v1422 = vunpack.c.h.b16 %v854
        %v1423 = vunpack.c.l.b16 %v855
        %v1424 = vunpack.c.h.b16 %v855
        %v1425 = vunpack.c.l.b16 %v856
        %v1426 = vunpack.c.h.b16 %v856
        %v1427 = vunpack.c.l.b16 %v857
        %v1428 = vunpack.c.h.b16 %v857
        %v1429 = vunpack.c.l.b16 %v858
        %v1430 = vunpack.c.h.b16 %v858
        %v1431 = vunpack.c.l.b16 %v859
        %v1432 = vunpack.c.h.b16 %v859
        %v1433 = vunpack.c.l.b16 %v860
        %v1434 = vunpack.c.h.b16 %v860
        %v1435 = vunpack.c.l.b16 %v861
        %v1436 = vunpack.c.h.b16 %v861
        %v1437 = vunpack.c.l.b16 %v862
        %v1438 = vunpack.c.h.b16 %v862
        %v1439 = vunpack.c.l.b16 %v863
        %v1440 = vunpack.c.h.b16 %v863
        %v1441 = vunpack.c.l.b16 %v864
        %v1442 = vunpack.c.h.b16 %v864
        %v1443 = vunpack.c.l.b16 %v865
        %v1444 = vunpack.c.h.b16 %v865
        %v1445 = vunpack.c.l.b16 %v866
        %v1446 = vunpack.c.h.b16 %v866
        %v1447 = vunpack.c.l.b16 %v867
        %v1448 = vunpack.c.h.b16 %v867
        %v1449 = vunpack.c.l.b16 %v868
        %v1450 = vunpack.c.h.b16 %v868
        %v1451 = vunpack.c.l.b16 %v869
        %v1452 = vunpack.c.h.b16 %v869
        %v1453 = vunpack.c.l.b16 %v870
        %v1454 = vunpack.c.h.b16 %v870
        %v1455 = vunpack.c.l.b16 %v871
        %v1456 = vunpack.c.h.b16 %v871
        %v1457 = vunpack.c.l.b16 %v872
        %v1458 = vunpack.c.h.b16 %v872
        %v1459 = vunpack.c.l.b16 %v873
        %v1460 = vunpack.c.h.b16 %v873
        %v1461 = vunpack.c.l.b16 %v874
        %v1462 = vunpack.c.h.b16 %v874
        %v1463 = vunpack.c.l.b16 %v875
        %v1464 = vunpack.c.h.b16 %v875
        %v1465 = vunpack.c.l.b16 %v876
        %v1466 = vunpack.c.h.b16 %v876
        %v1467 = vunpack.c.l.b16 %v877
        %v1468 = vunpack.c.h.b16 %v877
        %v1469 = vunpack.c.l.b16 %v878
        %v1470 = vunpack.c.h.b16 %v878
        %v1471 = vunpack.c.l.b16 %v879
        %v1472 = vunpack.c.h.b16 %v879
        %v1473 = vunpack.c.l.b16 %v880
        %v1474 = vunpack.c.h.b16 %v880
        %v1475 = vunpack.c.l.b16 %v881
        %v1476 = vunpack.c.h.b16 %v881
        %v1477 = vunpack.c.l.b16 %v882
        %v1478 = vunpack.c.h.b16 %v882
        %v1479 = vunpack.c.l.b16 %v883
        %v1480 = vunpack.c.h.b16 %v883
        %v1481 = vunpack.c.l.b16 %v884
        %v1482 = vunpack.c.h.b16 %v884
        %v1483 = vunpack.c.l.b16 %v885
        %v1484 = vunpack.c.h.b16 %v885
        %v1485 = vunpack.c.l.b16 %v886
        %v1486 = vunpack.c.h.b16 %v886
        %v1487 = vunpack.c.l.b16 %v887
        %v1488 = vunpack.c.h.b16 %v887
        %v1489 = vunpack.c.l.b16 %v888
        %v1490 = vunpack.c.h.b16 %v888
        %v1491 = vunpack.c.l.b16 %v889
        %v1492 = vunpack.c.h.b16 %v889
        %v1493 = vunpack.c.l.b16 %v890
        %v1494 = vunpack.c.h.b16 %v890
        %v1495 = vunpack.c.l.b16 %v891
        %v1496 = vunpack.c.h.b16 %v891
        %v1497 = vunpack.c.l.b16 %v892
        %v1498 = vunpack.c.h.b16 %v892
        %v1499 = vunpack.c.l.b16 %v893
        %v1500 = vunpack.c.h.b16 %v893
        %v1501 = vunpack.c.l.b16 %v894
        %v1502 = vunpack.c.h.b16 %v894
        %v1503 = vunpack.c.l.b16 %v895
        %v1504 = vunpack.c.h.b16 %v895
        %v1505 = vunpack.c.l.b16 %v896
        %v1506 = vunpack.c.h.b16 %v896
        %v1507 = vpack.c.b16 %v1119, %v1115
        %v1508 = vpack.c.b16 %v1120, %v1116
        %v1509 = vpack.c.b16 %v1121, %v1117
        %v1510 = vpack.c.b16 %v1122, %v1118
        %v1511 = vpack.c.b16 %v1127, %v1123
        %v1512 = vpack.c.b16 %v1128, %v1124
        %v1513 = vpack.c.b16 %v1129, %v1125
        %v1514 = vpack.c.b16 %v1130, %v1126
        %v1515 = vpack.c.b16 %v1135, %v1131
        %v1516 = vpack.c.b16 %v1136, %v1132
        %v1517 = vpack.c.b16 %v1137, %v1133
        %v1518 = vpack.c.b16 %v1138, %v1134
        %v1519 = vpack.c.b16 %v1143, %v1139
        %v1520 = vpack.c.b16 %v1144, %v1140
        %v1521 = vpack.c.b16 %v1145, %v1141
        %v1522 = vpack.c.b16 %v1146, %v1142
        %v1523 = vpack.c.b16 %v1151, %v1147
        %v1524 = vpack.c.b16 %v1152, %v1148
        %v1525 = vpack.c.b16 %v1153, %v1149
        %v1526 = vpack.c.b16 %v1154, %v1150
        %v1527 = vpack.c.b16 %v1159, %v1155
        %v1528 = vpack.c.b16 %v1160, %v1156
        %v1529 = vpack.c.b16 %v1161, %v1157
        %v1530 = vpack.c.b16 %v1162, %v1158
        %v1531 = vpack.c.b16 %v1167, %v1163
        %v1532 = vpack.c.b16 %v1168, %v1164
        %v1533 = vpack.c.b16 %v1169, %v1165
        %v1534 = vpack.c.b16 %v1170, %v1166
        %v1535 = vpack.c.b16 %v1175, %v1171
        %v1536 = vpack.c.b16 %v1176, %v1172
        %v1537 = vpack.c.b16 %v1177, %v1173
        %v1538 = vpack.c.b16 %v1178, %v1174
        %v1539 = vpack.c.b16 %v1183, %v1179
        %v1540 = vpack.c.b16 %v1184, %v1180
        %v1541 = vpack.c.b16 %v1185, %v1181
        %v1542 = vpack.c.b16 %v1186, %v1182
        %v1543 = vpack.c.b16 %v1191, %v1187
        %v1544 = vpack.c.b16 %v1192, %v1188
        %v1545 = vpack.c.b16 %v1193, %v1189
        %v1546 = vpack.c.b16 %v1194, %v1190
        %v1547 = vpack.c.b16 %v1199, %v1195
        %v1548 = vpack.c.b16 %v1200, %v1196
        %v1549 = vpack.c.b16 %v1201, %v1197
        %v1550 = vpack.c.b16 %v1202, %v1198
        %v1551 = vpack.c.b16 %v1207, %v1203
        %v1552 = vpack.c.b16 %v1208, %v1204
        %v1553 = vpack.c.b16 %v1209, %v1205
        %v1554 = vpack.c.b16 %v1210, %v1206
        %v1555 = vpack.c.b16 %v1215, %v1211
        %v1556 = vpack.c.b16 %v1216, %v1212
        %v1557 = vpack.c.b16 %v1217, %v1213
        %v1558 = vpack.c.b16 %v1218, %v1214
        %v1559 = vpack.c.b16 %v1223, %v1219
        %v1560 = vpack.c.b16 %v1224, %v1220
        %v1561 = vpack.c.b16 %v1225, %v1221
        %v1562 = vpack.c.b16 %v1226, %v1222
        %v1563 = vpack.c.b16 %v1231, %v1227
        %v1564 = vpack.c.b16 %v1232, %v1228
        %v1565 = vpack.c.b16 %v1233, %v1229
        %v1566 = vpack.c.b16 %v1234, %v1230
        %v1567 = vpack.c.b16 %v1239, %v1235
        %v1568 = vpack.c.b16 %v1240, %v1236
        %v1569 = vpack.c.b16 %v1241, %v1237
        %v1570 = vpack.c.b16 %v1242, %v1238
        %v1571 = vpack.c.b16 %v1247, %v1243
        %v1572 = vpack.c.b16 %v1248, %v1244
        %v1573 = vpack.c.b16 %v1249, %v1245
        %v1574 = vpack.c.b16 %v1250, %v1246
        %v1575 = vpack.c.b16 %v1255, %v1251
        %v1576 = vpack.c.b16 %v1256, %v1252
        %v1577 = vpack.c.b16 %v1257, %v1253
        %v1578 = vpack.c.b16 %v1258, %v1254
        %v1579 = vpack.c.b16 %v1263, %v1259
        %v1580 = vpack.c.b16 %v1264, %v1260
        %v1581 = vpack.c.b16 %v1265, %v1261
        %v1582 = vpack.c.b16 %v1266, %v1262
        %v1583 = vpack.c.b16 %v1271, %v1267
        %v1584 = vpack.c.b16 %v1272, %v1268
        %v1585 = vpack.c.b16 %v1273, %v1269
        %v1586 = vpack.c.b16 %v1274, %v1270
        %v1587 = vpack.c.b16 %v1279, %v1275
        %v1588 = vpack.c.b16 %v1280, %v1276
        %v1589 = vpack.c.b16 %v1281, %v1277
        %v1590 = vpack.c.b16 %v1282, %v1278
        %v1591 = vpack.c.b16 %v1287, %v1283
        %v1592 = vpack.c.b16 %v1288, %v1284
        %v1593 = vpack.c.b16 %v1289, %v1285
        %v1594 = vpack.c.b16 %v1290, %v1286
        %v1595 = vpack.c.b16 %v1295, %v1291
        %v1596 = vpack.c.b16 %v1296, %v1292
        %v1597 = vpack.c.b16 %v1297, %v1293
        %v1598 = vpack.c.b16 %v1298, %v1294
        %v1599 = vpack.c.b16 %v1303, %v1299
        %v1600 = vpack.c.b16 %v1304, %v1300
        %v1601 = vpack.c.b16 %v1305, %v1301
        %v1602 = vpack.c.b16 %v1306, %v1302
        %v1603 = vpack.c.b16 %v1311, %v1307
        %v1604 = vpack.c.b16 %v1312, %v1308
        %v1605 = vpack.c.b16 %v1313, %v1309
        %v1606 = vpack.c.b16 %v1314, %v1310
        %v1607 = vpack.c.b16 %v1319, %v1315
        %v1608 = vpack.c.b16 %v1320, %v1316
        %v1609 = vpack.c.b16 %v1321, %v1317
        %v1610 = vpack.c.b16 %v1322, %v1318
        %v1611 = vpack.c.b16 %v1327, %v1323
        %v1612 = vpack.c.b16 %v1328, %v1324
        %v1613 = vpack.c.b16 %v1329, %v1325
        %v1614 = vpack.c.b16 %v1330, %v1326
        %v1615 = vpack.c.b16 %v1335, %v1331
        %v1616 = vpack.c.b16 %v1336, %v1332
        %v1617 = vpack.c.b16 %v1337, %v1333
        %v1618 = vpack.c.b16 %v1338, %v1334
        %v1619 = vpack.c.b16 %v1343, %v1339
        %v1620 = vpack.c.b16 %v1344, %v1340
        %v1621 = vpack.c.b16 %v1345, %v1341
        %v1622 = vpack.c.b16 %v1346, %v1342
        %v1623 = vpack.c.b16 %v1351, %v1347
        %v1624 = vpack.c.b16 %v1352, %v1348
        %v1625 = vpack.c.b16 %v1353, %v1349
        %v1626 = vpack.c.b16 %v1354, %v1350
        %v1627 = vpack.c.b16 %v1359, %v1355
        %v1628 = vpack.c.b16 %v1360, %v1356
        %v1629 = vpack.c.b16 %v1361, %v1357
        %v1630 = vpack.c.b16 %v1362, %v1358
        %v1631 = vpack.c.b16 %v1367, %v1363
        %v1632 = vpack.c.b16 %v1368, %v1364
        %v1633 = vpack.c.b16 %v1369, %v1365
        %v1634 = vpack.c.b16 %v1370, %v1366
        %v1635 = vpack.c.b16 %v1375, %v1371
        %v1636 = vpack.c.b16 %v1376, %v1372
        %v1637 = vpack.c.b16 %v1377, %v1373
        %v1638 = vpack.c.b16 %v1378, %v1374
        %v1639 = vpack.c.b16 %v1383, %v1379
        %v1640 = vpack.c.b16 %v1384, %v1380
        %v1641 = vpack.c.b16 %v1385, %v1381
        %v1642 = vpack.c.b16 %v1386, %v1382
        %v1643 = vpack.c.b16 %v1391, %v1387
        %v1644 = vpack.c.b16 %v1392, %v1388
        %v1645 = vpack.c.b16 %v1393, %v1389
        %v1646 = vpack.c.b16 %v1394, %v1390
        %v1647 = vpack.c.b16 %v1399, %v1395
        %v1648 = vpack.c.b16 %v1400, %v1396
        %v1649 = vpack.c.b16 %v1401, %v1397
        %v1650 = vpack.c.b16 %v1402, %v1398
        %v1651 = vpack.c.b16 %v1407, %v1403
        %v1652 = vpack.c.b16 %v1408, %v1404
        %v1653 = vpack.c.b16 %v1409, %v1405
        %v1654 = vpack.c.b16 %v1410, %v1406
        %v1655 = vpack.c.b16 %v1415, %v1411
        %v1656 = vpack.c.b16 %v1416, %v1412
        %v1657 = vpack.c.b16 %v1417, %v1413
        %v1658 = vpack.c.b16 %v1418, %v1414
        %v1659 = vpack.c.b16 %v1423, %v1419
        %v1660 = vpack.c.b16 %v1424, %v1420
        %v1661 = vpack.c.b16 %v1425, %v1421
        %v1662 = vpack.c.b16 %v1426, %v1422
        %v1663 = vpack.c.b16 %v1431, %v1427
        %v1664 = vpack.c.b16 %v1432, %v1428
        %v1665 = vpack.c.b16 %v1433, %v1429
        %v1666 = vpack.c.b16 %v1434, %v1430
        %v1667 = vpack.c.b16 %v1439, %v1435
        %v1668 = vpack.c.b16 %v1440, %v1436
        %v1669 = vpack.c.b16 %v1441, %v1437
        %v1670 = vpack.c.b16 %v1442, %v1438
        %v1671 = vpack.c.b16 %v1447, %v1443
        %v1672 = vpack.c.b16 %v1448, %v1444
        %v1673 = vpack.c.b16 %v1449, %v1445
        %v1674 = vpack.c.b16 %v1450, %v1446
        %v1675 = vpack.c.b16 %v1455, %v1451
        %v1676 = vpack.c.b16 %v1456, %v1452
        %v1677 = vpack.c.b16 %v1457, %v1453
        %v1678 = vpack.c.b16 %v1458, %v1454
        %v1679 = vpack.c.b16 %v1463, %v1459
        %v1680 = vpack.c.b16 %v1464, %v1460
        %v1681 = vpack.c.b16 %v1465, %v1461
        %v1682 = vpack.c.b16 %v1466, %v1462
        %v1683 = vpack.c.b16 %v1471, %v1467
        %v1684 = vpack.c.b16 %v1472, %v1468
        %v1685 = vpack.c.b16 %v1473, %v1469
        %v1686 = vpack.c.b16 %v1474, %v1470
        %v1687 = vpack.c.b16 %v1479, %v1475
        %v1688 = vpack.c.b16 %v1480, %v1476
        %v1689 = vpack.c.b16 %v1481, %v1477
        %v1690 = vpack.c.b16 %v1482, %v1478
        %v1691 = vpack.c.b16 %v1487, %v1483
        %v1692 = vpack.c.b16 %v1488, %v1484
        %v1693 = vpack.c.b16 %v1489, %v1485
        %v1694 = vpack.c.b16 %v1490, %v1486
        %v1695 = vpack.c.b16 %v1495, %v1491
        %v1696 = vpack.c.b16 %v1496, %v1492
        %v1697 = vpack.c.b16 %v1497, %v1493
        %v1698 = vpack.c.b16 %v1498, %v1494
        %v1699 = vpack.c.b16 %v1503, %v1499
        %v1700 = vpack.c.b16 %v1504, %v1500
        %v1701 = vpack.c.b16 %v1505, %v1501
        %v1702 = vpack.c.b16 %v1506, %v1502
        %vm1899 = vcmask 130048
        %v1901 = vsel %vm1899, %v574, 0
        %v1904 = vsel %vm1899, %v581, 0
        %v1907 = vsel %vm1899, %v588, 0
        %v1910 = vsel %vm1899, %v595, 0
        %v1913 = vsel %vm1899, %v602, 0
        %v1916 = vsel %vm1899, %v609, 0
        %v1919 = vsel %vm1899, %v616, 0
        %v1922 = vsel %vm1899, %v623, 0
        %v1925 = vsel %vm1899, %v630, 0
        %v1928 = vsel %vm1899, %v637, 0
        %v1931 = vsel %vm1899, %v644, 0
        %v1934 = vsel %vm1899, %v651, 0
        %v1937 = vsel %vm1899, %v658, 0
        %v1940 = vsel %vm1899, %v665, 0
        %v1943 = vsel %vm1899, %v672, 0
        %v1946 = vsel %vm1899, %v679, 0
        %v1949 = vsel %vm1899, %v686, 0
        %v1952 = vsel %vm1899, %v693, 0
        %v1955 = vsel %vm1899, %v700, 0
        %1957 = vmatprep.subr.bf16.mxu0 %v1508
        %1958 = vmatpush1.bf16.msra.mxu0 %v1507
        %1959 = vmatprep.subr.bf16.mxu0 %v1512
        %1960 = vmatpush1.bf16.msra.mxu0 %v1511
        %1961 = vmatprep.subr.bf16.mxu0 %v1516
        %1962 = vmatpush1.bf16.msra.mxu0 %v1515
        %1963 = vmatprep.subr.bf16.mxu0 %v1520
        %1964 = vmatpush1.bf16.msra.mxu0 %v1519
        %1965 = vmatprep.subr.bf16.mxu0 %v1524
        %1966 = vmatpush1.bf16.msra.mxu0 %v1523
        %1967 = vmatprep.subr.bf16.mxu0 %v1528
        %1968 = vmatpush1.bf16.msra.mxu0 %v1527
        %1969 = vmatprep.subr.bf16.mxu0 %v1532
        %1970 = vmatpush1.bf16.msra.mxu0 %v1531
        %1971 = vmatprep.subr.bf16.mxu0 %v1536
        %1972 = vmatpush1.bf16.msra.mxu0 %v1535
        %1973 = vmatprep.subr.bf16.mxu0 %v1540
        %1974 = vmatpush1.bf16.msra.mxu0 %v1539
        %1975 = vmatprep.subr.bf16.mxu0 %v1544
        %1976 = vmatpush1.bf16.msra.mxu0 %v1543
        %1977 = vmatprep.subr.bf16.mxu0 %v1548
        %1978 = vmatpush1.bf16.msra.mxu0 %v1547
        %1979 = vmatprep.subr.bf16.mxu0 %v1552
        %1980 = vmatpush1.bf16.msra.mxu0 %v1551
        %1981 = vmatprep.subr.bf16.mxu0 %v1556
        %1982 = vmatpush1.bf16.msra.mxu0 %v1555
        %1983 = vmatprep.subr.bf16.mxu0 %v1560
        %1984 = vmatpush1.bf16.msra.mxu0 %v1559
        %1985 = vmatprep.subr.bf16.mxu0 %v1564
        %1986 = vmatpush1.bf16.msra.mxu0 %v1563
        %1987 = vmatprep.subr.bf16.mxu0 %v1568
        %1988 = vmatpush1.bf16.msra.mxu0 %v1567
        %1989 = vmatprep.mubr.bf16.mxu0 %v569
        %1990 = vmatmul.mubr.bf16.gmra.mrb[0].mxu0 %v568
        %v1991 = vpop.f32.mrb[0].mxu0
        %v1992 = vadd.f32 %v902, %v1991
        %v1993 = vpop.f32.mrb[0].mxu0
        %v1994 = vadd.f32 %v906, %v1993
        %v1995 = vpop.f32.mrb[0].mxu0
        %v1996 = vadd.f32 %v902, %v1995
        %v1997 = vpop.f32.mrb[0].mxu0
        %v1998 = vadd.f32 %v906, %v1997
        %1999 = vmatprep.mubr.bf16.mxu0 %v576
        %2000 = vmatmul.mubr.bf16.gmra.mrb[0].mxu0 %v575
        %v2001 = vpop.f32.mrb[0].mxu0
        %v2002 = vadd.f32 %v902, %v2001
        %v2003 = vpop.f32.mrb[0].mxu0
        %v2004 = vadd.f32 %v906, %v2003
        %v2005 = vpop.f32.mrb[0].mxu0
        %v2006 = vadd.f32 %v902, %v2005
        %v2007 = vpop.f32.mrb[0].mxu0
        %v2008 = vadd.f32 %v906, %v2007
        %2009 = vmatprep.mubr.bf16.mxu0 %v583
        %2010 = vmatmul.mubr.bf16.gmra.mrb[0].mxu0 %v582
        %v2011 = vpop.f32.mrb[0].mxu0
        %v2012 = vadd.f32 %v902, %v2011
        %v2013 = vpop.f32.mrb[0].mxu0
        %v2014 = vadd.f32 %v906, %v2013
        %v2015 = vpop.f32.mrb[0].mxu0
        %v2016 = vadd.f32 %v902, %v2015
        %v2017 = vpop.f32.mrb[0].mxu0
        %v2018 = vadd.f32 %v906, %v2017
        %2019 = vmatprep.mubr.bf16.mxu0 %v590
        %2020 = vmatmul.mubr.bf16.gmra.mrb[0].mxu0 %v589
        %v2021 = vpop.f32.mrb[0].mxu0
        %v2022 = vadd.f32 %v902, %v2021
        %v2023 = vpop.f32.mrb[0].mxu0
        %v2024 = vadd.f32 %v906, %v2023
        %v2025 = vpop.f32.mrb[0].mxu0
        %v2026 = vadd.f32 %v902, %v2025
        %v2027 = vpop.f32.mrb[0].mxu0
        %v2028 = vadd.f32 %v906, %v2027
        %2029 = vmatprep.mubr.bf16.mxu0 %v597
        %2030 = vmatmul.mubr.bf16.gmra.mrb[0].mxu0 %v596
        %v2031 = vpop.f32.mrb[0].mxu0
        %v2032 = vadd.f32 %v902, %v2031
        %v2033 = vpop.f32.mrb[0].mxu0
        %v2034 = vadd.f32 %v906, %v2033
        %v2035 = vpop.f32.mrb[0].mxu0
        %v2036 = vadd.f32 %v902, %v2035
        %v2037 = vpop.f32.mrb[0].mxu0
        %v2038 = vadd.f32 %v906, %v2037
        %2039 = vmatprep.mubr.bf16.mxu0 %v604
        %2040 = vmatmul.mubr.bf16.gmra.mrb[0].mxu0 %v603
        %v2041 = vpop.f32.mrb[0].mxu0
        %v2042 = vadd.f32 %v902, %v2041
        %v2043 = vpop.f32.mrb[0].mxu0
        %v2044 = vadd.f32 %v906, %v2043
        %v2045 = vpop.f32.mrb[0].mxu0
        %v2046 = vadd.f32 %v902, %v2045
        %v2047 = vpop.f32.mrb[0].mxu0
        %v2048 = vadd.f32 %v906, %v2047
        %2049 = vmatprep.mubr.bf16.mxu0 %v611
        %2050 = vmatmul.mubr.bf16.gmra.mrb[0].mxu0 %v610
        %v2051 = vpop.f32.mrb[0].mxu0
        %v2052 = vadd.f32 %v902, %v2051
        %v2053 = vpop.f32.mrb[0].mxu0
        %v2054 = vadd.f32 %v906, %v2053
        %v2055 = vpop.f32.mrb[0].mxu0
        %v2056 = vadd.f32 %v902, %v2055
        %v2057 = vpop.f32.mrb[0].mxu0
        %v2058 = vadd.f32 %v906, %v2057
        %2059 = vmatprep.mubr.bf16.mxu0 %v618
        %2060 = vmatmul.mubr.bf16.gmra.mrb[0].mxu0 %v617
        %v2061 = vpop.f32.mrb[0].mxu0
        %v2062 = vadd.f32 %v902, %v2061
        %v2063 = vpop.f32.mrb[0].mxu0
        %v2064 = vadd.f32 %v906, %v2063
        %v2065 = vpop.f32.mrb[0].mxu0
        %v2066 = vadd.f32 %v902, %v2065
        %v2067 = vpop.f32.mrb[0].mxu0
        %v2068 = vadd.f32 %v906, %v2067
        %2069 = vmatprep.mubr.bf16.mxu0 %v625
        %2070 = vmatmul.mubr.bf16.gmra.mrb[0].mxu0 %v624
        %v2071 = vpop.f32.mrb[0].mxu0
        %v2072 = vadd.f32 %v902, %v2071
        %v2073 = vpop.f32.mrb[0].mxu0
        %v2074 = vadd.f32 %v906, %v2073
        %v2075 = vpop.f32.mrb[0].mxu0
        %v2076 = vadd.f32 %v902, %v2075
        %v2077 = vpop.f32.mrb[0].mxu0
        %v2078 = vadd.f32 %v906, %v2077
        %2079 = vmatprep.mubr.bf16.mxu0 %v632
        %2080 = vmatmul.mubr.bf16.gmra.mrb[0].mxu0 %v631
        %v2081 = vpop.f32.mrb[0].mxu0
        %v2082 = vadd.f32 %v902, %v2081
        %v2083 = vpop.f32.mrb[0].mxu0
        %v2084 = vadd.f32 %v906, %v2083
        %v2085 = vpop.f32.mrb[0].mxu0
        %v2086 = vadd.f32 %v902, %v2085
        %v2087 = vpop.f32.mrb[0].mxu0
        %v2088 = vadd.f32 %v906, %v2087
        %2089 = vmatprep.mubr.bf16.mxu0 %v639
        %2090 = vmatmul.mubr.bf16.gmra.mrb[0].mxu0 %v638
        %v2091 = vpop.f32.mrb[0].mxu0
        %v2092 = vadd.f32 %v902, %v2091
        %v2093 = vpop.f32.mrb[0].mxu0
        %v2094 = vadd.f32 %v906, %v2093
        %v2095 = vpop.f32.mrb[0].mxu0
        %v2096 = vadd.f32 %v902, %v2095
        %v2097 = vpop.f32.mrb[0].mxu0
        %v2098 = vadd.f32 %v906, %v2097
        %2099 = vmatprep.mubr.bf16.mxu0 %v646
        %2100 = vmatmul.mubr.bf16.gmra.mrb[0].mxu0 %v645
        %v2101 = vpop.f32.mrb[0].mxu0
        %v2102 = vadd.f32 %v902, %v2101
        %v2103 = vpop.f32.mrb[0].mxu0
        %v2104 = vadd.f32 %v906, %v2103
        %v2105 = vpop.f32.mrb[0].mxu0
        %v2106 = vadd.f32 %v902, %v2105
        %v2107 = vpop.f32.mrb[0].mxu0
        %v2108 = vadd.f32 %v906, %v2107
        %2109 = vmatprep.mubr.bf16.mxu0 %v653
        %2110 = vmatmul.mubr.bf16.gmra.mrb[0].mxu0 %v652
        %v2111 = vpop.f32.mrb[0].mxu0
        %v2112 = vadd.f32 %v902, %v2111
        %v2113 = vpop.f32.mrb[0].mxu0
        %v2114 = vadd.f32 %v906, %v2113
        %v2115 = vpop.f32.mrb[0].mxu0
        %v2116 = vadd.f32 %v902, %v2115
        %v2117 = vpop.f32.mrb[0].mxu0
        %v2118 = vadd.f32 %v906, %v2117
        %2119 = vmatprep.mubr.bf16.mxu0 %v660
        %2120 = vmatmul.mubr.bf16.gmra.mrb[0].mxu0 %v659
        %v2121 = vpop.f32.mrb[0].mxu0
        %v2122 = vadd.f32 %v902, %v2121
        %v2123 = vpop.f32.mrb[0].mxu0
        %v2124 = vadd.f32 %v906, %v2123
        %v2125 = vpop.f32.mrb[0].mxu0
        %v2126 = vadd.f32 %v902, %v2125
        %v2127 = vpop.f32.mrb[0].mxu0
        %v2128 = vadd.f32 %v906, %v2127
        %2129 = vmatprep.mubr.bf16.mxu0 %v667
        %2130 = vmatmul.mubr.bf16.gmra.mrb[0].mxu0 %v666
        %v2131 = vpop.f32.mrb[0].mxu0
        %v2132 = vadd.f32 %v902, %v2131
        %v2133 = vpop.f32.mrb[0].mxu0
        %v2134 = vadd.f32 %v906, %v2133
        %v2135 = vpop.f32.mrb[0].mxu0
        %v2136 = vadd.f32 %v902, %v2135
        %v2137 = vpop.f32.mrb[0].mxu0
        %v2138 = vadd.f32 %v906, %v2137
        %2139 = vmatprep.mubr.bf16.mxu0 %v674
        %2140 = vmatmul.mubr.bf16.gmra.mrb[0].mxu0 %v673
        %v2141 = vpop.f32.mrb[0].mxu0
        %v2142 = vadd.f32 %v902, %v2141
        %v2143 = vpop.f32.mrb[0].mxu0
        %v2144 = vadd.f32 %v906, %v2143
        %v2145 = vpop.f32.mrb[0].mxu0
        %v2146 = vadd.f32 %v902, %v2145
        %v2147 = vpop.f32.mrb[0].mxu0
        %v2148 = vadd.f32 %v906, %v2147
        %2149 = vmatprep.mubr.bf16.mxu0 %v681
        %2150 = vmatmul.mubr.bf16.gmra.mrb[0].mxu0 %v680
        %v2151 = vpop.f32.mrb[0].mxu0
        %v2152 = vadd.f32 %v902, %v2151
        %v2153 = vpop.f32.mrb[0].mxu0
        %v2154 = vadd.f32 %v906, %v2153
        %v2155 = vpop.f32.mrb[0].mxu0
        %v2156 = vadd.f32 %v902, %v2155
        %v2157 = vpop.f32.mrb[0].mxu0
        %v2158 = vadd.f32 %v906, %v2157
        %2159 = vmatprep.mubr.bf16.mxu0 %v688
        %2160 = vmatmul.mubr.bf16.gmra.mrb[0].mxu0 %v687
        %v2161 = vpop.f32.mrb[0].mxu0
        %v2162 = vadd.f32 %v902, %v2161
        %v2163 = vpop.f32.mrb[0].mxu0
        %v2164 = vadd.f32 %v906, %v2163
        %v2165 = vpop.f32.mrb[0].mxu0
        %v2166 = vadd.f32 %v902, %v2165
        %v2167 = vpop.f32.mrb[0].mxu0
        %v2168 = vadd.f32 %v906, %v2167
        %2169 = vmatprep.mubr.bf16.mxu0 %v695
        %2170 = vmatmul.mubr.bf16.gmra.mrb[0].mxu0 %v694
        %v2171 = vpop.f32.mrb[0].mxu0
        %v2172 = vadd.f32 %v902, %v2171
        %v2173 = vpop.f32.mrb[0].mxu0
        %v2174 = vadd.f32 %v906, %v2173
        %v2175 = vpop.f32.mrb[0].mxu0
        %v2176 = vadd.f32 %v902, %v2175
        %v2177 = vpop.f32.mrb[0].mxu0
        %v2178 = vadd.f32 %v906, %v2177
        %2179 = vdwg.mxu0
        %2180 = vmatprep.subr.bf16.mxu0 %v1572
        %2181 = vmatpush1.bf16.msra.mxu0 %v1571
        %2182 = vmatprep.subr.bf16.mxu0 %v1576
        %2183 = vmatpush1.bf16.msra.mxu0 %v1575
        %2184 = vmatprep.subr.bf16.mxu0 %v1580
        %2185 = vmatpush1.bf16.msra.mxu0 %v1579
        %2186 = vmatprep.subr.bf16.mxu0 %v1584
        %2187 = vmatpush1.bf16.msra.mxu0 %v1583
        %2188 = vmatprep.subr.bf16.mxu0 %v1588
        %2189 = vmatpush1.bf16.msra.mxu0 %v1587
        %2190 = vmatprep.subr.bf16.mxu0 %v1592
        %2191 = vmatpush1.bf16.msra.mxu0 %v1591
        %2192 = vmatprep.subr.bf16.mxu0 %v1596
        %2193 = vmatpush1.bf16.msra.mxu0 %v1595
        %2194 = vmatprep.subr.bf16.mxu0 %v1600
        %2195 = vmatpush1.bf16.msra.mxu0 %v1599
        %2196 = vmatprep.subr.bf16.mxu0 %v1604
        %2197 = vmatpush1.bf16.msra.mxu0 %v1603
        %2198 = vmatprep.subr.bf16.mxu0 %v1608
        %2199 = vmatpush1.bf16.msra.mxu0 %v1607
        %2200 = vmatprep.subr.bf16.mxu0 %v1612
        %2201 = vmatpush1.bf16.msra.mxu0 %v1611
        %2202 = vmatprep.subr.bf16.mxu0 %v1616
        %2203 = vmatpush1.bf16.msra.mxu0 %v1615
        %2204 = vmatprep.subr.bf16.mxu0 %v1620
        %2205 = vmatpush1.bf16.msra.mxu0 %v1619
        %2206 = vmatprep.subr.bf16.mxu0 %v1624
        %2207 = vmatpush1.bf16.msra.mxu0 %v1623
        %2208 = vmatprep.subr.bf16.mxu0 %v1628
        %2209 = vmatpush1.bf16.msra.mxu0 %v1627
        %2210 = vmatprep.subr.bf16.mxu0 %v1632
        %2211 = vmatpush1.bf16.msra.mxu0 %v1631
        %2212 = vmatprep.mubr.bf16.mxu0 %v571
        %2213 = vmatmul.mubr.bf16.gmra.mrb[0].mxu0 %v570
        %v2214 = vpop.f32.mrb[0].mxu0
        %v2215 = vadd.f32 %v1992, %v2214
        %v2216 = vpop.f32.mrb[0].mxu0
        %v2217 = vadd.f32 %v1994, %v2216
        %v2218 = vpop.f32.mrb[0].mxu0
        %v2219 = vadd.f32 %v1996, %v2218
        %v2220 = vpop.f32.mrb[0].mxu0
        %v2221 = vadd.f32 %v1998, %v2220
        %2222 = vmatprep.mubr.bf16.mxu0 %v578
        %2223 = vmatmul.mubr.bf16.gmra.mrb[0].mxu0 %v577
        %v2224 = vpop.f32.mrb[0].mxu0
        %v2225 = vadd.f32 %v2002, %v2224
        %v2226 = vpop.f32.mrb[0].mxu0
        %v2227 = vadd.f32 %v2004, %v2226
        %v2228 = vpop.f32.mrb[0].mxu0
        %v2229 = vadd.f32 %v2006, %v2228
        %v2230 = vpop.f32.mrb[0].mxu0
        %v2231 = vadd.f32 %v2008, %v2230
        %2232 = vmatprep.mubr.bf16.mxu0 %v585
        %2233 = vmatmul.mubr.bf16.gmra.mrb[0].mxu0 %v584
        %v2234 = vpop.f32.mrb[0].mxu0
        %v2235 = vadd.f32 %v2012, %v2234
        %v2236 = vpop.f32.mrb[0].mxu0
        %v2237 = vadd.f32 %v2014, %v2236
        %v2238 = vpop.f32.mrb[0].mxu0
        %v2239 = vadd.f32 %v2016, %v2238
        %v2240 = vpop.f32.mrb[0].mxu0
        %v2241 = vadd.f32 %v2018, %v2240
        %2242 = vmatprep.mubr.bf16.mxu0 %v592
        %2243 = vmatmul.mubr.bf16.gmra.mrb[0].mxu0 %v591
        %v2244 = vpop.f32.mrb[0].mxu0
        %v2245 = vadd.f32 %v2022, %v2244
        %v2246 = vpop.f32.mrb[0].mxu0
        %v2247 = vadd.f32 %v2024, %v2246
        %v2248 = vpop.f32.mrb[0].mxu0
        %v2249 = vadd.f32 %v2026, %v2248
        %v2250 = vpop.f32.mrb[0].mxu0
        %v2251 = vadd.f32 %v2028, %v2250
        %2252 = vmatprep.mubr.bf16.mxu0 %v599
        %2253 = vmatmul.mubr.bf16.gmra.mrb[0].mxu0 %v598
        %v2254 = vpop.f32.mrb[0].mxu0
        %v2255 = vadd.f32 %v2032, %v2254
        %v2256 = vpop.f32.mrb[0].mxu0
        %v2257 = vadd.f32 %v2034, %v2256
        %v2258 = vpop.f32.mrb[0].mxu0
        %v2259 = vadd.f32 %v2036, %v2258
        %v2260 = vpop.f32.mrb[0].mxu0
        %v2261 = vadd.f32 %v2038, %v2260
        %2262 = vmatprep.mubr.bf16.mxu0 %v606
        %2263 = vmatmul.mubr.bf16.gmra.mrb[0].mxu0 %v605
        %v2264 = vpop.f32.mrb[0].mxu0
        %v2265 = vadd.f32 %v2042, %v2264
        %v2266 = vpop.f32.mrb[0].mxu0
        %v2267 = vadd.f32 %v2044, %v2266
        %v2268 = vpop.f32.mrb[0].mxu0
        %v2269 = vadd.f32 %v2046, %v2268
        %v2270 = vpop.f32.mrb[0].mxu0
        %v2271 = vadd.f32 %v2048, %v2270
        %2272 = vmatprep.mubr.bf16.mxu0 %v613
        %2273 = vmatmul.mubr.bf16.gmra.mrb[0].mxu0 %v612
        %v2274 = vpop.f32.mrb[0].mxu0
        %v2275 = vadd.f32 %v2052, %v2274
        %v2276 = vpop.f32.mrb[0].mxu0
        %v2277 = vadd.f32 %v2054, %v2276
        %v2278 = vpop.f32.mrb[0].mxu0
        %v2279 = vadd.f32 %v2056, %v2278
        %v2280 = vpop.f32.mrb[0].mxu0
        %v2281 = vadd.f32 %v2058, %v2280
        %2282 = vmatprep.mubr.bf16.mxu0 %v620
        %2283 = vmatmul.mubr.bf16.gmra.mrb[0].mxu0 %v619
        %v2284 = vpop.f32.mrb[0].mxu0
        %v2285 = vadd.f32 %v2062, %v2284
        %v2286 = vpop.f32.mrb[0].mxu0
        %v2287 = vadd.f32 %v2064, %v2286
        %v2288 = vpop.f32.mrb[0].mxu0
        %v2289 = vadd.f32 %v2066, %v2288
        %v2290 = vpop.f32.mrb[0].mxu0
        %v2291 = vadd.f32 %v2068, %v2290
        %2292 = vmatprep.mubr.bf16.mxu0 %v627
        %2293 = vmatmul.mubr.bf16.gmra.mrb[0].mxu0 %v626
        %v2294 = vpop.f32.mrb[0].mxu0
        %v2295 = vadd.f32 %v2072, %v2294
        %v2296 = vpop.f32.mrb[0].mxu0
        %v2297 = vadd.f32 %v2074, %v2296
        %v2298 = vpop.f32.mrb[0].mxu0
        %v2299 = vadd.f32 %v2076, %v2298
        %v2300 = vpop.f32.mrb[0].mxu0
        %v2301 = vadd.f32 %v2078, %v2300
        %2302 = vmatprep.mubr.bf16.mxu0 %v634
        %2303 = vmatmul.mubr.bf16.gmra.mrb[0].mxu0 %v633
        %v2304 = vpop.f32.mrb[0].mxu0
        %v2305 = vadd.f32 %v2082, %v2304
        %v2306 = vpop.f32.mrb[0].mxu0
        %v2307 = vadd.f32 %v2084, %v2306
        %v2308 = vpop.f32.mrb[0].mxu0
        %v2309 = vadd.f32 %v2086, %v2308
        %v2310 = vpop.f32.mrb[0].mxu0
        %v2311 = vadd.f32 %v2088, %v2310
        %2312 = vmatprep.mubr.bf16.mxu0 %v641
        %2313 = vmatmul.mubr.bf16.gmra.mrb[0].mxu0 %v640
        %v2314 = vpop.f32.mrb[0].mxu0
        %v2315 = vadd.f32 %v2092, %v2314
        %v2316 = vpop.f32.mrb[0].mxu0
        %v2317 = vadd.f32 %v2094, %v2316
        %v2318 = vpop.f32.mrb[0].mxu0
        %v2319 = vadd.f32 %v2096, %v2318
        %v2320 = vpop.f32.mrb[0].mxu0
        %v2321 = vadd.f32 %v2098, %v2320
        %2322 = vmatprep.mubr.bf16.mxu0 %v648
        %2323 = vmatmul.mubr.bf16.gmra.mrb[0].mxu0 %v647
        %v2324 = vpop.f32.mrb[0].mxu0
        %v2325 = vadd.f32 %v2102, %v2324
        %v2326 = vpop.f32.mrb[0].mxu0
        %v2327 = vadd.f32 %v2104, %v2326
        %v2328 = vpop.f32.mrb[0].mxu0
        %v2329 = vadd.f32 %v2106, %v2328
        %v2330 = vpop.f32.mrb[0].mxu0
        %v2331 = vadd.f32 %v2108, %v2330
        %2332 = vmatprep.mubr.bf16.mxu0 %v655
        %2333 = vmatmul.mubr.bf16.gmra.mrb[0].mxu0 %v654
        %v2334 = vpop.f32.mrb[0].mxu0
        %v2335 = vadd.f32 %v2112, %v2334
        %v2336 = vpop.f32.mrb[0].mxu0
        %v2337 = vadd.f32 %v2114, %v2336
        %v2338 = vpop.f32.mrb[0].mxu0
        %v2339 = vadd.f32 %v2116, %v2338
        %v2340 = vpop.f32.mrb[0].mxu0
        %v2341 = vadd.f32 %v2118, %v2340
        %2342 = vmatprep.mubr.bf16.mxu0 %v662
        %2343 = vmatmul.mubr.bf16.gmra.mrb[0].mxu0 %v661
        %v2344 = vpop.f32.mrb[0].mxu0
        %v2345 = vadd.f32 %v2122, %v2344
        %v2346 = vpop.f32.mrb[0].mxu0
        %v2347 = vadd.f32 %v2124, %v2346
        %v2348 = vpop.f32.mrb[0].mxu0
        %v2349 = vadd.f32 %v2126, %v2348
        %v2350 = vpop.f32.mrb[0].mxu0
        %v2351 = vadd.f32 %v2128, %v2350
        %2352 = vmatprep.mubr.bf16.mxu0 %v669
        %2353 = vmatmul.mubr.bf16.gmra.mrb[0].mxu0 %v668
        %v2354 = vpop.f32.mrb[0].mxu0
        %v2355 = vadd.f32 %v2132, %v2354
        %v2356 = vpop.f32.mrb[0].mxu0
        %v2357 = vadd.f32 %v2134, %v2356
        %v2358 = vpop.f32.mrb[0].mxu0
        %v2359 = vadd.f32 %v2136, %v2358
        %v2360 = vpop.f32.mrb[0].mxu0
        %v2361 = vadd.f32 %v2138, %v2360
        %2362 = vmatprep.mubr.bf16.mxu0 %v676
        %2363 = vmatmul.mubr.bf16.gmra.mrb[0].mxu0 %v675
        %v2364 = vpop.f32.mrb[0].mxu0
        %v2365 = vadd.f32 %v2142, %v2364
        %v2366 = vpop.f32.mrb[0].mxu0
        %v2367 = vadd.f32 %v2144, %v2366
        %v2368 = vpop.f32.mrb[0].mxu0
        %v2369 = vadd.f32 %v2146, %v2368
        %v2370 = vpop.f32.mrb[0].mxu0
        %v2371 = vadd.f32 %v2148, %v2370
        %2372 = vmatprep.mubr.bf16.mxu0 %v683
        %2373 = vmatmul.mubr.bf16.gmra.mrb[0].mxu0 %v682
        %v2374 = vpop.f32.mrb[0].mxu0
        %v2375 = vadd.f32 %v2152, %v2374
        %v2376 = vpop.f32.mrb[0].mxu0
        %v2377 = vadd.f32 %v2154, %v2376
        %v2378 = vpop.f32.mrb[0].mxu0
        %v2379 = vadd.f32 %v2156, %v2378
        %v2380 = vpop.f32.mrb[0].mxu0
        %v2381 = vadd.f32 %v2158, %v2380
        %2382 = vmatprep.mubr.bf16.mxu0 %v690
        %2383 = vmatmul.mubr.bf16.gmra.mrb[0].mxu0 %v689
        %v2384 = vpop.f32.mrb[0].mxu0
        %v2385 = vadd.f32 %v2162, %v2384
        %v2386 = vpop.f32.mrb[0].mxu0
        %v2387 = vadd.f32 %v2164, %v2386
        %v2388 = vpop.f32.mrb[0].mxu0
        %v2389 = vadd.f32 %v2166, %v2388
        %v2390 = vpop.f32.mrb[0].mxu0
        %v2391 = vadd.f32 %v2168, %v2390
        %2392 = vmatprep.mubr.bf16.mxu0 %v697
        %2393 = vmatmul.mubr.bf16.gmra.mrb[0].mxu0 %v696
        %v2394 = vpop.f32.mrb[0].mxu0
        %v2395 = vadd.f32 %v2172, %v2394
        %v2396 = vpop.f32.mrb[0].mxu0
        %v2397 = vadd.f32 %v2174, %v2396
        %v2398 = vpop.f32.mrb[0].mxu0
        %v2399 = vadd.f32 %v2176, %v2398
        %v2400 = vpop.f32.mrb[0].mxu0
        %v2401 = vadd.f32 %v2178, %v2400
        %2402 = vdwg.mxu0
        %2403 = vmatprep.subr.bf16.mxu0 %v1636
        %2404 = vmatpush1.bf16.msra.mxu0 %v1635
        %2405 = vmatprep.subr.bf16.mxu0 %v1640
        %2406 = vmatpush1.bf16.msra.mxu0 %v1639
        %2407 = vmatprep.subr.bf16.mxu0 %v1644
        %2408 = vmatpush1.bf16.msra.mxu0 %v1643
        %2409 = vmatprep.subr.bf16.mxu0 %v1648
        %2410 = vmatpush1.bf16.msra.mxu0 %v1647
        %2411 = vmatprep.subr.bf16.mxu0 %v1652
        %2412 = vmatpush1.bf16.msra.mxu0 %v1651
        %2413 = vmatprep.subr.bf16.mxu0 %v1656
        %2414 = vmatpush1.bf16.msra.mxu0 %v1655
        %2415 = vmatprep.subr.bf16.mxu0 %v1660
        %2416 = vmatpush1.bf16.msra.mxu0 %v1659
        %2417 = vmatprep.subr.bf16.mxu0 %v1664
        %2418 = vmatpush1.bf16.msra.mxu0 %v1663
        %2419 = vmatprep.subr.bf16.mxu0 %v1668
        %2420 = vmatpush1.bf16.msra.mxu0 %v1667
        %2421 = vmatprep.subr.bf16.mxu0 %v1672
        %2422 = vmatpush1.bf16.msra.mxu0 %v1671
        %2423 = vmatprep.subr.bf16.mxu0 %v1676
        %2424 = vmatpush1.bf16.msra.mxu0 %v1675
        %2425 = vmatprep.subr.bf16.mxu0 %v1680
        %2426 = vmatpush1.bf16.msra.mxu0 %v1679
        %2427 = vmatprep.subr.bf16.mxu0 %v1684
        %2428 = vmatpush1.bf16.msra.mxu0 %v1683
        %2429 = vmatprep.subr.bf16.mxu0 %v1688
        %2430 = vmatpush1.bf16.msra.mxu0 %v1687
        %2431 = vmatprep.subr.bf16.mxu0 %v1692
        %2432 = vmatpush1.bf16.msra.mxu0 %v1691
        %2433 = vmatprep.subr.bf16.mxu0 %v1696
        %2434 = vmatpush1.bf16.msra.mxu0 %v1695
        %2435 = vmatprep.mubr.bf16.mxu0 %v573
        %2436 = vmatmul.mubr.bf16.gmra.mrb[0].mxu0 %v572
        %v2437 = vpop.f32.mrb[0].mxu0
        %v2438 = vadd.f32 %v2215, %v2437
        %v2439 = vpop.f32.mrb[0].mxu0
        %v2440 = vadd.f32 %v2217, %v2439
        %v2441 = vpop.f32.mrb[0].mxu0
        %v2442 = vadd.f32 %v2219, %v2441
        %v2443 = vpop.f32.mrb[0].mxu0
        %v2444 = vadd.f32 %v2221, %v2443
        %2445 = vmatprep.mubr.bf16.mxu0 %v580
        %2446 = vmatmul.mubr.bf16.gmra.mrb[0].mxu0 %v579
        %v2447 = vpop.f32.mrb[0].mxu0
        %v2448 = vadd.f32 %v2225, %v2447
        %v2449 = vpop.f32.mrb[0].mxu0
        %v2450 = vadd.f32 %v2227, %v2449
        %v2451 = vpop.f32.mrb[0].mxu0
        %v2452 = vadd.f32 %v2229, %v2451
        %v2453 = vpop.f32.mrb[0].mxu0
        %v2454 = vadd.f32 %v2231, %v2453
        %2455 = vmatprep.mubr.bf16.mxu0 %v587
        %2456 = vmatmul.mubr.bf16.gmra.mrb[0].mxu0 %v586
        %v2457 = vpop.f32.mrb[0].mxu0
        %v2458 = vadd.f32 %v2235, %v2457
        %v2459 = vpop.f32.mrb[0].mxu0
        %v2460 = vadd.f32 %v2237, %v2459
        %v2461 = vpop.f32.mrb[0].mxu0
        %v2462 = vadd.f32 %v2239, %v2461
        %v2463 = vpop.f32.mrb[0].mxu0
        %v2464 = vadd.f32 %v2241, %v2463
        %2465 = vmatprep.mubr.bf16.mxu0 %v594
        %2466 = vmatmul.mubr.bf16.gmra.mrb[0].mxu0 %v593
        %v2467 = vpop.f32.mrb[0].mxu0
        %v2468 = vadd.f32 %v2245, %v2467
        %v2469 = vpop.f32.mrb[0].mxu0
        %v2470 = vadd.f32 %v2247, %v2469
        %v2471 = vpop.f32.mrb[0].mxu0
        %v2472 = vadd.f32 %v2249, %v2471
        %v2473 = vpop.f32.mrb[0].mxu0
        %v2474 = vadd.f32 %v2251, %v2473
        %2475 = vmatprep.mubr.bf16.mxu0 %v601
        %2476 = vmatmul.mubr.bf16.gmra.mrb[0].mxu0 %v600
        %v2477 = vpop.f32.mrb[0].mxu0
        %v2478 = vadd.f32 %v2255, %v2477
        %v2479 = vpop.f32.mrb[0].mxu0
        %v2480 = vadd.f32 %v2257, %v2479
        %v2481 = vpop.f32.mrb[0].mxu0
        %v2482 = vadd.f32 %v2259, %v2481
        %v2483 = vpop.f32.mrb[0].mxu0
        %v2484 = vadd.f32 %v2261, %v2483
        %2485 = vmatprep.mubr.bf16.mxu0 %v608
        %2486 = vmatmul.mubr.bf16.gmra.mrb[0].mxu0 %v607
        %v2487 = vpop.f32.mrb[0].mxu0
        %v2488 = vadd.f32 %v2265, %v2487
        %v2489 = vpop.f32.mrb[0].mxu0
        %v2490 = vadd.f32 %v2267, %v2489
        %v2491 = vpop.f32.mrb[0].mxu0
        %v2492 = vadd.f32 %v2269, %v2491
        %v2493 = vpop.f32.mrb[0].mxu0
        %v2494 = vadd.f32 %v2271, %v2493
        %2495 = vmatprep.mubr.bf16.mxu0 %v615
        %2496 = vmatmul.mubr.bf16.gmra.mrb[0].mxu0 %v614
        %v2497 = vpop.f32.mrb[0].mxu0
        %v2498 = vadd.f32 %v2275, %v2497
        %v2499 = vpop.f32.mrb[0].mxu0
        %v2500 = vadd.f32 %v2277, %v2499
        %v2501 = vpop.f32.mrb[0].mxu0
        %v2502 = vadd.f32 %v2279, %v2501
        %v2503 = vpop.f32.mrb[0].mxu0
        %v2504 = vadd.f32 %v2281, %v2503
        %2505 = vmatprep.mubr.bf16.mxu0 %v622
        %2506 = vmatmul.mubr.bf16.gmra.mrb[0].mxu0 %v621
        %v2507 = vpop.f32.mrb[0].mxu0
        %v2508 = vadd.f32 %v2285, %v2507
        %v2509 = vpop.f32.mrb[0].mxu0
        %v2510 = vadd.f32 %v2287, %v2509
        %v2511 = vpop.f32.mrb[0].mxu0
        %v2512 = vadd.f32 %v2289, %v2511
        %v2513 = vpop.f32.mrb[0].mxu0
        %v2514 = vadd.f32 %v2291, %v2513
        %2515 = vmatprep.mubr.bf16.mxu0 %v629
        %2516 = vmatmul.mubr.bf16.gmra.mrb[0].mxu0 %v628
        %v2517 = vpop.f32.mrb[0].mxu0
        %v2518 = vadd.f32 %v2295, %v2517
        %v2519 = vpop.f32.mrb[0].mxu0
        %v2520 = vadd.f32 %v2297, %v2519
        %v2521 = vpop.f32.mrb[0].mxu0
        %v2522 = vadd.f32 %v2299, %v2521
        %v2523 = vpop.f32.mrb[0].mxu0
        %v2524 = vadd.f32 %v2301, %v2523
        %2525 = vmatprep.mubr.bf16.mxu0 %v636
        %2526 = vmatmul.mubr.bf16.gmra.mrb[0].mxu0 %v635
        %v2527 = vpop.f32.mrb[0].mxu0
        %v2528 = vadd.f32 %v2305, %v2527
        %v2529 = vpop.f32.mrb[0].mxu0
        %v2530 = vadd.f32 %v2307, %v2529
        %v2531 = vpop.f32.mrb[0].mxu0
        %v2532 = vadd.f32 %v2309, %v2531
        %v2533 = vpop.f32.mrb[0].mxu0
        %v2534 = vadd.f32 %v2311, %v2533
        %2535 = vmatprep.mubr.bf16.mxu0 %v643
        %2536 = vmatmul.mubr.bf16.gmra.mrb[0].mxu0 %v642
        %v2537 = vpop.f32.mrb[0].mxu0
        %v2538 = vadd.f32 %v2315, %v2537
        %v2539 = vpop.f32.mrb[0].mxu0
        %v2540 = vadd.f32 %v2317, %v2539
        %v2541 = vpop.f32.mrb[0].mxu0
        %v2542 = vadd.f32 %v2319, %v2541
        %v2543 = vpop.f32.mrb[0].mxu0
        %v2544 = vadd.f32 %v2321, %v2543
        %2545 = vmatprep.mubr.bf16.mxu0 %v650
        %2546 = vmatmul.mubr.bf16.gmra.mrb[0].mxu0 %v649
        %v2547 = vpop.f32.mrb[0].mxu0
        %v2548 = vadd.f32 %v2325, %v2547
        %v2549 = vpop.f32.mrb[0].mxu0
        %v2550 = vadd.f32 %v2327, %v2549
        %v2551 = vpop.f32.mrb[0].mxu0
        %v2552 = vadd.f32 %v2329, %v2551
        %v2553 = vpop.f32.mrb[0].mxu0
        %v2554 = vadd.f32 %v2331, %v2553
        %2555 = vmatprep.mubr.bf16.mxu0 %v657
        %2556 = vmatmul.mubr.bf16.gmra.mrb[0].mxu0 %v656
        %v2557 = vpop.f32.mrb[0].mxu0
        %v2558 = vadd.f32 %v2335, %v2557
        %v2559 = vpop.f32.mrb[0].mxu0
        %v2560 = vadd.f32 %v2337, %v2559
        %v2561 = vpop.f32.mrb[0].mxu0
        %v2562 = vadd.f32 %v2339, %v2561
        %v2563 = vpop.f32.mrb[0].mxu0
        %v2564 = vadd.f32 %v2341, %v2563
        %2565 = vmatprep.mubr.bf16.mxu0 %v664
        %2566 = vmatmul.mubr.bf16.gmra.mrb[0].mxu0 %v663
        %v2567 = vpop.f32.mrb[0].mxu0
        %v2568 = vadd.f32 %v2345, %v2567
        %v2569 = vpop.f32.mrb[0].mxu0
        %v2570 = vadd.f32 %v2347, %v2569
        %v2571 = vpop.f32.mrb[0].mxu0
        %v2572 = vadd.f32 %v2349, %v2571
        %v2573 = vpop.f32.mrb[0].mxu0
        %v2574 = vadd.f32 %v2351, %v2573
        %2575 = vmatprep.mubr.bf16.mxu0 %v671
        %2576 = vmatmul.mubr.bf16.gmra.mrb[0].mxu0 %v670
        %v2577 = vpop.f32.mrb[0].mxu0
        %v2578 = vadd.f32 %v2355, %v2577
        %v2579 = vpop.f32.mrb[0].mxu0
        %v2580 = vadd.f32 %v2357, %v2579
        %v2581 = vpop.f32.mrb[0].mxu0
        %v2582 = vadd.f32 %v2359, %v2581
        %v2583 = vpop.f32.mrb[0].mxu0
        %v2584 = vadd.f32 %v2361, %v2583
        %2585 = vmatprep.mubr.bf16.mxu0 %v678
        %2586 = vmatmul.mubr.bf16.gmra.mrb[0].mxu0 %v677
        %v2587 = vpop.f32.mrb[0].mxu0
        %v2588 = vadd.f32 %v2365, %v2587
        %v2589 = vpop.f32.mrb[0].mxu0
        %v2590 = vadd.f32 %v2367, %v2589
        %v2591 = vpop.f32.mrb[0].mxu0
        %v2592 = vadd.f32 %v2369, %v2591
        %v2593 = vpop.f32.mrb[0].mxu0
        %v2594 = vadd.f32 %v2371, %v2593
        %2595 = vmatprep.mubr.bf16.mxu0 %v685
        %2596 = vmatmul.mubr.bf16.gmra.mrb[0].mxu0 %v684
        %v2597 = vpop.f32.mrb[0].mxu0
        %v2598 = vadd.f32 %v2375, %v2597
        %v2599 = vpop.f32.mrb[0].mxu0
        %v2600 = vadd.f32 %v2377, %v2599
        %v2601 = vpop.f32.mrb[0].mxu0
        %v2602 = vadd.f32 %v2379, %v2601
        %v2603 = vpop.f32.mrb[0].mxu0
        %v2604 = vadd.f32 %v2381, %v2603
        %2605 = vmatprep.mubr.bf16.mxu0 %v692
        %2606 = vmatmul.mubr.bf16.gmra.mrb[0].mxu0 %v691
        %v2607 = vpop.f32.mrb[0].mxu0
        %v2608 = vadd.f32 %v2385, %v2607
        %v2609 = vpop.f32.mrb[0].mxu0
        %v2610 = vadd.f32 %v2387, %v2609
        %v2611 = vpop.f32.mrb[0].mxu0
        %v2612 = vadd.f32 %v2389, %v2611
        %v2613 = vpop.f32.mrb[0].mxu0
        %v2614 = vadd.f32 %v2391, %v2613
        %2615 = vmatprep.mubr.bf16.mxu0 %v699
        %2616 = vmatmul.mubr.bf16.gmra.mrb[0].mxu0 %v698
        %v2617 = vpop.f32.mrb[0].mxu0
        %v2618 = vadd.f32 %v2395, %v2617
        %v2619 = vpop.f32.mrb[0].mxu0
        %v2620 = vadd.f32 %v2397, %v2619
        %v2621 = vpop.f32.mrb[0].mxu0
        %v2622 = vadd.f32 %v2399, %v2621
        %v2623 = vpop.f32.mrb[0].mxu0
        %v2624 = vadd.f32 %v2401, %v2623
        %2625 = vdwg.mxu0
        %2626 = vmatprep.subr.bf16.mxu0 %v1700
        %2627 = vmatpush1.bf16.msra.mxu0 %v1699
        %2628 = vmatprep.subr.bf16.mxu0 0
        %2629 = vmatpush1.bf16.msra.mxu0 0
        %2630 = vmatprep.subr.bf16.mxu0 0
        %2631 = vmatpush1.bf16.msra.mxu0 0
        %2632 = vmatprep.subr.bf16.mxu0 0
        %2633 = vmatpush1.bf16.msra.mxu0 0
        %2634 = vmatprep.subr.bf16.mxu0 0
        %2635 = vmatpush1.bf16.msra.mxu0 0
        %2636 = vmatprep.subr.bf16.mxu0 0
        %2637 = vmatpush1.bf16.msra.mxu0 0
        %2638 = vmatprep.subr.bf16.mxu0 0
        %2639 = vmatpush1.bf16.msra.mxu0 0
        %2640 = vmatprep.subr.bf16.mxu0 0
        %2641 = vmatpush1.bf16.msra.mxu0 0
        %2642 = vmatprep.subr.bf16.mxu0 0
        %2643 = vmatpush1.bf16.msra.mxu0 0
        %2644 = vmatprep.subr.bf16.mxu0 0
        %2645 = vmatpush1.bf16.msra.mxu0 0
        %2646 = vmatprep.subr.bf16.mxu0 0
        %2647 = vmatpush1.bf16.msra.mxu0 0
        %2648 = vmatprep.subr.bf16.mxu0 0
        %2649 = vmatpush1.bf16.msra.mxu0 0
        %2650 = vmatprep.subr.bf16.mxu0 0
        %2651 = vmatpush1.bf16.msra.mxu0 0
        %2652 = vmatprep.subr.bf16.mxu0 0
        %2653 = vmatpush1.bf16.msra.mxu0 0
        %2654 = vmatprep.subr.bf16.mxu0 0
        %2655 = vmatpush1.bf16.msra.mxu0 0
        %2656 = vmatprep.subr.bf16.mxu0 0
        %2657 = vmatpush1.bf16.msra.mxu0 0
        %2658 = vmatprep.mubr.bf16.mxu0 0
        %2659 = vmatmul.mubr.bf16.gmra.mrb[0].mxu0 %v1901
        %v2660 = vpop.f32.mrb[0].mxu0
        %v2661 = vadd.f32 %v2438, %v2660
        %v2662 = vpop.f32.mrb[0].mxu0
        %v2663 = vadd.f32 %v2440, %v2662
        %v2664 = vpop.f32.mrb[0].mxu0
        %v2665 = vadd.f32 %v2442, %v2664
        %v2666 = vpop.f32.mrb[0].mxu0
        %v2667 = vadd.f32 %v2444, %v2666
        %2668 = vmatprep.mubr.bf16.mxu0 0
        %2669 = vmatmul.mubr.bf16.gmra.mrb[0].mxu0 %v1904
        %v2670 = vpop.f32.mrb[0].mxu0
        %v2671 = vadd.f32 %v2448, %v2670
        %v2672 = vpop.f32.mrb[0].mxu0
        %v2673 = vadd.f32 %v2450, %v2672
        %v2674 = vpop.f32.mrb[0].mxu0
        %v2675 = vadd.f32 %v2452, %v2674
        %v2676 = vpop.f32.mrb[0].mxu0
        %v2677 = vadd.f32 %v2454, %v2676
        %2678 = vmatprep.mubr.bf16.mxu0 0
        %2679 = vmatmul.mubr.bf16.gmra.mrb[0].mxu0 %v1907
        %v2680 = vpop.f32.mrb[0].mxu0
        %v2681 = vadd.f32 %v2458, %v2680
        %v2682 = vpop.f32.mrb[0].mxu0
        %v2683 = vadd.f32 %v2460, %v2682
        %v2684 = vpop.f32.mrb[0].mxu0
        %v2685 = vadd.f32 %v2462, %v2684
        %v2686 = vpop.f32.mrb[0].mxu0
        %v2687 = vadd.f32 %v2464, %v2686
        %2688 = vmatprep.mubr.bf16.mxu0 0
        %2689 = vmatmul.mubr.bf16.gmra.mrb[0].mxu0 %v1910
        %v2690 = vpop.f32.mrb[0].mxu0
        %v2691 = vadd.f32 %v2468, %v2690
        %v2692 = vpop.f32.mrb[0].mxu0
        %v2693 = vadd.f32 %v2470, %v2692
        %v2694 = vpop.f32.mrb[0].mxu0
        %v2695 = vadd.f32 %v2472, %v2694
        %v2696 = vpop.f32.mrb[0].mxu0
        %v2697 = vadd.f32 %v2474, %v2696
        %2698 = vmatprep.mubr.bf16.mxu0 0
        %2699 = vmatmul.mubr.bf16.gmra.mrb[0].mxu0 %v1913
        %v2700 = vpop.f32.mrb[0].mxu0
        %v2701 = vadd.f32 %v2478, %v2700
        %v2702 = vpop.f32.mrb[0].mxu0
        %v2703 = vadd.f32 %v2480, %v2702
        %v2704 = vpop.f32.mrb[0].mxu0
        %v2705 = vadd.f32 %v2482, %v2704
        %v2706 = vpop.f32.mrb[0].mxu0
        %v2707 = vadd.f32 %v2484, %v2706
        %2708 = vmatprep.mubr.bf16.mxu0 0
        %2709 = vmatmul.mubr.bf16.gmra.mrb[0].mxu0 %v1916
        %v2710 = vpop.f32.mrb[0].mxu0
        %v2711 = vadd.f32 %v2488, %v2710
        %v2712 = vpop.f32.mrb[0].mxu0
        %v2713 = vadd.f32 %v2490, %v2712
        %v2714 = vpop.f32.mrb[0].mxu0
        %v2715 = vadd.f32 %v2492, %v2714
        %v2716 = vpop.f32.mrb[0].mxu0
        %v2717 = vadd.f32 %v2494, %v2716
        %2718 = vmatprep.mubr.bf16.mxu0 0
        %2719 = vmatmul.mubr.bf16.gmra.mrb[0].mxu0 %v1919
        %v2720 = vpop.f32.mrb[0].mxu0
        %v2721 = vadd.f32 %v2498, %v2720
        %v2722 = vpop.f32.mrb[0].mxu0
        %v2723 = vadd.f32 %v2500, %v2722
        %v2724 = vpop.f32.mrb[0].mxu0
        %v2725 = vadd.f32 %v2502, %v2724
        %v2726 = vpop.f32.mrb[0].mxu0
        %v2727 = vadd.f32 %v2504, %v2726
        %2728 = vmatprep.mubr.bf16.mxu0 0
        %2729 = vmatmul.mubr.bf16.gmra.mrb[0].mxu0 %v1922
        %v2730 = vpop.f32.mrb[0].mxu0
        %v2731 = vadd.f32 %v2508, %v2730
        %v2732 = vpop.f32.mrb[0].mxu0
        %v2733 = vadd.f32 %v2510, %v2732
        %v2734 = vpop.f32.mrb[0].mxu0
        %v2735 = vadd.f32 %v2512, %v2734
        %v2736 = vpop.f32.mrb[0].mxu0
        %v2737 = vadd.f32 %v2514, %v2736
        %2738 = vmatprep.mubr.bf16.mxu0 0
        %2739 = vmatmul.mubr.bf16.gmra.mrb[0].mxu0 %v1925
        %v2740 = vpop.f32.mrb[0].mxu0
        %v2741 = vadd.f32 %v2518, %v2740
        %v2742 = vpop.f32.mrb[0].mxu0
        %v2743 = vadd.f32 %v2520, %v2742
        %v2744 = vpop.f32.mrb[0].mxu0
        %v2745 = vadd.f32 %v2522, %v2744
        %v2746 = vpop.f32.mrb[0].mxu0
        %v2747 = vadd.f32 %v2524, %v2746
        %2748 = vmatprep.mubr.bf16.mxu0 0
        %2749 = vmatmul.mubr.bf16.gmra.mrb[0].mxu0 %v1928
        %v2750 = vpop.f32.mrb[0].mxu0
        %v2751 = vadd.f32 %v2528, %v2750
        %v2752 = vpop.f32.mrb[0].mxu0
        %v2753 = vadd.f32 %v2530, %v2752
        %v2754 = vpop.f32.mrb[0].mxu0
        %v2755 = vadd.f32 %v2532, %v2754
        %v2756 = vpop.f32.mrb[0].mxu0
        %v2757 = vadd.f32 %v2534, %v2756
        %2758 = vmatprep.mubr.bf16.mxu0 0
        %2759 = vmatmul.mubr.bf16.gmra.mrb[0].mxu0 %v1931
        %v2760 = vpop.f32.mrb[0].mxu0
        %v2761 = vadd.f32 %v2538, %v2760
        %v2762 = vpop.f32.mrb[0].mxu0
        %v2763 = vadd.f32 %v2540, %v2762
        %v2764 = vpop.f32.mrb[0].mxu0
        %v2765 = vadd.f32 %v2542, %v2764
        %v2766 = vpop.f32.mrb[0].mxu0
        %v2767 = vadd.f32 %v2544, %v2766
        %2768 = vmatprep.mubr.bf16.mxu0 0
        %2769 = vmatmul.mubr.bf16.gmra.mrb[0].mxu0 %v1934
        %v2770 = vpop.f32.mrb[0].mxu0
        %v2771 = vadd.f32 %v2548, %v2770
        %v2772 = vpop.f32.mrb[0].mxu0
        %v2773 = vadd.f32 %v2550, %v2772
        %v2774 = vpop.f32.mrb[0].mxu0
        %v2775 = vadd.f32 %v2552, %v2774
        %v2776 = vpop.f32.mrb[0].mxu0
        %v2777 = vadd.f32 %v2554, %v2776
        %2778 = vmatprep.mubr.bf16.mxu0 0
        %2779 = vmatmul.mubr.bf16.gmra.mrb[0].mxu0 %v1937
        %v2780 = vpop.f32.mrb[0].mxu0
        %v2781 = vadd.f32 %v2558, %v2780
        %v2782 = vpop.f32.mrb[0].mxu0
        %v2783 = vadd.f32 %v2560, %v2782
        %v2784 = vpop.f32.mrb[0].mxu0
        %v2785 = vadd.f32 %v2562, %v2784
        %v2786 = vpop.f32.mrb[0].mxu0
        %v2787 = vadd.f32 %v2564, %v2786
        %2788 = vmatprep.mubr.bf16.mxu0 0
        %2789 = vmatmul.mubr.bf16.gmra.mrb[0].mxu0 %v1940
        %v2790 = vpop.f32.mrb[0].mxu0
        %v2791 = vadd.f32 %v2568, %v2790
        %v2792 = vpop.f32.mrb[0].mxu0
        %v2793 = vadd.f32 %v2570, %v2792
        %v2794 = vpop.f32.mrb[0].mxu0
        %v2795 = vadd.f32 %v2572, %v2794
        %v2796 = vpop.f32.mrb[0].mxu0
        %v2797 = vadd.f32 %v2574, %v2796
        %2798 = vmatprep.mubr.bf16.mxu0 0
        %2799 = vmatmul.mubr.bf16.gmra.mrb[0].mxu0 %v1943
        %v2800 = vpop.f32.mrb[0].mxu0
        %v2801 = vadd.f32 %v2578, %v2800
        %v2802 = vpop.f32.mrb[0].mxu0
        %v2803 = vadd.f32 %v2580, %v2802
        %v2804 = vpop.f32.mrb[0].mxu0
        %v2805 = vadd.f32 %v2582, %v2804
        %v2806 = vpop.f32.mrb[0].mxu0
        %v2807 = vadd.f32 %v2584, %v2806
        %2808 = vmatprep.mubr.bf16.mxu0 0
        %2809 = vmatmul.mubr.bf16.gmra.mrb[0].mxu0 %v1946
        %v2810 = vpop.f32.mrb[0].mxu0
        %v2811 = vadd.f32 %v2588, %v2810
        %v2812 = vpop.f32.mrb[0].mxu0
        %v2813 = vadd.f32 %v2590, %v2812
        %v2814 = vpop.f32.mrb[0].mxu0
        %v2815 = vadd.f32 %v2592, %v2814
        %v2816 = vpop.f32.mrb[0].mxu0
        %v2817 = vadd.f32 %v2594, %v2816
        %2818 = vmatprep.mubr.bf16.mxu0 0
        %2819 = vmatmul.mubr.bf16.gmra.mrb[0].mxu0 %v1949
        %v2820 = vpop.f32.mrb[0].mxu0
        %v2821 = vadd.f32 %v2598, %v2820
        %v2822 = vpop.f32.mrb[0].mxu0
        %v2823 = vadd.f32 %v2600, %v2822
        %v2824 = vpop.f32.mrb[0].mxu0
        %v2825 = vadd.f32 %v2602, %v2824
        %v2826 = vpop.f32.mrb[0].mxu0
        %v2827 = vadd.f32 %v2604, %v2826
        %2828 = vmatprep.mubr.bf16.mxu0 0
        %2829 = vmatmul.mubr.bf16.gmra.mrb[0].mxu0 %v1952
        %v2830 = vpop.f32.mrb[0].mxu0
        %v2831 = vadd.f32 %v2608, %v2830
        %v2832 = vpop.f32.mrb[0].mxu0
        %v2833 = vadd.f32 %v2610, %v2832
        %v2834 = vpop.f32.mrb[0].mxu0
        %v2835 = vadd.f32 %v2612, %v2834
        %v2836 = vpop.f32.mrb[0].mxu0
        %v2837 = vadd.f32 %v2614, %v2836
        %2838 = vmatprep.mubr.bf16.mxu0 0
        %2839 = vmatmul.mubr.bf16.gmra.mrb[0].mxu0 %v1955
        %v2840 = vpop.f32.mrb[0].mxu0
        %v2841 = vadd.f32 %v2618, %v2840
        %v2842 = vpop.f32.mrb[0].mxu0
        %v2843 = vadd.f32 %v2620, %v2842
        %v2844 = vpop.f32.mrb[0].mxu0
        %v2845 = vadd.f32 %v2622, %v2844
        %v2846 = vpop.f32.mrb[0].mxu0
        %v2847 = vadd.f32 %v2624, %v2846
        %2848 = vdwg.mxu0
        %2849 = vmatprep.subr.bf16.mxu0 %v1510
        %2850 = vmatpush1.bf16.msra.mxu0 %v1509
        %2851 = vmatprep.subr.bf16.mxu0 %v1514
        %2852 = vmatpush1.bf16.msra.mxu0 %v1513
        %2853 = vmatprep.subr.bf16.mxu0 %v1518
        %2854 = vmatpush1.bf16.msra.mxu0 %v1517
        %2855 = vmatprep.subr.bf16.mxu0 %v1522
        %2856 = vmatpush1.bf16.msra.mxu0 %v1521
        %2857 = vmatprep.subr.bf16.mxu0 %v1526
        %2858 = vmatpush1.bf16.msra.mxu0 %v1525
        %2859 = vmatprep.subr.bf16.mxu0 %v1530
        %2860 = vmatpush1.bf16.msra.mxu0 %v1529
        %2861 = vmatprep.subr.bf16.mxu0 %v1534
        %2862 = vmatpush1.bf16.msra.mxu0 %v1533
        %2863 = vmatprep.subr.bf16.mxu0 %v1538
        %2864 = vmatpush1.bf16.msra.mxu0 %v1537
        %2865 = vmatprep.subr.bf16.mxu0 %v1542
        %2866 = vmatpush1.bf16.msra.mxu0 %v1541
        %2867 = vmatprep.subr.bf16.mxu0 %v1546
        %2868 = vmatpush1.bf16.msra.mxu0 %v1545
        %2869 = vmatprep.subr.bf16.mxu0 %v1550
        %2870 = vmatpush1.bf16.msra.mxu0 %v1549
        %2871 = vmatprep.subr.bf16.mxu0 %v1554
        %2872 = vmatpush1.bf16.msra.mxu0 %v1553
        %2873 = vmatprep.subr.bf16.mxu0 %v1558
        %2874 = vmatpush1.bf16.msra.mxu0 %v1557
        %2875 = vmatprep.subr.bf16.mxu0 %v1562
        %2876 = vmatpush1.bf16.msra.mxu0 %v1561
        %2877 = vmatprep.subr.bf16.mxu0 %v1566
        %2878 = vmatpush1.bf16.msra.mxu0 %v1565
        %2879 = vmatprep.subr.bf16.mxu0 %v1570
        %2880 = vmatpush1.bf16.msra.mxu0 %v1569
        %2881 = vmatprep.mubr.bf16.mxu0 %v569
        %2882 = vmatmul.mubr.bf16.gmra.mrb[0].mxu0 %v568
        %v2883 = vpop.f32.mrb[0].mxu0
        %v2884 = vadd.f32 %v910, %v2883
        %v2885 = vpop.f32.mrb[0].mxu0
        %v2886 = vadd.f32 %v914, %v2885
        %v2887 = vpop.f32.mrb[0].mxu0
        %v2888 = vadd.f32 %v910, %v2887
        %v2889 = vpop.f32.mrb[0].mxu0
        %v2890 = vadd.f32 %v914, %v2889
        %2891 = vmatprep.mubr.bf16.mxu0 %v576
        %2892 = vmatmul.mubr.bf16.gmra.mrb[0].mxu0 %v575
        %v2893 = vpop.f32.mrb[0].mxu0
        %v2894 = vadd.f32 %v910, %v2893
        %v2895 = vpop.f32.mrb[0].mxu0
        %v2896 = vadd.f32 %v914, %v2895
        %v2897 = vpop.f32.mrb[0].mxu0
        %v2898 = vadd.f32 %v910, %v2897
        %v2899 = vpop.f32.mrb[0].mxu0
        %v2900 = vadd.f32 %v914, %v2899
        %2901 = vmatprep.mubr.bf16.mxu0 %v583
        %2902 = vmatmul.mubr.bf16.gmra.mrb[0].mxu0 %v582
        %v2903 = vpop.f32.mrb[0].mxu0
        %v2904 = vadd.f32 %v910, %v2903
        %v2905 = vpop.f32.mrb[0].mxu0
        %v2906 = vadd.f32 %v914, %v2905
        %v2907 = vpop.f32.mrb[0].mxu0
        %v2908 = vadd.f32 %v910, %v2907
        %v2909 = vpop.f32.mrb[0].mxu0
        %v2910 = vadd.f32 %v914, %v2909
        %2911 = vmatprep.mubr.bf16.mxu0 %v590
        %2912 = vmatmul.mubr.bf16.gmra.mrb[0].mxu0 %v589
        %v2913 = vpop.f32.mrb[0].mxu0
        %v2914 = vadd.f32 %v910, %v2913
        %v2915 = vpop.f32.mrb[0].mxu0
        %v2916 = vadd.f32 %v914, %v2915
        %v2917 = vpop.f32.mrb[0].mxu0
        %v2918 = vadd.f32 %v910, %v2917
        %v2919 = vpop.f32.mrb[0].mxu0
        %v2920 = vadd.f32 %v914, %v2919
        %2921 = vmatprep.mubr.bf16.mxu0 %v597
        %2922 = vmatmul.mubr.bf16.gmra.mrb[0].mxu0 %v596
        %v2923 = vpop.f32.mrb[0].mxu0
        %v2924 = vadd.f32 %v910, %v2923
        %v2925 = vpop.f32.mrb[0].mxu0
        %v2926 = vadd.f32 %v914, %v2925
        %v2927 = vpop.f32.mrb[0].mxu0
        %v2928 = vadd.f32 %v910, %v2927
        %v2929 = vpop.f32.mrb[0].mxu0
        %v2930 = vadd.f32 %v914, %v2929
        %2931 = vmatprep.mubr.bf16.mxu0 %v604
        %2932 = vmatmul.mubr.bf16.gmra.mrb[0].mxu0 %v603
        %v2933 = vpop.f32.mrb[0].mxu0
        %v2934 = vadd.f32 %v910, %v2933
        %v2935 = vpop.f32.mrb[0].mxu0
        %v2936 = vadd.f32 %v914, %v2935
        %v2937 = vpop.f32.mrb[0].mxu0
        %v2938 = vadd.f32 %v910, %v2937
        %v2939 = vpop.f32.mrb[0].mxu0
        %v2940 = vadd.f32 %v914, %v2939
        %2941 = vmatprep.mubr.bf16.mxu0 %v611
        %2942 = vmatmul.mubr.bf16.gmra.mrb[0].mxu0 %v610
        %v2943 = vpop.f32.mrb[0].mxu0
        %v2944 = vadd.f32 %v910, %v2943
        %v2945 = vpop.f32.mrb[0].mxu0
        %v2946 = vadd.f32 %v914, %v2945
        %v2947 = vpop.f32.mrb[0].mxu0
        %v2948 = vadd.f32 %v910, %v2947
        %v2949 = vpop.f32.mrb[0].mxu0
        %v2950 = vadd.f32 %v914, %v2949
        %2951 = vmatprep.mubr.bf16.mxu0 %v618
        %2952 = vmatmul.mubr.bf16.gmra.mrb[0].mxu0 %v617
        %v2953 = vpop.f32.mrb[0].mxu0
        %v2954 = vadd.f32 %v910, %v2953
        %v2955 = vpop.f32.mrb[0].mxu0
        %v2956 = vadd.f32 %v914, %v2955
        %v2957 = vpop.f32.mrb[0].mxu0
        %v2958 = vadd.f32 %v910, %v2957
        %v2959 = vpop.f32.mrb[0].mxu0
        %v2960 = vadd.f32 %v914, %v2959
        %2961 = vmatprep.mubr.bf16.mxu0 %v625
        %2962 = vmatmul.mubr.bf16.gmra.mrb[0].mxu0 %v624
        %v2963 = vpop.f32.mrb[0].mxu0
        %v2964 = vadd.f32 %v910, %v2963
        %v2965 = vpop.f32.mrb[0].mxu0
        %v2966 = vadd.f32 %v914, %v2965
        %v2967 = vpop.f32.mrb[0].mxu0
        %v2968 = vadd.f32 %v910, %v2967
        %v2969 = vpop.f32.mrb[0].mxu0
        %v2970 = vadd.f32 %v914, %v2969
        %2971 = vmatprep.mubr.bf16.mxu0 %v632
        %2972 = vmatmul.mubr.bf16.gmra.mrb[0].mxu0 %v631
        %v2973 = vpop.f32.mrb[0].mxu0
        %v2974 = vadd.f32 %v910, %v2973
        %v2975 = vpop.f32.mrb[0].mxu0
        %v2976 = vadd.f32 %v914, %v2975
        %v2977 = vpop.f32.mrb[0].mxu0
        %v2978 = vadd.f32 %v910, %v2977
        %v2979 = vpop.f32.mrb[0].mxu0
        %v2980 = vadd.f32 %v914, %v2979
        %2981 = vmatprep.mubr.bf16.mxu0 %v639
        %2982 = vmatmul.mubr.bf16.gmra.mrb[0].mxu0 %v638
        %v2983 = vpop.f32.mrb[0].mxu0
        %v2984 = vadd.f32 %v910, %v2983
        %v2985 = vpop.f32.mrb[0].mxu0
        %v2986 = vadd.f32 %v914, %v2985
        %v2987 = vpop.f32.mrb[0].mxu0
        %v2988 = vadd.f32 %v910, %v2987
        %v2989 = vpop.f32.mrb[0].mxu0
        %v2990 = vadd.f32 %v914, %v2989
        %2991 = vmatprep.mubr.bf16.mxu0 %v646
        %2992 = vmatmul.mubr.bf16.gmra.mrb[0].mxu0 %v645
        %v2993 = vpop.f32.mrb[0].mxu0
        %v2994 = vadd.f32 %v910, %v2993
        %v2995 = vpop.f32.mrb[0].mxu0
        %v2996 = vadd.f32 %v914, %v2995
        %v2997 = vpop.f32.mrb[0].mxu0
        %v2998 = vadd.f32 %v910, %v2997
        %v2999 = vpop.f32.mrb[0].mxu0
        %v3000 = vadd.f32 %v914, %v2999
        %3001 = vmatprep.mubr.bf16.mxu0 %v653
        %3002 = vmatmul.mubr.bf16.gmra.mrb[0].mxu0 %v652
        %v3003 = vpop.f32.mrb[0].mxu0
        %v3004 = vadd.f32 %v910, %v3003
        %v3005 = vpop.f32.mrb[0].mxu0
        %v3006 = vadd.f32 %v914, %v3005
        %v3007 = vpop.f32.mrb[0].mxu0
        %v3008 = vadd.f32 %v910, %v3007
        %v3009 = vpop.f32.mrb[0].mxu0
        %v3010 = vadd.f32 %v914, %v3009
        %3011 = vmatprep.mubr.bf16.mxu0 %v660
        %3012 = vmatmul.mubr.bf16.gmra.mrb[0].mxu0 %v659
        %v3013 = vpop.f32.mrb[0].mxu0
        %v3014 = vadd.f32 %v910, %v3013
        %v3015 = vpop.f32.mrb[0].mxu0
        %v3016 = vadd.f32 %v914, %v3015
        %v3017 = vpop.f32.mrb[0].mxu0
        %v3018 = vadd.f32 %v910, %v3017
        %v3019 = vpop.f32.mrb[0].mxu0
        %v3020 = vadd.f32 %v914, %v3019
        %3021 = vmatprep.mubr.bf16.mxu0 %v667
        %3022 = vmatmul.mubr.bf16.gmra.mrb[0].mxu0 %v666
        %v3023 = vpop.f32.mrb[0].mxu0
        %v3024 = vadd.f32 %v910, %v3023
        %v3025 = vpop.f32.mrb[0].mxu0
        %v3026 = vadd.f32 %v914, %v3025
        %v3027 = vpop.f32.mrb[0].mxu0
        %v3028 = vadd.f32 %v910, %v3027
        %v3029 = vpop.f32.mrb[0].mxu0
        %v3030 = vadd.f32 %v914, %v3029
        %3031 = vmatprep.mubr.bf16.mxu0 %v674
        %3032 = vmatmul.mubr.bf16.gmra.mrb[0].mxu0 %v673
        %v3033 = vpop.f32.mrb[0].mxu0
        %v3034 = vadd.f32 %v910, %v3033
        %v3035 = vpop.f32.mrb[0].mxu0
        %v3036 = vadd.f32 %v914, %v3035
        %v3037 = vpop.f32.mrb[0].mxu0
        %v3038 = vadd.f32 %v910, %v3037
        %v3039 = vpop.f32.mrb[0].mxu0
        %v3040 = vadd.f32 %v914, %v3039
        %3041 = vmatprep.mubr.bf16.mxu0 %v681
        %3042 = vmatmul.mubr.bf16.gmra.mrb[0].mxu0 %v680
        %v3043 = vpop.f32.mrb[0].mxu0
        %v3044 = vadd.f32 %v910, %v3043
        %v3045 = vpop.f32.mrb[0].mxu0
        %v3046 = vadd.f32 %v914, %v3045
        %v3047 = vpop.f32.mrb[0].mxu0
        %v3048 = vadd.f32 %v910, %v3047
        %v3049 = vpop.f32.mrb[0].mxu0
        %v3050 = vadd.f32 %v914, %v3049
        %3051 = vmatprep.mubr.bf16.mxu0 %v688
        %3052 = vmatmul.mubr.bf16.gmra.mrb[0].mxu0 %v687
        %v3053 = vpop.f32.mrb[0].mxu0
        %v3054 = vadd.f32 %v910, %v3053
        %v3055 = vpop.f32.mrb[0].mxu0
        %v3056 = vadd.f32 %v914, %v3055
        %v3057 = vpop.f32.mrb[0].mxu0
        %v3058 = vadd.f32 %v910, %v3057
        %v3059 = vpop.f32.mrb[0].mxu0
        %v3060 = vadd.f32 %v914, %v3059
        %3061 = vmatprep.mubr.bf16.mxu0 %v695
        %3062 = vmatmul.mubr.bf16.gmra.mrb[0].mxu0 %v694
        %v3063 = vpop.f32.mrb[0].mxu0
        %v3064 = vadd.f32 %v910, %v3063
        %v3065 = vpop.f32.mrb[0].mxu0
        %v3066 = vadd.f32 %v914, %v3065
        %v3067 = vpop.f32.mrb[0].mxu0
        %v3068 = vadd.f32 %v910, %v3067
        %v3069 = vpop.f32.mrb[0].mxu0
        %v3070 = vadd.f32 %v914, %v3069
        %3071 = vdwg.mxu0
        %3072 = vmatprep.subr.bf16.mxu0 %v1574
        %3073 = vmatpush1.bf16.msra.mxu0 %v1573
        %3074 = vmatprep.subr.bf16.mxu0 %v1578
        %3075 = vmatpush1.bf16.msra.mxu0 %v1577
        %3076 = vmatprep.subr.bf16.mxu0 %v1582
        %3077 = vmatpush1.bf16.msra.mxu0 %v1581
        %3078 = vmatprep.subr.bf16.mxu0 %v1586
        %3079 = vmatpush1.bf16.msra.mxu0 %v1585
        %3080 = vmatprep.subr.bf16.mxu0 %v1590
        %3081 = vmatpush1.bf16.msra.mxu0 %v1589
        %3082 = vmatprep.subr.bf16.mxu0 %v1594
        %3083 = vmatpush1.bf16.msra.mxu0 %v1593
        %3084 = vmatprep.subr.bf16.mxu0 %v1598
        %3085 = vmatpush1.bf16.msra.mxu0 %v1597
        %3086 = vmatprep.subr.bf16.mxu0 %v1602
        %3087 = vmatpush1.bf16.msra.mxu0 %v1601
        %3088 = vmatprep.subr.bf16.mxu0 %v1606
        %3089 = vmatpush1.bf16.msra.mxu0 %v1605
        %3090 = vmatprep.subr.bf16.mxu0 %v1610
        %3091 = vmatpush1.bf16.msra.mxu0 %v1609
        %3092 = vmatprep.subr.bf16.mxu0 %v1614
        %3093 = vmatpush1.bf16.msra.mxu0 %v1613
        %3094 = vmatprep.subr.bf16.mxu0 %v1618
        %3095 = vmatpush1.bf16.msra.mxu0 %v1617
        %3096 = vmatprep.subr.bf16.mxu0 %v1622
        %3097 = vmatpush1.bf16.msra.mxu0 %v1621
        %3098 = vmatprep.subr.bf16.mxu0 %v1626
        %3099 = vmatpush1.bf16.msra.mxu0 %v1625
        %3100 = vmatprep.subr.bf16.mxu0 %v1630
        %3101 = vmatpush1.bf16.msra.mxu0 %v1629
        %3102 = vmatprep.subr.bf16.mxu0 %v1634
        %3103 = vmatpush1.bf16.msra.mxu0 %v1633
        %3104 = vmatprep.mubr.bf16.mxu0 %v571
        %3105 = vmatmul.mubr.bf16.gmra.mrb[0].mxu0 %v570
        %v3106 = vpop.f32.mrb[0].mxu0
        %v3107 = vadd.f32 %v2884, %v3106
        %v3108 = vpop.f32.mrb[0].mxu0
        %v3109 = vadd.f32 %v2886, %v3108
        %v3110 = vpop.f32.mrb[0].mxu0
        %v3111 = vadd.f32 %v2888, %v3110
        %v3112 = vpop.f32.mrb[0].mxu0
        %v3113 = vadd.f32 %v2890, %v3112
        %3114 = vmatprep.mubr.bf16.mxu0 %v578
        %3115 = vmatmul.mubr.bf16.gmra.mrb[0].mxu0 %v577
        %v3116 = vpop.f32.mrb[0].mxu0
        %v3117 = vadd.f32 %v2894, %v3116
        %v3118 = vpop.f32.mrb[0].mxu0
        %v3119 = vadd.f32 %v2896, %v3118
        %v3120 = vpop.f32.mrb[0].mxu0
        %v3121 = vadd.f32 %v2898, %v3120
        %v3122 = vpop.f32.mrb[0].mxu0
        %v3123 = vadd.f32 %v2900, %v3122
        %3124 = vmatprep.mubr.bf16.mxu0 %v585
        %3125 = vmatmul.mubr.bf16.gmra.mrb[0].mxu0 %v584
        %v3126 = vpop.f32.mrb[0].mxu0
        %v3127 = vadd.f32 %v2904, %v3126
        %v3128 = vpop.f32.mrb[0].mxu0
        %v3129 = vadd.f32 %v2906, %v3128
        %v3130 = vpop.f32.mrb[0].mxu0
        %v3131 = vadd.f32 %v2908, %v3130
        %v3132 = vpop.f32.mrb[0].mxu0
        %v3133 = vadd.f32 %v2910, %v3132
        %3134 = vmatprep.mubr.bf16.mxu0 %v592
        %3135 = vmatmul.mubr.bf16.gmra.mrb[0].mxu0 %v591
        %v3136 = vpop.f32.mrb[0].mxu0
        %v3137 = vadd.f32 %v2914, %v3136
        %v3138 = vpop.f32.mrb[0].mxu0
        %v3139 = vadd.f32 %v2916, %v3138
        %v3140 = vpop.f32.mrb[0].mxu0
        %v3141 = vadd.f32 %v2918, %v3140
        %v3142 = vpop.f32.mrb[0].mxu0
        %v3143 = vadd.f32 %v2920, %v3142
        %3144 = vmatprep.mubr.bf16.mxu0 %v599
        %3145 = vmatmul.mubr.bf16.gmra.mrb[0].mxu0 %v598
        %v3146 = vpop.f32.mrb[0].mxu0
        %v3147 = vadd.f32 %v2924, %v3146
        %v3148 = vpop.f32.mrb[0].mxu0
        %v3149 = vadd.f32 %v2926, %v3148
        %v3150 = vpop.f32.mrb[0].mxu0
        %v3151 = vadd.f32 %v2928, %v3150
        %v3152 = vpop.f32.mrb[0].mxu0
        %v3153 = vadd.f32 %v2930, %v3152
        %3154 = vmatprep.mubr.bf16.mxu0 %v606
        %3155 = vmatmul.mubr.bf16.gmra.mrb[0].mxu0 %v605
        %v3156 = vpop.f32.mrb[0].mxu0
        %v3157 = vadd.f32 %v2934, %v3156
        %v3158 = vpop.f32.mrb[0].mxu0
        %v3159 = vadd.f32 %v2936, %v3158
        %v3160 = vpop.f32.mrb[0].mxu0
        %v3161 = vadd.f32 %v2938, %v3160
        %v3162 = vpop.f32.mrb[0].mxu0
        %v3163 = vadd.f32 %v2940, %v3162
        %3164 = vmatprep.mubr.bf16.mxu0 %v613
        %3165 = vmatmul.mubr.bf16.gmra.mrb[0].mxu0 %v612
        %v3166 = vpop.f32.mrb[0].mxu0
        %v3167 = vadd.f32 %v2944, %v3166
        %v3168 = vpop.f32.mrb[0].mxu0
        %v3169 = vadd.f32 %v2946, %v3168
        %v3170 = vpop.f32.mrb[0].mxu0
        %v3171 = vadd.f32 %v2948, %v3170
        %v3172 = vpop.f32.mrb[0].mxu0
        %v3173 = vadd.f32 %v2950, %v3172
        %3174 = vmatprep.mubr.bf16.mxu0 %v620
        %3175 = vmatmul.mubr.bf16.gmra.mrb[0].mxu0 %v619
        %v3176 = vpop.f32.mrb[0].mxu0
        %v3177 = vadd.f32 %v2954, %v3176
        %v3178 = vpop.f32.mrb[0].mxu0
        %v3179 = vadd.f32 %v2956, %v3178
        %v3180 = vpop.f32.mrb[0].mxu0
        %v3181 = vadd.f32 %v2958, %v3180
        %v3182 = vpop.f32.mrb[0].mxu0
        %v3183 = vadd.f32 %v2960, %v3182
        %3184 = vmatprep.mubr.bf16.mxu0 %v627
        %3185 = vmatmul.mubr.bf16.gmra.mrb[0].mxu0 %v626
        %v3186 = vpop.f32.mrb[0].mxu0
        %v3187 = vadd.f32 %v2964, %v3186
        %v3188 = vpop.f32.mrb[0].mxu0
        %v3189 = vadd.f32 %v2966, %v3188
        %v3190 = vpop.f32.mrb[0].mxu0
        %v3191 = vadd.f32 %v2968, %v3190
        %v3192 = vpop.f32.mrb[0].mxu0
        %v3193 = vadd.f32 %v2970, %v3192
        %3194 = vmatprep.mubr.bf16.mxu0 %v634
        %3195 = vmatmul.mubr.bf16.gmra.mrb[0].mxu0 %v633
        %v3196 = vpop.f32.mrb[0].mxu0
        %v3197 = vadd.f32 %v2974, %v3196
        %v3198 = vpop.f32.mrb[0].mxu0
        %v3199 = vadd.f32 %v2976, %v3198
        %v3200 = vpop.f32.mrb[0].mxu0
        %v3201 = vadd.f32 %v2978, %v3200
        %v3202 = vpop.f32.mrb[0].mxu0
        %v3203 = vadd.f32 %v2980, %v3202
        %3204 = vmatprep.mubr.bf16.mxu0 %v641
        %3205 = vmatmul.mubr.bf16.gmra.mrb[0].mxu0 %v640
        %v3206 = vpop.f32.mrb[0].mxu0
        %v3207 = vadd.f32 %v2984, %v3206
        %v3208 = vpop.f32.mrb[0].mxu0
        %v3209 = vadd.f32 %v2986, %v3208
        %v3210 = vpop.f32.mrb[0].mxu0
        %v3211 = vadd.f32 %v2988, %v3210
        %v3212 = vpop.f32.mrb[0].mxu0
        %v3213 = vadd.f32 %v2990, %v3212
        %3214 = vmatprep.mubr.bf16.mxu0 %v648
        %3215 = vmatmul.mubr.bf16.gmra.mrb[0].mxu0 %v647
        %v3216 = vpop.f32.mrb[0].mxu0
        %v3217 = vadd.f32 %v2994, %v3216
        %v3218 = vpop.f32.mrb[0].mxu0
        %v3219 = vadd.f32 %v2996, %v3218
        %v3220 = vpop.f32.mrb[0].mxu0
        %v3221 = vadd.f32 %v2998, %v3220
        %v3222 = vpop.f32.mrb[0].mxu0
        %v3223 = vadd.f32 %v3000, %v3222
        %3224 = vmatprep.mubr.bf16.mxu0 %v655
        %3225 = vmatmul.mubr.bf16.gmra.mrb[0].mxu0 %v654
        %v3226 = vpop.f32.mrb[0].mxu0
        %v3227 = vadd.f32 %v3004, %v3226
        %v3228 = vpop.f32.mrb[0].mxu0
        %v3229 = vadd.f32 %v3006, %v3228
        %v3230 = vpop.f32.mrb[0].mxu0
        %v3231 = vadd.f32 %v3008, %v3230
        %v3232 = vpop.f32.mrb[0].mxu0
        %v3233 = vadd.f32 %v3010, %v3232
        %3234 = vmatprep.mubr.bf16.mxu0 %v662
        %3235 = vmatmul.mubr.bf16.gmra.mrb[0].mxu0 %v661
        %v3236 = vpop.f32.mrb[0].mxu0
        %v3237 = vadd.f32 %v3014, %v3236
        %v3238 = vpop.f32.mrb[0].mxu0
        %v3239 = vadd.f32 %v3016, %v3238
        %v3240 = vpop.f32.mrb[0].mxu0
        %v3241 = vadd.f32 %v3018, %v3240
        %v3242 = vpop.f32.mrb[0].mxu0
        %v3243 = vadd.f32 %v3020, %v3242
        %3244 = vmatprep.mubr.bf16.mxu0 %v669
        %3245 = vmatmul.mubr.bf16.gmra.mrb[0].mxu0 %v668
        %v3246 = vpop.f32.mrb[0].mxu0
        %v3247 = vadd.f32 %v3024, %v3246
        %v3248 = vpop.f32.mrb[0].mxu0
        %v3249 = vadd.f32 %v3026, %v3248
        %v3250 = vpop.f32.mrb[0].mxu0
        %v3251 = vadd.f32 %v3028, %v3250
        %v3252 = vpop.f32.mrb[0].mxu0
        %v3253 = vadd.f32 %v3030, %v3252
        %3254 = vmatprep.mubr.bf16.mxu0 %v676
        %3255 = vmatmul.mubr.bf16.gmra.mrb[0].mxu0 %v675
        %v3256 = vpop.f32.mrb[0].mxu0
        %v3257 = vadd.f32 %v3034, %v3256
        %v3258 = vpop.f32.mrb[0].mxu0
        %v3259 = vadd.f32 %v3036, %v3258
        %v3260 = vpop.f32.mrb[0].mxu0
        %v3261 = vadd.f32 %v3038, %v3260
        %v3262 = vpop.f32.mrb[0].mxu0
        %v3263 = vadd.f32 %v3040, %v3262
        %3264 = vmatprep.mubr.bf16.mxu0 %v683
        %3265 = vmatmul.mubr.bf16.gmra.mrb[0].mxu0 %v682
        %v3266 = vpop.f32.mrb[0].mxu0
        %v3267 = vadd.f32 %v3044, %v3266
        %v3268 = vpop.f32.mrb[0].mxu0
        %v3269 = vadd.f32 %v3046, %v3268
        %v3270 = vpop.f32.mrb[0].mxu0
        %v3271 = vadd.f32 %v3048, %v3270
        %v3272 = vpop.f32.mrb[0].mxu0
        %v3273 = vadd.f32 %v3050, %v3272
        %3274 = vmatprep.mubr.bf16.mxu0 %v690
        %3275 = vmatmul.mubr.bf16.gmra.mrb[0].mxu0 %v689
        %v3276 = vpop.f32.mrb[0].mxu0
        %v3277 = vadd.f32 %v3054, %v3276
        %v3278 = vpop.f32.mrb[0].mxu0
        %v3279 = vadd.f32 %v3056, %v3278
        %v3280 = vpop.f32.mrb[0].mxu0
        %v3281 = vadd.f32 %v3058, %v3280
        %v3282 = vpop.f32.mrb[0].mxu0
        %v3283 = vadd.f32 %v3060, %v3282
        %3284 = vmatprep.mubr.bf16.mxu0 %v697
        %3285 = vmatmul.mubr.bf16.gmra.mrb[0].mxu0 %v696
        %v3286 = vpop.f32.mrb[0].mxu0
        %v3287 = vadd.f32 %v3064, %v3286
        %v3288 = vpop.f32.mrb[0].mxu0
        %v3289 = vadd.f32 %v3066, %v3288
        %v3290 = vpop.f32.mrb[0].mxu0
        %v3291 = vadd.f32 %v3068, %v3290
        %v3292 = vpop.f32.mrb[0].mxu0
        %v3293 = vadd.f32 %v3070, %v3292
        %3294 = vdwg.mxu0
        %3295 = vmatprep.subr.bf16.mxu0 %v1638
        %3296 = vmatpush1.bf16.msra.mxu0 %v1637
        %3297 = vmatprep.subr.bf16.mxu0 %v1642
        %3298 = vmatpush1.bf16.msra.mxu0 %v1641
        %3299 = vmatprep.subr.bf16.mxu0 %v1646
        %3300 = vmatpush1.bf16.msra.mxu0 %v1645
        %3301 = vmatprep.subr.bf16.mxu0 %v1650
        %3302 = vmatpush1.bf16.msra.mxu0 %v1649
        %3303 = vmatprep.subr.bf16.mxu0 %v1654
        %3304 = vmatpush1.bf16.msra.mxu0 %v1653
        %3305 = vmatprep.subr.bf16.mxu0 %v1658
        %3306 = vmatpush1.bf16.msra.mxu0 %v1657
        %3307 = vmatprep.subr.bf16.mxu0 %v1662
        %3308 = vmatpush1.bf16.msra.mxu0 %v1661
        %3309 = vmatprep.subr.bf16.mxu0 %v1666
        %3310 = vmatpush1.bf16.msra.mxu0 %v1665
        %3311 = vmatprep.subr.bf16.mxu0 %v1670
        %3312 = vmatpush1.bf16.msra.mxu0 %v1669
        %3313 = vmatprep.subr.bf16.mxu0 %v1674
        %3314 = vmatpush1.bf16.msra.mxu0 %v1673
        %3315 = vmatprep.subr.bf16.mxu0 %v1678
        %3316 = vmatpush1.bf16.msra.mxu0 %v1677
        %3317 = vmatprep.subr.bf16.mxu0 %v1682
        %3318 = vmatpush1.bf16.msra.mxu0 %v1681
        %3319 = vmatprep.subr.bf16.mxu0 %v1686
        %3320 = vmatpush1.bf16.msra.mxu0 %v1685
        %3321 = vmatprep.subr.bf16.mxu0 %v1690
        %3322 = vmatpush1.bf16.msra.mxu0 %v1689
        %3323 = vmatprep.subr.bf16.mxu0 %v1694
        %3324 = vmatpush1.bf16.msra.mxu0 %v1693
        %3325 = vmatprep.subr.bf16.mxu0 %v1698
        %3326 = vmatpush1.bf16.msra.mxu0 %v1697
        %3327 = vmatprep.mubr.bf16.mxu0 %v573
        %3328 = vmatmul.mubr.bf16.gmra.mrb[0].mxu0 %v572
        %v3329 = vpop.f32.mrb[0].mxu0
        %v3330 = vadd.f32 %v3107, %v3329
        %v3331 = vpop.f32.mrb[0].mxu0
        %v3332 = vadd.f32 %v3109, %v3331
        %v3333 = vpop.f32.mrb[0].mxu0
        %v3334 = vadd.f32 %v3111, %v3333
        %v3335 = vpop.f32.mrb[0].mxu0
        %v3336 = vadd.f32 %v3113, %v3335
        %3337 = vmatprep.mubr.bf16.mxu0 %v580
        %3338 = vmatmul.mubr.bf16.gmra.mrb[0].mxu0 %v579
        %v3339 = vpop.f32.mrb[0].mxu0
        %v3340 = vadd.f32 %v3117, %v3339
        %v3341 = vpop.f32.mrb[0].mxu0
        %v3342 = vadd.f32 %v3119, %v3341
        %v3343 = vpop.f32.mrb[0].mxu0
        %v3344 = vadd.f32 %v3121, %v3343
        %v3345 = vpop.f32.mrb[0].mxu0
        %v3346 = vadd.f32 %v3123, %v3345
        %3347 = vmatprep.mubr.bf16.mxu0 %v587
        %3348 = vmatmul.mubr.bf16.gmra.mrb[0].mxu0 %v586
        %v3349 = vpop.f32.mrb[0].mxu0
        %v3350 = vadd.f32 %v3127, %v3349
        %v3351 = vpop.f32.mrb[0].mxu0
        %v3352 = vadd.f32 %v3129, %v3351
        %v3353 = vpop.f32.mrb[0].mxu0
        %v3354 = vadd.f32 %v3131, %v3353
        %v3355 = vpop.f32.mrb[0].mxu0
        %v3356 = vadd.f32 %v3133, %v3355
        %3357 = vmatprep.mubr.bf16.mxu0 %v594
        %3358 = vmatmul.mubr.bf16.gmra.mrb[0].mxu0 %v593
        %v3359 = vpop.f32.mrb[0].mxu0
        %v3360 = vadd.f32 %v3137, %v3359
        %v3361 = vpop.f32.mrb[0].mxu0
        %v3362 = vadd.f32 %v3139, %v3361
        %v3363 = vpop.f32.mrb[0].mxu0
        %v3364 = vadd.f32 %v3141, %v3363
        %v3365 = vpop.f32.mrb[0].mxu0
        %v3366 = vadd.f32 %v3143, %v3365
        %3367 = vmatprep.mubr.bf16.mxu0 %v601
        %3368 = vmatmul.mubr.bf16.gmra.mrb[0].mxu0 %v600
        %v3369 = vpop.f32.mrb[0].mxu0
        %v3370 = vadd.f32 %v3147, %v3369
        %v3371 = vpop.f32.mrb[0].mxu0
        %v3372 = vadd.f32 %v3149, %v3371
        %v3373 = vpop.f32.mrb[0].mxu0
        %v3374 = vadd.f32 %v3151, %v3373
        %v3375 = vpop.f32.mrb[0].mxu0
        %v3376 = vadd.f32 %v3153, %v3375
        %3377 = vmatprep.mubr.bf16.mxu0 %v608
        %3378 = vmatmul.mubr.bf16.gmra.mrb[0].mxu0 %v607
        %v3379 = vpop.f32.mrb[0].mxu0
        %v3380 = vadd.f32 %v3157, %v3379
        %v3381 = vpop.f32.mrb[0].mxu0
        %v3382 = vadd.f32 %v3159, %v3381
        %v3383 = vpop.f32.mrb[0].mxu0
        %v3384 = vadd.f32 %v3161, %v3383
        %v3385 = vpop.f32.mrb[0].mxu0
        %v3386 = vadd.f32 %v3163, %v3385
        %3387 = vmatprep.mubr.bf16.mxu0 %v615
        %3388 = vmatmul.mubr.bf16.gmra.mrb[0].mxu0 %v614
        %v3389 = vpop.f32.mrb[0].mxu0
        %v3390 = vadd.f32 %v3167, %v3389
        %v3391 = vpop.f32.mrb[0].mxu0
        %v3392 = vadd.f32 %v3169, %v3391
        %v3393 = vpop.f32.mrb[0].mxu0
        %v3394 = vadd.f32 %v3171, %v3393
        %v3395 = vpop.f32.mrb[0].mxu0
        %v3396 = vadd.f32 %v3173, %v3395
        %3397 = vmatprep.mubr.bf16.mxu0 %v622
        %3398 = vmatmul.mubr.bf16.gmra.mrb[0].mxu0 %v621
        %v3399 = vpop.f32.mrb[0].mxu0
        %v3400 = vadd.f32 %v3177, %v3399
        %v3401 = vpop.f32.mrb[0].mxu0
        %v3402 = vadd.f32 %v3179, %v3401
        %v3403 = vpop.f32.mrb[0].mxu0
        %v3404 = vadd.f32 %v3181, %v3403
        %v3405 = vpop.f32.mrb[0].mxu0
        %v3406 = vadd.f32 %v3183, %v3405
        %3407 = vmatprep.mubr.bf16.mxu0 %v629
        %3408 = vmatmul.mubr.bf16.gmra.mrb[0].mxu0 %v628
        %v3409 = vpop.f32.mrb[0].mxu0
        %v3410 = vadd.f32 %v3187, %v3409
        %v3411 = vpop.f32.mrb[0].mxu0
        %v3412 = vadd.f32 %v3189, %v3411
        %v3413 = vpop.f32.mrb[0].mxu0
        %v3414 = vadd.f32 %v3191, %v3413
        %v3415 = vpop.f32.mrb[0].mxu0
        %v3416 = vadd.f32 %v3193, %v3415
        %3417 = vmatprep.mubr.bf16.mxu0 %v636
        %3418 = vmatmul.mubr.bf16.gmra.mrb[0].mxu0 %v635
        %v3419 = vpop.f32.mrb[0].mxu0
        %v3420 = vadd.f32 %v3197, %v3419
        %v3421 = vpop.f32.mrb[0].mxu0
        %v3422 = vadd.f32 %v3199, %v3421
        %v3423 = vpop.f32.mrb[0].mxu0
        %v3424 = vadd.f32 %v3201, %v3423
        %v3425 = vpop.f32.mrb[0].mxu0
        %v3426 = vadd.f32 %v3203, %v3425
        %3427 = vmatprep.mubr.bf16.mxu0 %v643
        %3428 = vmatmul.mubr.bf16.gmra.mrb[0].mxu0 %v642
        %v3429 = vpop.f32.mrb[0].mxu0
        %v3430 = vadd.f32 %v3207, %v3429
        %v3431 = vpop.f32.mrb[0].mxu0
        %v3432 = vadd.f32 %v3209, %v3431
        %v3433 = vpop.f32.mrb[0].mxu0
        %v3434 = vadd.f32 %v3211, %v3433
        %v3435 = vpop.f32.mrb[0].mxu0
        %v3436 = vadd.f32 %v3213, %v3435
        %3437 = vmatprep.mubr.bf16.mxu0 %v650
        %3438 = vmatmul.mubr.bf16.gmra.mrb[0].mxu0 %v649
        %v3439 = vpop.f32.mrb[0].mxu0
        %v3440 = vadd.f32 %v3217, %v3439
        %v3441 = vpop.f32.mrb[0].mxu0
        %v3442 = vadd.f32 %v3219, %v3441
        %v3443 = vpop.f32.mrb[0].mxu0
        %v3444 = vadd.f32 %v3221, %v3443
        %v3445 = vpop.f32.mrb[0].mxu0
        %v3446 = vadd.f32 %v3223, %v3445
        %3447 = vmatprep.mubr.bf16.mxu0 %v657
        %3448 = vmatmul.mubr.bf16.gmra.mrb[0].mxu0 %v656
        %v3449 = vpop.f32.mrb[0].mxu0
        %v3450 = vadd.f32 %v3227, %v3449
        %v3451 = vpop.f32.mrb[0].mxu0
        %v3452 = vadd.f32 %v3229, %v3451
        %v3453 = vpop.f32.mrb[0].mxu0
        %v3454 = vadd.f32 %v3231, %v3453
        %v3455 = vpop.f32.mrb[0].mxu0
        %v3456 = vadd.f32 %v3233, %v3455
        %3457 = vmatprep.mubr.bf16.mxu0 %v664
        %3458 = vmatmul.mubr.bf16.gmra.mrb[0].mxu0 %v663
        %v3459 = vpop.f32.mrb[0].mxu0
        %v3460 = vadd.f32 %v3237, %v3459
        %v3461 = vpop.f32.mrb[0].mxu0
        %v3462 = vadd.f32 %v3239, %v3461
        %v3463 = vpop.f32.mrb[0].mxu0
        %v3464 = vadd.f32 %v3241, %v3463
        %v3465 = vpop.f32.mrb[0].mxu0
        %v3466 = vadd.f32 %v3243, %v3465
        %3467 = vmatprep.mubr.bf16.mxu0 %v671
        %3468 = vmatmul.mubr.bf16.gmra.mrb[0].mxu0 %v670
        %v3469 = vpop.f32.mrb[0].mxu0
        %v3470 = vadd.f32 %v3247, %v3469
        %v3471 = vpop.f32.mrb[0].mxu0
        %v3472 = vadd.f32 %v3249, %v3471
        %v3473 = vpop.f32.mrb[0].mxu0
        %v3474 = vadd.f32 %v3251, %v3473
        %v3475 = vpop.f32.mrb[0].mxu0
        %v3476 = vadd.f32 %v3253, %v3475
        %3477 = vmatprep.mubr.bf16.mxu0 %v678
        %3478 = vmatmul.mubr.bf16.gmra.mrb[0].mxu0 %v677
        %v3479 = vpop.f32.mrb[0].mxu0
        %v3480 = vadd.f32 %v3257, %v3479
        %v3481 = vpop.f32.mrb[0].mxu0
        %v3482 = vadd.f32 %v3259, %v3481
        %v3483 = vpop.f32.mrb[0].mxu0
        %v3484 = vadd.f32 %v3261, %v3483
        %v3485 = vpop.f32.mrb[0].mxu0
        %v3486 = vadd.f32 %v3263, %v3485
        %3487 = vmatprep.mubr.bf16.mxu0 %v685
        %3488 = vmatmul.mubr.bf16.gmra.mrb[0].mxu0 %v684
        %v3489 = vpop.f32.mrb[0].mxu0
        %v3490 = vadd.f32 %v3267, %v3489
        %v3491 = vpop.f32.mrb[0].mxu0
        %v3492 = vadd.f32 %v3269, %v3491
        %v3493 = vpop.f32.mrb[0].mxu0
        %v3494 = vadd.f32 %v3271, %v3493
        %v3495 = vpop.f32.mrb[0].mxu0
        %v3496 = vadd.f32 %v3273, %v3495
        %3497 = vmatprep.mubr.bf16.mxu0 %v692
        %3498 = vmatmul.mubr.bf16.gmra.mrb[0].mxu0 %v691
        %v3499 = vpop.f32.mrb[0].mxu0
        %v3500 = vadd.f32 %v3277, %v3499
        %v3501 = vpop.f32.mrb[0].mxu0
        %v3502 = vadd.f32 %v3279, %v3501
        %v3503 = vpop.f32.mrb[0].mxu0
        %v3504 = vadd.f32 %v3281, %v3503
        %v3505 = vpop.f32.mrb[0].mxu0
        %v3506 = vadd.f32 %v3283, %v3505
        %3507 = vmatprep.mubr.bf16.mxu0 %v699
        %3508 = vmatmul.mubr.bf16.gmra.mrb[0].mxu0 %v698
        %v3509 = vpop.f32.mrb[0].mxu0
        %v3510 = vadd.f32 %v3287, %v3509
        %v3511 = vpop.f32.mrb[0].mxu0
        %v3512 = vadd.f32 %v3289, %v3511
        %v3513 = vpop.f32.mrb[0].mxu0
        %v3514 = vadd.f32 %v3291, %v3513
        %v3515 = vpop.f32.mrb[0].mxu0
        %v3516 = vadd.f32 %v3293, %v3515
        %3517 = vdwg.mxu0
        %3518 = vmatprep.subr.bf16.mxu0 %v1702
        %3519 = vmatpush1.bf16.msra.mxu0 %v1701
        %3520 = vmatprep.subr.bf16.mxu0 0
        %3521 = vmatpush1.bf16.msra.mxu0 0
        %3522 = vmatprep.subr.bf16.mxu0 0
        %3523 = vmatpush1.bf16.msra.mxu0 0
        %3524 = vmatprep.subr.bf16.mxu0 0
        %3525 = vmatpush1.bf16.msra.mxu0 0
        %3526 = vmatprep.subr.bf16.mxu0 0
        %3527 = vmatpush1.bf16.msra.mxu0 0
        %3528 = vmatprep.subr.bf16.mxu0 0
        %3529 = vmatpush1.bf16.msra.mxu0 0
        %3530 = vmatprep.subr.bf16.mxu0 0
        %3531 = vmatpush1.bf16.msra.mxu0 0
        %3532 = vmatprep.subr.bf16.mxu0 0
        %3533 = vmatpush1.bf16.msra.mxu0 0
        %3534 = vmatprep.subr.bf16.mxu0 0
        %3535 = vmatpush1.bf16.msra.mxu0 0
        %3536 = vmatprep.subr.bf16.mxu0 0
        %3537 = vmatpush1.bf16.msra.mxu0 0
        %3538 = vmatprep.subr.bf16.mxu0 0
        %3539 = vmatpush1.bf16.msra.mxu0 0
        %3540 = vmatprep.subr.bf16.mxu0 0
        %3541 = vmatpush1.bf16.msra.mxu0 0
        %3542 = vmatprep.subr.bf16.mxu0 0
        %3543 = vmatpush1.bf16.msra.mxu0 0
        %3544 = vmatprep.subr.bf16.mxu0 0
        %3545 = vmatpush1.bf16.msra.mxu0 0
        %3546 = vmatprep.subr.bf16.mxu0 0
        %3547 = vmatpush1.bf16.msra.mxu0 0
        %3548 = vmatprep.subr.bf16.mxu0 0
        %3549 = vmatpush1.bf16.msra.mxu0 0
        %3550 = vmatprep.mubr.bf16.mxu0 0
        %3551 = vmatmul.mubr.bf16.gmra.mrb[0].mxu0 %v1901
        %v3552 = vpop.f32.mrb[0].mxu0
        %v3553 = vadd.f32 %v3330, %v3552
        %v3554 = vpop.f32.mrb[0].mxu0
        %v3555 = vadd.f32 %v3332, %v3554
        %v3556 = vpop.f32.mrb[0].mxu0
        %v3557 = vadd.f32 %v3334, %v3556
        %v3558 = vpop.f32.mrb[0].mxu0
        %v3559 = vadd.f32 %v3336, %v3558
        %3560 = vmatprep.mubr.bf16.mxu0 0
        %3561 = vmatmul.mubr.bf16.gmra.mrb[0].mxu0 %v1904
        %v3562 = vpop.f32.mrb[0].mxu0
        %v3563 = vadd.f32 %v3340, %v3562
        %v3564 = vpop.f32.mrb[0].mxu0
        %v3565 = vadd.f32 %v3342, %v3564
        %v3566 = vpop.f32.mrb[0].mxu0
        %v3567 = vadd.f32 %v3344, %v3566
        %v3568 = vpop.f32.mrb[0].mxu0
        %v3569 = vadd.f32 %v3346, %v3568
        %3570 = vmatprep.mubr.bf16.mxu0 0
        %3571 = vmatmul.mubr.bf16.gmra.mrb[0].mxu0 %v1907
        %v3572 = vpop.f32.mrb[0].mxu0
        %v3573 = vadd.f32 %v3350, %v3572
        %v3574 = vpop.f32.mrb[0].mxu0
        %v3575 = vadd.f32 %v3352, %v3574
        %v3576 = vpop.f32.mrb[0].mxu0
        %v3577 = vadd.f32 %v3354, %v3576
        %v3578 = vpop.f32.mrb[0].mxu0
        %v3579 = vadd.f32 %v3356, %v3578
        %3580 = vmatprep.mubr.bf16.mxu0 0
        %3581 = vmatmul.mubr.bf16.gmra.mrb[0].mxu0 %v1910
        %v3582 = vpop.f32.mrb[0].mxu0
        %v3583 = vadd.f32 %v3360, %v3582
        %v3584 = vpop.f32.mrb[0].mxu0
        %v3585 = vadd.f32 %v3362, %v3584
        %v3586 = vpop.f32.mrb[0].mxu0
        %v3587 = vadd.f32 %v3364, %v3586
        %v3588 = vpop.f32.mrb[0].mxu0
        %v3589 = vadd.f32 %v3366, %v3588
        %3590 = vmatprep.mubr.bf16.mxu0 0
        %3591 = vmatmul.mubr.bf16.gmra.mrb[0].mxu0 %v1913
        %v3592 = vpop.f32.mrb[0].mxu0
        %v3593 = vadd.f32 %v3370, %v3592
        %v3594 = vpop.f32.mrb[0].mxu0
        %v3595 = vadd.f32 %v3372, %v3594
        %v3596 = vpop.f32.mrb[0].mxu0
        %v3597 = vadd.f32 %v3374, %v3596
        %v3598 = vpop.f32.mrb[0].mxu0
        %v3599 = vadd.f32 %v3376, %v3598
        %3600 = vmatprep.mubr.bf16.mxu0 0
        %3601 = vmatmul.mubr.bf16.gmra.mrb[0].mxu0 %v1916
        %v3602 = vpop.f32.mrb[0].mxu0
        %v3603 = vadd.f32 %v3380, %v3602
        %v3604 = vpop.f32.mrb[0].mxu0
        %v3605 = vadd.f32 %v3382, %v3604
        %v3606 = vpop.f32.mrb[0].mxu0
        %v3607 = vadd.f32 %v3384, %v3606
        %v3608 = vpop.f32.mrb[0].mxu0
        %v3609 = vadd.f32 %v3386, %v3608
        %3610 = vmatprep.mubr.bf16.mxu0 0
        %3611 = vmatmul.mubr.bf16.gmra.mrb[0].mxu0 %v1919
        %v3612 = vpop.f32.mrb[0].mxu0
        %v3613 = vadd.f32 %v3390, %v3612
        %v3614 = vpop.f32.mrb[0].mxu0
        %v3615 = vadd.f32 %v3392, %v3614
        %v3616 = vpop.f32.mrb[0].mxu0
        %v3617 = vadd.f32 %v3394, %v3616
        %v3618 = vpop.f32.mrb[0].mxu0
        %v3619 = vadd.f32 %v3396, %v3618
        %3620 = vmatprep.mubr.bf16.mxu0 0
        %3621 = vmatmul.mubr.bf16.gmra.mrb[0].mxu0 %v1922
        %v3622 = vpop.f32.mrb[0].mxu0
        %v3623 = vadd.f32 %v3400, %v3622
        %v3624 = vpop.f32.mrb[0].mxu0
        %v3625 = vadd.f32 %v3402, %v3624
        %v3626 = vpop.f32.mrb[0].mxu0
        %v3627 = vadd.f32 %v3404, %v3626
        %v3628 = vpop.f32.mrb[0].mxu0
        %v3629 = vadd.f32 %v3406, %v3628
        %3630 = vmatprep.mubr.bf16.mxu0 0
        %3631 = vmatmul.mubr.bf16.gmra.mrb[0].mxu0 %v1925
        %v3632 = vpop.f32.mrb[0].mxu0
        %v3633 = vadd.f32 %v3410, %v3632
        %v3634 = vpop.f32.mrb[0].mxu0
        %v3635 = vadd.f32 %v3412, %v3634
        %v3636 = vpop.f32.mrb[0].mxu0
        %v3637 = vadd.f32 %v3414, %v3636
        %v3638 = vpop.f32.mrb[0].mxu0
        %v3639 = vadd.f32 %v3416, %v3638
        %3640 = vmatprep.mubr.bf16.mxu0 0
        %3641 = vmatmul.mubr.bf16.gmra.mrb[0].mxu0 %v1928
        %v3642 = vpop.f32.mrb[0].mxu0
        %v3643 = vadd.f32 %v3420, %v3642
        %v3644 = vpop.f32.mrb[0].mxu0
        %v3645 = vadd.f32 %v3422, %v3644
        %v3646 = vpop.f32.mrb[0].mxu0
        %v3647 = vadd.f32 %v3424, %v3646
        %v3648 = vpop.f32.mrb[0].mxu0
        %v3649 = vadd.f32 %v3426, %v3648
        %3650 = vmatprep.mubr.bf16.mxu0 0
        %3651 = vmatmul.mubr.bf16.gmra.mrb[0].mxu0 %v1931
        %v3652 = vpop.f32.mrb[0].mxu0
        %v3653 = vadd.f32 %v3430, %v3652
        %v3654 = vpop.f32.mrb[0].mxu0
        %v3655 = vadd.f32 %v3432, %v3654
        %v3656 = vpop.f32.mrb[0].mxu0
        %v3657 = vadd.f32 %v3434, %v3656
        %v3658 = vpop.f32.mrb[0].mxu0
        %v3659 = vadd.f32 %v3436, %v3658
        %3660 = vmatprep.mubr.bf16.mxu0 0
        %3661 = vmatmul.mubr.bf16.gmra.mrb[0].mxu0 %v1934
        %v3662 = vpop.f32.mrb[0].mxu0
        %v3663 = vadd.f32 %v3440, %v3662
        %v3664 = vpop.f32.mrb[0].mxu0
        %v3665 = vadd.f32 %v3442, %v3664
        %v3666 = vpop.f32.mrb[0].mxu0
        %v3667 = vadd.f32 %v3444, %v3666
        %v3668 = vpop.f32.mrb[0].mxu0
        %v3669 = vadd.f32 %v3446, %v3668
        %3670 = vmatprep.mubr.bf16.mxu0 0
        %3671 = vmatmul.mubr.bf16.gmra.mrb[0].mxu0 %v1937
        %v3672 = vpop.f32.mrb[0].mxu0
        %v3673 = vadd.f32 %v3450, %v3672
        %v3674 = vpop.f32.mrb[0].mxu0
        %v3675 = vadd.f32 %v3452, %v3674
        %v3676 = vpop.f32.mrb[0].mxu0
        %v3677 = vadd.f32 %v3454, %v3676
        %v3678 = vpop.f32.mrb[0].mxu0
        %v3679 = vadd.f32 %v3456, %v3678
        %3680 = vmatprep.mubr.bf16.mxu0 0
        %3681 = vmatmul.mubr.bf16.gmra.mrb[0].mxu0 %v1940
        %v3682 = vpop.f32.mrb[0].mxu0
        %v3683 = vadd.f32 %v3460, %v3682
        %v3684 = vpop.f32.mrb[0].mxu0
        %v3685 = vadd.f32 %v3462, %v3684
        %v3686 = vpop.f32.mrb[0].mxu0
        %v3687 = vadd.f32 %v3464, %v3686
        %v3688 = vpop.f32.mrb[0].mxu0
        %v3689 = vadd.f32 %v3466, %v3688
        %3690 = vmatprep.mubr.bf16.mxu0 0
        %3691 = vmatmul.mubr.bf16.gmra.mrb[0].mxu0 %v1943
        %v3692 = vpop.f32.mrb[0].mxu0
        %v3693 = vadd.f32 %v3470, %v3692
        %v3694 = vpop.f32.mrb[0].mxu0
        %v3695 = vadd.f32 %v3472, %v3694
        %v3696 = vpop.f32.mrb[0].mxu0
        %v3697 = vadd.f32 %v3474, %v3696
        %v3698 = vpop.f32.mrb[0].mxu0
        %v3699 = vadd.f32 %v3476, %v3698
        %3700 = vmatprep.mubr.bf16.mxu0 0
        %3701 = vmatmul.mubr.bf16.gmra.mrb[0].mxu0 %v1946
        %v3702 = vpop.f32.mrb[0].mxu0
        %v3703 = vadd.f32 %v3480, %v3702
        %v3704 = vpop.f32.mrb[0].mxu0
        %v3705 = vadd.f32 %v3482, %v3704
        %v3706 = vpop.f32.mrb[0].mxu0
        %v3707 = vadd.f32 %v3484, %v3706
        %v3708 = vpop.f32.mrb[0].mxu0
        %v3709 = vadd.f32 %v3486, %v3708
        %3710 = vmatprep.mubr.bf16.mxu0 0
        %3711 = vmatmul.mubr.bf16.gmra.mrb[0].mxu0 %v1949
        %v3712 = vpop.f32.mrb[0].mxu0
        %v3713 = vadd.f32 %v3490, %v3712
        %v3714 = vpop.f32.mrb[0].mxu0
        %v3715 = vadd.f32 %v3492, %v3714
        %v3716 = vpop.f32.mrb[0].mxu0
        %v3717 = vadd.f32 %v3494, %v3716
        %v3718 = vpop.f32.mrb[0].mxu0
        %v3719 = vadd.f32 %v3496, %v3718
        %3720 = vmatprep.mubr.bf16.mxu0 0
        %3721 = vmatmul.mubr.bf16.gmra.mrb[0].mxu0 %v1952
        %v3722 = vpop.f32.mrb[0].mxu0
        %v3723 = vadd.f32 %v3500, %v3722
        %v3724 = vpop.f32.mrb[0].mxu0
        %v3725 = vadd.f32 %v3502, %v3724
        %v3726 = vpop.f32.mrb[0].mxu0
        %v3727 = vadd.f32 %v3504, %v3726
        %v3728 = vpop.f32.mrb[0].mxu0
        %v3729 = vadd.f32 %v3506, %v3728
        %3730 = vmatprep.mubr.bf16.mxu0 0
        %3731 = vmatmul.mubr.bf16.gmra.mrb[0].mxu0 %v1955
        %v3732 = vpop.f32.mrb[0].mxu0
        %v3733 = vadd.f32 %v3510, %v3732
        %v3734 = vpop.f32.mrb[0].mxu0
        %v3735 = vadd.f32 %v3512, %v3734
        %v3736 = vpop.f32.mrb[0].mxu0
        %v3737 = vadd.f32 %v3514, %v3736
        %v3738 = vpop.f32.mrb[0].mxu0
        %v3739 = vadd.f32 %v3516, %v3738
        %3740 = vdwg.mxu0
        %v3741 = vpack.c.bf16 %v2665, %v2661
        %v3742 = vpack.c.bf16 %v2667, %v2663
        %v3743 = vpack.c.bf16 %v3557, %v3553
        %v3744 = vpack.c.bf16 %v3559, %v3555
        %v3745 = vpack.c.bf16 %v2675, %v2671
        %v3746 = vpack.c.bf16 %v2677, %v2673
        %v3747 = vpack.c.bf16 %v3567, %v3563
        %v3748 = vpack.c.bf16 %v3569, %v3565
        %v3749 = vpack.c.bf16 %v2685, %v2681
        %v3750 = vpack.c.bf16 %v2687, %v2683
        %v3751 = vpack.c.bf16 %v3577, %v3573
        %v3752 = vpack.c.bf16 %v3579, %v3575
        %v3753 = vpack.c.bf16 %v2695, %v2691
        %v3754 = vpack.c.bf16 %v2697, %v2693
        %v3755 = vpack.c.bf16 %v3587, %v3583
        %v3756 = vpack.c.bf16 %v3589, %v3585
        %v3757 = vpack.c.bf16 %v2705, %v2701
        %v3758 = vpack.c.bf16 %v2707, %v2703
        %v3759 = vpack.c.bf16 %v3597, %v3593
        %v3760 = vpack.c.bf16 %v3599, %v3595
        %v3761 = vpack.c.bf16 %v2715, %v2711
        %v3762 = vpack.c.bf16 %v2717, %v2713
        %v3763 = vpack.c.bf16 %v3607, %v3603
        %v3764 = vpack.c.bf16 %v3609, %v3605
        %v3765 = vpack.c.bf16 %v2725, %v2721
        %v3766 = vpack.c.bf16 %v2727, %v2723
        %v3767 = vpack.c.bf16 %v3617, %v3613
        %v3768 = vpack.c.bf16 %v3619, %v3615
        %v3769 = vpack.c.bf16 %v2735, %v2731
        %v3770 = vpack.c.bf16 %v2737, %v2733
        %v3771 = vpack.c.bf16 %v3627, %v3623
        %v3772 = vpack.c.bf16 %v3629, %v3625
        %v3773 = vpack.c.bf16 %v2745, %v2741
        %v3774 = vpack.c.bf16 %v2747, %v2743
        %v3775 = vpack.c.bf16 %v3637, %v3633
        %v3776 = vpack.c.bf16 %v3639, %v3635
        %v3777 = vpack.c.bf16 %v2755, %v2751
        %v3778 = vpack.c.bf16 %v2757, %v2753
        %v3779 = vpack.c.bf16 %v3647, %v3643
        %v3780 = vpack.c.bf16 %v3649, %v3645
        %v3781 = vpack.c.bf16 %v2765, %v2761
        %v3782 = vpack.c.bf16 %v2767, %v2763
        %v3783 = vpack.c.bf16 %v3657, %v3653
        %v3784 = vpack.c.bf16 %v3659, %v3655
        %v3785 = vpack.c.bf16 %v2775, %v2771
        %v3786 = vpack.c.bf16 %v2777, %v2773
        %v3787 = vpack.c.bf16 %v3667, %v3663
        %v3788 = vpack.c.bf16 %v3669, %v3665
        %v3789 = vpack.c.bf16 %v2785, %v2781
        %v3790 = vpack.c.bf16 %v2787, %v2783
        %v3791 = vpack.c.bf16 %v3677, %v3673
        %v3792 = vpack.c.bf16 %v3679, %v3675
        %v3793 = vpack.c.bf16 %v2795, %v2791
        %v3794 = vpack.c.bf16 %v2797, %v2793
        %v3795 = vpack.c.bf16 %v3687, %v3683
        %v3796 = vpack.c.bf16 %v3689, %v3685
        %v3797 = vpack.c.bf16 %v2805, %v2801
        %v3798 = vpack.c.bf16 %v2807, %v2803
        %v3799 = vpack.c.bf16 %v3697, %v3693
        %v3800 = vpack.c.bf16 %v3699, %v3695
        %v3801 = vpack.c.bf16 %v2815, %v2811
        %v3802 = vpack.c.bf16 %v2817, %v2813
        %v3803 = vpack.c.bf16 %v3707, %v3703
        %v3804 = vpack.c.bf16 %v3709, %v3705
        %v3805 = vpack.c.bf16 %v2825, %v2821
        %v3806 = vpack.c.bf16 %v2827, %v2823
        %v3807 = vpack.c.bf16 %v3717, %v3713
        %v3808 = vpack.c.bf16 %v3719, %v3715
        %v3809 = vpack.c.bf16 %v2835, %v2831
        %v3810 = vpack.c.bf16 %v2837, %v2833
        %v3811 = vpack.c.bf16 %v3727, %v3723
        %v3812 = vpack.c.bf16 %v3729, %v3725
        %v3813 = vpack.c.bf16 %v2845, %v2841
        %v3814 = vpack.c.bf16 %v2847, %v2843
        %v3815 = vpack.c.bf16 %v3737, %v3733
        %v3816 = vpack.c.bf16 %v3739, %v3735
        %v3817 = vld [vmem:[%s3] sm:$0xf]
        %v3818 = vld [vmem:[%s3 + $0x4] sm:$0xf]
        %v3819 = vld [vmem:[%s3 + $0x8] sm:$0xf]
        %v3820 = vld [vmem:[%s3 + $0xc] sm:$0xf]
        %v3821 = vld [vmem:[%s3 + $0x10] sm:$0xf]
        %v3822 = vld [vmem:[%s3 + $0x14] sm:$0xf]
        %v3823 = vld [vmem:[%s3 + $0x18] sm:$0xf]
        %v3824 = vld [vmem:[%s3 + $0x1c] sm:$0xf]
        %v3825 = vld [vmem:[%s3 + $0x20] sm:$0xf]
        %v3826 = vld [vmem:[%s3 + $0x24] sm:$0xf]
        %v3827 = vld [vmem:[%s3 + $0x28] sm:$0xf]
        %v3828 = vld [vmem:[%s3 + $0x2c] sm:$0xf]
        %v3829 = vld [vmem:[%s3 + $0x30] sm:$0xf]
        %v3830 = vld [vmem:[%s3 + $0x34] sm:$0xf]
        %v3831 = vld [vmem:[%s3 + $0x38] sm:$0xf]
        %v3832 = vld [vmem:[%s3 + $0x3c] sm:$0xf]
        %v3833 = vld [vmem:[%s3 + $0x40] sm:$0xf]
        %v3834 = vld [vmem:[%s3 + $0x44] sm:$0xf]
        %v3835 = vld [vmem:[%s3 + $0x48] sm:$0xf]
        %v3836 = vld [vmem:[%s3 + $0x4c] sm:$0xf]
        %v3837 = vld [vmem:[%s3 + $0x50] sm:$0xf]
        %v3838 = vld [vmem:[%s3 + $0x54] sm:$0xf]
        %v3839 = vld [vmem:[%s3 + $0x58] sm:$0xf]
        %v3840 = vld [vmem:[%s3 + $0x5c] sm:$0xf]
        %v3841 = vld [vmem:[%s3 + $0x60] sm:$0xf]
        %v3842 = vld [vmem:[%s3 + $0x64] sm:$0xf]
        %v3843 = vld [vmem:[%s3 + $0x68] sm:$0xf]
        %v3844 = vld [vmem:[%s3 + $0x6c] sm:$0xf]
        %v3845 = vld [vmem:[%s3 + $0x70] sm:$0xf]
        %v3846 = vld [vmem:[%s3 + $0x74] sm:$0xf]
        %v3847 = vld [vmem:[%s3 + $0x78] sm:$0xf]
        %v3848 = vld [vmem:[%s3 + $0x7c] sm:$0xf]
        %v3849 = vld [vmem:[%s3 + $0x80] sm:$0xf]
        %v3850 = vld [vmem:[%s3 + $0x84] sm:$0xf]
        %v3851 = vld [vmem:[%s3 + $0x88] sm:$0xf]
        %v3852 = vld [vmem:[%s3 + $0x8c] sm:$0xf]
        %v3853 = vld [vmem:[%s3 + $0x90] sm:$0xf]
        %v3854 = vld [vmem:[%s3 + $0x94] sm:$0xf]
        %v3855 = vld [vmem:[%s3 + $0x98] sm:$0xf]
        %v3856 = vld [vmem:[%s3 + $0x9c] sm:$0xf]
        %v3857 = vld [vmem:[%s3 + $0xa0] sm:$0xf]
        %v3858 = vld [vmem:[%s3 + $0xa4] sm:$0xf]
        %v3859 = vld [vmem:[%s3 + $0xa8] sm:$0xf]
        %v3860 = vld [vmem:[%s3 + $0xac] sm:$0xf]
        %v3861 = vld [vmem:[%s3 + $0xb0] sm:$0xf]
        %v3862 = vld [vmem:[%s3 + $0xb4] sm:$0xf]
        %v3863 = vld [vmem:[%s3 + $0xb8] sm:$0xf]
        %v3864 = vld [vmem:[%s3 + $0xbc] sm:$0xf]
        %v3865 = vld [vmem:[%s3 + $0xc0] sm:$0xf]
        %v3866 = vld [vmem:[%s3 + $0xc4] sm:$0xf]
        %v3867 = vld [vmem:[%s3 + $0xc8] sm:$0xf]
        %v3868 = vld [vmem:[%s3 + $0xcc] sm:$0xf]
        %v3869 = vld [vmem:[%s3 + $0xd0] sm:$0xf]
        %v3870 = vld [vmem:[%s3 + $0xd4] sm:$0xf]
        %v3871 = vld [vmem:[%s3 + $0xd8] sm:$0xf]
        %v3872 = vld [vmem:[%s3 + $0xdc] sm:$0xf]
        %v3873 = vld [vmem:[%s3 + $0xe0] sm:$0xf]
        %v3874 = vld [vmem:[%s3 + $0xe4] sm:$0xf]
        %v3875 = vld [vmem:[%s3 + $0xe8] sm:$0xf]
        %v3876 = vld [vmem:[%s3 + $0xec] sm:$0xf]
        %v3877 = vld [vmem:[%s3 + $0xf0] sm:$0xf]
        %v3878 = vld [vmem:[%s3 + $0xf4] sm:$0xf]
        %v3879 = vld [vmem:[%s3 + $0xf8] sm:$0xf]
        %v3880 = vld [vmem:[%s3 + $0xfc] sm:$0xf]
        %v3881 = vld [vmem:[%s4] sm:$0x1]
        %v3883 = vlaneseq
        %v3884 = vshrl.u32 %v3883, 7
        %v3885 = vsub.s32 0, %v3884
        %v3886 = vrot.slane %v3881, %v3885
        %v3952 = vunpack.c.l.b16 %v3817
        %v3953 = vunpack.c.l.b16 %v3818
        %v3954 = vunpack.c.l.b16 %v3819
        %v3955 = vunpack.c.l.b16 %v3820
        %v3956 = vunpack.c.l.b16 %v3821
        %v3957 = vunpack.c.l.b16 %v3822
        %v3958 = vunpack.c.l.b16 %v3823
        %v3959 = vunpack.c.l.b16 %v3824
        %v3960 = vunpack.c.l.b16 %v3825
        %v3961 = vunpack.c.l.b16 %v3826
        %v3962 = vunpack.c.l.b16 %v3827
        %v3963 = vunpack.c.l.b16 %v3828
        %v3964 = vunpack.c.l.b16 %v3829
        %v3965 = vunpack.c.l.b16 %v3830
        %v3966 = vunpack.c.l.b16 %v3831
        %v3967 = vunpack.c.l.b16 %v3832
        %v3968 = vunpack.c.l.b16 %v3833
        %v3969 = vunpack.c.l.b16 %v3834
        %v3970 = vunpack.c.l.b16 %v3835
        %v3971 = vunpack.c.l.b16 %v3836
        %v3972 = vunpack.c.l.b16 %v3837
        %v3973 = vunpack.c.l.b16 %v3838
        %v3974 = vunpack.c.l.b16 %v3839
        %v3975 = vunpack.c.l.b16 %v3840
        %v3976 = vunpack.c.l.b16 %v3841
        %v3977 = vunpack.c.l.b16 %v3842
        %v3978 = vunpack.c.l.b16 %v3843
        %v3979 = vunpack.c.l.b16 %v3844
        %v3980 = vunpack.c.l.b16 %v3845
        %v3981 = vunpack.c.l.b16 %v3846
        %v3982 = vunpack.c.l.b16 %v3847
        %v3983 = vunpack.c.l.b16 %v3848
        %v3984 = vunpack.c.l.b16 %v3849
        %v3985 = vunpack.c.l.b16 %v3850
        %v3986 = vunpack.c.l.b16 %v3851
        %v3987 = vunpack.c.l.b16 %v3852
        %v3988 = vunpack.c.l.b16 %v3853
        %v3989 = vunpack.c.l.b16 %v3854
        %v3990 = vunpack.c.l.b16 %v3855
        %v3991 = vunpack.c.l.b16 %v3856
        %v3992 = vunpack.c.l.b16 %v3857
        %v3993 = vunpack.c.l.b16 %v3858
        %v3994 = vunpack.c.l.b16 %v3859
        %v3995 = vunpack.c.l.b16 %v3860
        %v3996 = vunpack.c.l.b16 %v3861
        %v3997 = vunpack.c.l.b16 %v3862
        %v3998 = vunpack.c.l.b16 %v3863
        %v3999 = vunpack.c.l.b16 %v3864
        %v4000 = vunpack.c.l.b16 %v3865
        %v4001 = vunpack.c.l.b16 %v3866
        %v4002 = vunpack.c.l.b16 %v3867
        %v4003 = vunpack.c.l.b16 %v3868
        %v4004 = vunpack.c.l.b16 %v3869
        %v4005 = vunpack.c.l.b16 %v3870
        %v4006 = vunpack.c.l.b16 %v3871
        %v4007 = vunpack.c.l.b16 %v3872
        %v4008 = vunpack.c.l.b16 %v3873
        %v4009 = vunpack.c.l.b16 %v3874
        %v4010 = vunpack.c.l.b16 %v3875
        %v4011 = vunpack.c.l.b16 %v3876
        %v4012 = vunpack.c.l.b16 %v3877
        %v4013 = vunpack.c.l.b16 %v3878
        %v4014 = vunpack.c.l.b16 %v3879
        %v4015 = vunpack.c.l.b16 %v3880
        %v4016 = vpack.c.b16 %v3953, %v3952
        %v4017 = vpack.c.b16 %v3955, %v3954
        %v4018 = vpack.c.b16 %v3957, %v3956
        %v4019 = vpack.c.b16 %v3959, %v3958
        %v4020 = vpack.c.b16 %v3961, %v3960
        %v4021 = vpack.c.b16 %v3963, %v3962
        %v4022 = vpack.c.b16 %v3965, %v3964
        %v4023 = vpack.c.b16 %v3967, %v3966
        %v4024 = vpack.c.b16 %v3969, %v3968
        %v4025 = vpack.c.b16 %v3971, %v3970
        %v4026 = vpack.c.b16 %v3973, %v3972
        %v4027 = vpack.c.b16 %v3975, %v3974
        %v4028 = vpack.c.b16 %v3977, %v3976
        %v4029 = vpack.c.b16 %v3979, %v3978
        %v4030 = vpack.c.b16 %v3981, %v3980
        %v4031 = vpack.c.b16 %v3983, %v3982
        %v4032 = vpack.c.b16 %v3985, %v3984
        %v4033 = vpack.c.b16 %v3987, %v3986
        %v4034 = vpack.c.b16 %v3989, %v3988
        %v4035 = vpack.c.b16 %v3991, %v3990
        %v4036 = vpack.c.b16 %v3993, %v3992
        %v4037 = vpack.c.b16 %v3995, %v3994
        %v4038 = vpack.c.b16 %v3997, %v3996
        %v4039 = vpack.c.b16 %v3999, %v3998
        %v4040 = vpack.c.b16 %v4001, %v4000
        %v4041 = vpack.c.b16 %v4003, %v4002
        %v4042 = vpack.c.b16 %v4005, %v4004
        %v4043 = vpack.c.b16 %v4007, %v4006
        %v4044 = vpack.c.b16 %v4009, %v4008
        %v4045 = vpack.c.b16 %v4011, %v4010
        %v4046 = vpack.c.b16 %v4013, %v4012
        %v4047 = vpack.c.b16 %v4015, %v4014
        %4080 = vmatprep.subr.bf16.mxu0 0
        %4081 = vmatpush1.bf16.msra.mxu0 %v4016
        %4082 = vmatprep.subr.bf16.mxu0 0
        %4083 = vmatpush1.bf16.msra.mxu0 %v4017
        %4084 = vmatprep.subr.bf16.mxu0 0
        %4085 = vmatpush1.bf16.msra.mxu0 %v4018
        %4086 = vmatprep.subr.bf16.mxu0 0
        %4087 = vmatpush1.bf16.msra.mxu0 %v4019
        %4088 = vmatprep.subr.bf16.mxu0 0
        %4089 = vmatpush1.bf16.msra.mxu0 %v4020
        %4090 = vmatprep.subr.bf16.mxu0 0
        %4091 = vmatpush1.bf16.msra.mxu0 %v4021
        %4092 = vmatprep.subr.bf16.mxu0 0
        %4093 = vmatpush1.bf16.msra.mxu0 %v4022
        %4094 = vmatprep.subr.bf16.mxu0 0
        %4095 = vmatpush1.bf16.msra.mxu0 %v4023
        %4096 = vmatprep.subr.bf16.mxu0 0
        %4097 = vmatpush1.bf16.msra.mxu0 %v4024
        %4098 = vmatprep.subr.bf16.mxu0 0
        %4099 = vmatpush1.bf16.msra.mxu0 %v4025
        %4100 = vmatprep.subr.bf16.mxu0 0
        %4101 = vmatpush1.bf16.msra.mxu0 %v4026
        %4102 = vmatprep.subr.bf16.mxu0 0
        %4103 = vmatpush1.bf16.msra.mxu0 %v4027
        %4104 = vmatprep.subr.bf16.mxu0 0
        %4105 = vmatpush1.bf16.msra.mxu0 %v4028
        %4106 = vmatprep.subr.bf16.mxu0 0
        %4107 = vmatpush1.bf16.msra.mxu0 %v4029
        %4108 = vmatprep.subr.bf16.mxu0 0
        %4109 = vmatpush1.bf16.msra.mxu0 %v4030
        %4110 = vmatprep.subr.bf16.mxu0 0
        %4111 = vmatpush1.bf16.msra.mxu0 %v4031
        %4112 = vmatprep.mubr.bf16.mxu0 %v3742
        %4113 = vmatmul.mubr.bf16.gmra.mrb[0].mxu0 %v3741
        %v4114 = vpop.f32.mrb[0].mxu0
        %v4115 = vadd.f32 %v3886, %v4114
        %v4116 = vpop.f32.mrb[0].mxu0
        %v4117 = vpop.f32.mrb[0].mxu0
        %v4118 = vadd.f32 %v3886, %v4117
        %v4119 = vpop.f32.mrb[0].mxu0
        %4120 = vmatprep.mubr.bf16.mxu0 %v3746
        %4121 = vmatmul.mubr.bf16.gmra.mrb[0].mxu0 %v3745
        %v4122 = vpop.f32.mrb[0].mxu0
        %v4123 = vadd.f32 %v3886, %v4122
        %v4124 = vpop.f32.mrb[0].mxu0
        %v4125 = vpop.f32.mrb[0].mxu0
        %v4126 = vadd.f32 %v3886, %v4125
        %v4127 = vpop.f32.mrb[0].mxu0
        %4128 = vmatprep.mubr.bf16.mxu0 %v3750
        %4129 = vmatmul.mubr.bf16.gmra.mrb[0].mxu0 %v3749
        %v4130 = vpop.f32.mrb[0].mxu0
        %v4131 = vadd.f32 %v3886, %v4130
        %v4132 = vpop.f32.mrb[0].mxu0
        %v4133 = vpop.f32.mrb[0].mxu0
        %v4134 = vadd.f32 %v3886, %v4133
        %v4135 = vpop.f32.mrb[0].mxu0
        %4136 = vmatprep.mubr.bf16.mxu0 %v3754
        %4137 = vmatmul.mubr.bf16.gmra.mrb[0].mxu0 %v3753
        %v4138 = vpop.f32.mrb[0].mxu0
        %v4139 = vadd.f32 %v3886, %v4138
        %v4140 = vpop.f32.mrb[0].mxu0
        %v4141 = vpop.f32.mrb[0].mxu0
        %v4142 = vadd.f32 %v3886, %v4141
        %v4143 = vpop.f32.mrb[0].mxu0
        %4144 = vmatprep.mubr.bf16.mxu0 %v3758
        %4145 = vmatmul.mubr.bf16.gmra.mrb[0].mxu0 %v3757
        %v4146 = vpop.f32.mrb[0].mxu0
        %v4147 = vadd.f32 %v3886, %v4146
        %v4148 = vpop.f32.mrb[0].mxu0
        %v4149 = vpop.f32.mrb[0].mxu0
        %v4150 = vadd.f32 %v3886, %v4149
        %v4151 = vpop.f32.mrb[0].mxu0
        %4152 = vmatprep.mubr.bf16.mxu0 %v3762
        %4153 = vmatmul.mubr.bf16.gmra.mrb[0].mxu0 %v3761
        %v4154 = vpop.f32.mrb[0].mxu0
        %v4155 = vadd.f32 %v3886, %v4154
        %v4156 = vpop.f32.mrb[0].mxu0
        %v4157 = vpop.f32.mrb[0].mxu0
        %v4158 = vadd.f32 %v3886, %v4157
        %v4159 = vpop.f32.mrb[0].mxu0
        %4160 = vmatprep.mubr.bf16.mxu0 %v3766
        %4161 = vmatmul.mubr.bf16.gmra.mrb[0].mxu0 %v3765
        %v4162 = vpop.f32.mrb[0].mxu0
        %v4163 = vadd.f32 %v3886, %v4162
        %v4164 = vpop.f32.mrb[0].mxu0
        %v4165 = vpop.f32.mrb[0].mxu0
        %v4166 = vadd.f32 %v3886, %v4165
        %v4167 = vpop.f32.mrb[0].mxu0
        %4168 = vmatprep.mubr.bf16.mxu0 %v3770
        %4169 = vmatmul.mubr.bf16.gmra.mrb[0].mxu0 %v3769
        %v4170 = vpop.f32.mrb[0].mxu0
        %v4171 = vadd.f32 %v3886, %v4170
        %v4172 = vpop.f32.mrb[0].mxu0
        %v4173 = vpop.f32.mrb[0].mxu0
        %v4174 = vadd.f32 %v3886, %v4173
        %v4175 = vpop.f32.mrb[0].mxu0
        %4176 = vmatprep.mubr.bf16.mxu0 %v3774
        %4177 = vmatmul.mubr.bf16.gmra.mrb[0].mxu0 %v3773
        %v4178 = vpop.f32.mrb[0].mxu0
        %v4179 = vadd.f32 %v3886, %v4178
        %v4180 = vpop.f32.mrb[0].mxu0
        %v4181 = vpop.f32.mrb[0].mxu0
        %v4182 = vadd.f32 %v3886, %v4181
        %v4183 = vpop.f32.mrb[0].mxu0
        %4184 = vmatprep.mubr.bf16.mxu0 %v3778
        %4185 = vmatmul.mubr.bf16.gmra.mrb[0].mxu0 %v3777
        %v4186 = vpop.f32.mrb[0].mxu0
        %v4187 = vadd.f32 %v3886, %v4186
        %v4188 = vpop.f32.mrb[0].mxu0
        %v4189 = vpop.f32.mrb[0].mxu0
        %v4190 = vadd.f32 %v3886, %v4189
        %v4191 = vpop.f32.mrb[0].mxu0
        %4192 = vmatprep.mubr.bf16.mxu0 %v3782
        %4193 = vmatmul.mubr.bf16.gmra.mrb[0].mxu0 %v3781
        %v4194 = vpop.f32.mrb[0].mxu0
        %v4195 = vadd.f32 %v3886, %v4194
        %v4196 = vpop.f32.mrb[0].mxu0
        %v4197 = vpop.f32.mrb[0].mxu0
        %v4198 = vadd.f32 %v3886, %v4197
        %v4199 = vpop.f32.mrb[0].mxu0
        %4200 = vmatprep.mubr.bf16.mxu0 %v3786
        %4201 = vmatmul.mubr.bf16.gmra.mrb[0].mxu0 %v3785
        %v4202 = vpop.f32.mrb[0].mxu0
        %v4203 = vadd.f32 %v3886, %v4202
        %v4204 = vpop.f32.mrb[0].mxu0
        %v4205 = vpop.f32.mrb[0].mxu0
        %v4206 = vadd.f32 %v3886, %v4205
        %v4207 = vpop.f32.mrb[0].mxu0
        %4208 = vmatprep.mubr.bf16.mxu0 %v3790
        %4209 = vmatmul.mubr.bf16.gmra.mrb[0].mxu0 %v3789
        %v4210 = vpop.f32.mrb[0].mxu0
        %v4211 = vadd.f32 %v3886, %v4210
        %v4212 = vpop.f32.mrb[0].mxu0
        %v4213 = vpop.f32.mrb[0].mxu0
        %v4214 = vadd.f32 %v3886, %v4213
        %v4215 = vpop.f32.mrb[0].mxu0
        %4216 = vmatprep.mubr.bf16.mxu0 %v3794
        %4217 = vmatmul.mubr.bf16.gmra.mrb[0].mxu0 %v3793
        %v4218 = vpop.f32.mrb[0].mxu0
        %v4219 = vadd.f32 %v3886, %v4218
        %v4220 = vpop.f32.mrb[0].mxu0
        %v4221 = vpop.f32.mrb[0].mxu0
        %v4222 = vadd.f32 %v3886, %v4221
        %v4223 = vpop.f32.mrb[0].mxu0
        %4224 = vmatprep.mubr.bf16.mxu0 %v3798
        %4225 = vmatmul.mubr.bf16.gmra.mrb[0].mxu0 %v3797
        %v4226 = vpop.f32.mrb[0].mxu0
        %v4227 = vadd.f32 %v3886, %v4226
        %v4228 = vpop.f32.mrb[0].mxu0
        %v4229 = vpop.f32.mrb[0].mxu0
        %v4230 = vadd.f32 %v3886, %v4229
        %v4231 = vpop.f32.mrb[0].mxu0
        %4232 = vmatprep.mubr.bf16.mxu0 %v3802
        %4233 = vmatmul.mubr.bf16.gmra.mrb[0].mxu0 %v3801
        %v4234 = vpop.f32.mrb[0].mxu0
        %v4235 = vadd.f32 %v3886, %v4234
        %v4236 = vpop.f32.mrb[0].mxu0
        %v4237 = vpop.f32.mrb[0].mxu0
        %v4238 = vadd.f32 %v3886, %v4237
        %v4239 = vpop.f32.mrb[0].mxu0
        %4240 = vmatprep.mubr.bf16.mxu0 %v3806
        %4241 = vmatmul.mubr.bf16.gmra.mrb[0].mxu0 %v3805
        %v4242 = vpop.f32.mrb[0].mxu0
        %v4243 = vadd.f32 %v3886, %v4242
        %v4244 = vpop.f32.mrb[0].mxu0
        %v4245 = vpop.f32.mrb[0].mxu0
        %v4246 = vadd.f32 %v3886, %v4245
        %v4247 = vpop.f32.mrb[0].mxu0
        %4248 = vmatprep.mubr.bf16.mxu0 %v3810
        %4249 = vmatmul.mubr.bf16.gmra.mrb[0].mxu0 %v3809
        %v4250 = vpop.f32.mrb[0].mxu0
        %v4251 = vadd.f32 %v3886, %v4250
        %v4252 = vpop.f32.mrb[0].mxu0
        %v4253 = vpop.f32.mrb[0].mxu0
        %v4254 = vadd.f32 %v3886, %v4253
        %v4255 = vpop.f32.mrb[0].mxu0
        %4256 = vmatprep.mubr.bf16.mxu0 %v3814
        %4257 = vmatmul.mubr.bf16.gmra.mrb[0].mxu0 %v3813
        %v4258 = vpop.f32.mrb[0].mxu0
        %v4259 = vadd.f32 %v3886, %v4258
        %v4260 = vpop.f32.mrb[0].mxu0
        %v4261 = vpop.f32.mrb[0].mxu0
        %v4262 = vadd.f32 %v3886, %v4261
        %v4263 = vpop.f32.mrb[0].mxu0
        %4264 = vdwg.mxu0
        %4265 = vmatprep.subr.bf16.mxu0 0
        %4266 = vmatpush1.bf16.msra.mxu0 %v4032
        %4267 = vmatprep.subr.bf16.mxu0 0
        %4268 = vmatpush1.bf16.msra.mxu0 %v4033
        %4269 = vmatprep.subr.bf16.mxu0 0
        %4270 = vmatpush1.bf16.msra.mxu0 %v4034
        %4271 = vmatprep.subr.bf16.mxu0 0
        %4272 = vmatpush1.bf16.msra.mxu0 %v4035
        %4273 = vmatprep.subr.bf16.mxu0 0
        %4274 = vmatpush1.bf16.msra.mxu0 %v4036
        %4275 = vmatprep.subr.bf16.mxu0 0
        %4276 = vmatpush1.bf16.msra.mxu0 %v4037
        %4277 = vmatprep.subr.bf16.mxu0 0
        %4278 = vmatpush1.bf16.msra.mxu0 %v4038
        %4279 = vmatprep.subr.bf16.mxu0 0
        %4280 = vmatpush1.bf16.msra.mxu0 %v4039
        %4281 = vmatprep.subr.bf16.mxu0 0
        %4282 = vmatpush1.bf16.msra.mxu0 %v4040
        %4283 = vmatprep.subr.bf16.mxu0 0
        %4284 = vmatpush1.bf16.msra.mxu0 %v4041
        %4285 = vmatprep.subr.bf16.mxu0 0
        %4286 = vmatpush1.bf16.msra.mxu0 %v4042
        %4287 = vmatprep.subr.bf16.mxu0 0
        %4288 = vmatpush1.bf16.msra.mxu0 %v4043
        %4289 = vmatprep.subr.bf16.mxu0 0
        %4290 = vmatpush1.bf16.msra.mxu0 %v4044
        %4291 = vmatprep.subr.bf16.mxu0 0
        %4292 = vmatpush1.bf16.msra.mxu0 %v4045
        %4293 = vmatprep.subr.bf16.mxu0 0
        %4294 = vmatpush1.bf16.msra.mxu0 %v4046
        %4295 = vmatprep.subr.bf16.mxu0 0
        %4296 = vmatpush1.bf16.msra.mxu0 %v4047
        %4297 = vmatprep.mubr.bf16.mxu0 %v3744
        %4298 = vmatmul.mubr.bf16.gmra.mrb[0].mxu0 %v3743
        %v4299 = vpop.f32.mrb[0].mxu0
        %v4300 = vadd.f32 %v4115, %v4299
        %v4301 = vpop.f32.mrb[0].mxu0
        %v4302 = vpop.f32.mrb[0].mxu0
        %v4303 = vadd.f32 %v4118, %v4302
        %v4304 = vpop.f32.mrb[0].mxu0
        %4305 = vmatprep.mubr.bf16.mxu0 %v3748
        %4306 = vmatmul.mubr.bf16.gmra.mrb[0].mxu0 %v3747
        %v4307 = vpop.f32.mrb[0].mxu0
        %v4308 = vadd.f32 %v4123, %v4307
        %v4309 = vpop.f32.mrb[0].mxu0
        %v4310 = vpop.f32.mrb[0].mxu0
        %v4311 = vadd.f32 %v4126, %v4310
        %v4312 = vpop.f32.mrb[0].mxu0
        %4313 = vmatprep.mubr.bf16.mxu0 %v3752
        %4314 = vmatmul.mubr.bf16.gmra.mrb[0].mxu0 %v3751
        %v4315 = vpop.f32.mrb[0].mxu0
        %v4316 = vadd.f32 %v4131, %v4315
        %v4317 = vpop.f32.mrb[0].mxu0
        %v4318 = vpop.f32.mrb[0].mxu0
        %v4319 = vadd.f32 %v4134, %v4318
        %v4320 = vpop.f32.mrb[0].mxu0
        %4321 = vmatprep.mubr.bf16.mxu0 %v3756
        %4322 = vmatmul.mubr.bf16.gmra.mrb[0].mxu0 %v3755
        %v4323 = vpop.f32.mrb[0].mxu0
        %v4324 = vadd.f32 %v4139, %v4323
        %v4325 = vpop.f32.mrb[0].mxu0
        %v4326 = vpop.f32.mrb[0].mxu0
        %v4327 = vadd.f32 %v4142, %v4326
        %v4328 = vpop.f32.mrb[0].mxu0
        %4329 = vmatprep.mubr.bf16.mxu0 %v3760
        %4330 = vmatmul.mubr.bf16.gmra.mrb[0].mxu0 %v3759
        %v4331 = vpop.f32.mrb[0].mxu0
        %v4332 = vadd.f32 %v4147, %v4331
        %v4333 = vpop.f32.mrb[0].mxu0
        %v4334 = vpop.f32.mrb[0].mxu0
        %v4335 = vadd.f32 %v4150, %v4334
        %v4336 = vpop.f32.mrb[0].mxu0
        %4337 = vmatprep.mubr.bf16.mxu0 %v3764
        %4338 = vmatmul.mubr.bf16.gmra.mrb[0].mxu0 %v3763
        %v4339 = vpop.f32.mrb[0].mxu0
        %v4340 = vadd.f32 %v4155, %v4339
        %v4341 = vpop.f32.mrb[0].mxu0
        %v4342 = vpop.f32.mrb[0].mxu0
        %v4343 = vadd.f32 %v4158, %v4342
        %v4344 = vpop.f32.mrb[0].mxu0
        %4345 = vmatprep.mubr.bf16.mxu0 %v3768
        %4346 = vmatmul.mubr.bf16.gmra.mrb[0].mxu0 %v3767
        %v4347 = vpop.f32.mrb[0].mxu0
        %v4348 = vadd.f32 %v4163, %v4347
        %v4349 = vpop.f32.mrb[0].mxu0
        %v4350 = vpop.f32.mrb[0].mxu0
        %v4351 = vadd.f32 %v4166, %v4350
        %v4352 = vpop.f32.mrb[0].mxu0
        %4353 = vmatprep.mubr.bf16.mxu0 %v3772
        %4354 = vmatmul.mubr.bf16.gmra.mrb[0].mxu0 %v3771
        %v4355 = vpop.f32.mrb[0].mxu0
        %v4356 = vadd.f32 %v4171, %v4355
        %v4357 = vpop.f32.mrb[0].mxu0
        %v4358 = vpop.f32.mrb[0].mxu0
        %v4359 = vadd.f32 %v4174, %v4358
        %v4360 = vpop.f32.mrb[0].mxu0
        %4361 = vmatprep.mubr.bf16.mxu0 %v3776
        %4362 = vmatmul.mubr.bf16.gmra.mrb[0].mxu0 %v3775
        %v4363 = vpop.f32.mrb[0].mxu0
        %v4364 = vadd.f32 %v4179, %v4363
        %v4365 = vpop.f32.mrb[0].mxu0
        %v4366 = vpop.f32.mrb[0].mxu0
        %v4367 = vadd.f32 %v4182, %v4366
        %v4368 = vpop.f32.mrb[0].mxu0
        %4369 = vmatprep.mubr.bf16.mxu0 %v3780
        %4370 = vmatmul.mubr.bf16.gmra.mrb[0].mxu0 %v3779
        %v4371 = vpop.f32.mrb[0].mxu0
        %v4372 = vadd.f32 %v4187, %v4371
        %v4373 = vpop.f32.mrb[0].mxu0
        %v4374 = vpop.f32.mrb[0].mxu0
        %v4375 = vadd.f32 %v4190, %v4374
        %v4376 = vpop.f32.mrb[0].mxu0
        %4377 = vmatprep.mubr.bf16.mxu0 %v3784
        %4378 = vmatmul.mubr.bf16.gmra.mrb[0].mxu0 %v3783
        %v4379 = vpop.f32.mrb[0].mxu0
        %v4380 = vadd.f32 %v4195, %v4379
        %v4381 = vpop.f32.mrb[0].mxu0
        %v4382 = vpop.f32.mrb[0].mxu0
        %v4383 = vadd.f32 %v4198, %v4382
        %v4384 = vpop.f32.mrb[0].mxu0
        %4385 = vmatprep.mubr.bf16.mxu0 %v3788
        %4386 = vmatmul.mubr.bf16.gmra.mrb[0].mxu0 %v3787
        %v4387 = vpop.f32.mrb[0].mxu0
        %v4388 = vadd.f32 %v4203, %v4387
        %v4389 = vpop.f32.mrb[0].mxu0
        %v4390 = vpop.f32.mrb[0].mxu0
        %v4391 = vadd.f32 %v4206, %v4390
        %v4392 = vpop.f32.mrb[0].mxu0
        %4393 = vmatprep.mubr.bf16.mxu0 %v3792
        %4394 = vmatmul.mubr.bf16.gmra.mrb[0].mxu0 %v3791
        %v4395 = vpop.f32.mrb[0].mxu0
        %v4396 = vadd.f32 %v4211, %v4395
        %v4397 = vpop.f32.mrb[0].mxu0
        %v4398 = vpop.f32.mrb[0].mxu0
        %v4399 = vadd.f32 %v4214, %v4398
        %v4400 = vpop.f32.mrb[0].mxu0
        %4401 = vmatprep.mubr.bf16.mxu0 %v3796
        %4402 = vmatmul.mubr.bf16.gmra.mrb[0].mxu0 %v3795
        %v4403 = vpop.f32.mrb[0].mxu0
        %v4404 = vadd.f32 %v4219, %v4403
        %v4405 = vpop.f32.mrb[0].mxu0
        %v4406 = vpop.f32.mrb[0].mxu0
        %v4407 = vadd.f32 %v4222, %v4406
        %v4408 = vpop.f32.mrb[0].mxu0
        %4409 = vmatprep.mubr.bf16.mxu0 %v3800
        %4410 = vmatmul.mubr.bf16.gmra.mrb[0].mxu0 %v3799
        %v4411 = vpop.f32.mrb[0].mxu0
        %v4412 = vadd.f32 %v4227, %v4411
        %v4413 = vpop.f32.mrb[0].mxu0
        %v4414 = vpop.f32.mrb[0].mxu0
        %v4415 = vadd.f32 %v4230, %v4414
        %v4416 = vpop.f32.mrb[0].mxu0
        %4417 = vmatprep.mubr.bf16.mxu0 %v3804
        %4418 = vmatmul.mubr.bf16.gmra.mrb[0].mxu0 %v3803
        %v4419 = vpop.f32.mrb[0].mxu0
        %v4420 = vadd.f32 %v4235, %v4419
        %v4421 = vpop.f32.mrb[0].mxu0
        %v4422 = vpop.f32.mrb[0].mxu0
        %v4423 = vadd.f32 %v4238, %v4422
        %v4424 = vpop.f32.mrb[0].mxu0
        %4425 = vmatprep.mubr.bf16.mxu0 %v3808
        %4426 = vmatmul.mubr.bf16.gmra.mrb[0].mxu0 %v3807
        %v4427 = vpop.f32.mrb[0].mxu0
        %v4428 = vadd.f32 %v4243, %v4427
        %v4429 = vpop.f32.mrb[0].mxu0
        %v4430 = vpop.f32.mrb[0].mxu0
        %v4431 = vadd.f32 %v4246, %v4430
        %v4432 = vpop.f32.mrb[0].mxu0
        %4433 = vmatprep.mubr.bf16.mxu0 %v3812
        %4434 = vmatmul.mubr.bf16.gmra.mrb[0].mxu0 %v3811
        %v4435 = vpop.f32.mrb[0].mxu0
        %v4436 = vadd.f32 %v4251, %v4435
        %v4437 = vpop.f32.mrb[0].mxu0
        %v4438 = vpop.f32.mrb[0].mxu0
        %v4439 = vadd.f32 %v4254, %v4438
        %v4440 = vpop.f32.mrb[0].mxu0
        %4441 = vmatprep.mubr.bf16.mxu0 %v3816
        %4442 = vmatmul.mubr.bf16.gmra.mrb[0].mxu0 %v3815
        %v4443 = vpop.f32.mrb[0].mxu0
        %v4444 = vadd.f32 %v4259, %v4443
        %v4445 = vpop.f32.mrb[0].mxu0
        %v4446 = vpop.f32.mrb[0].mxu0
        %v4447 = vadd.f32 %v4262, %v4446
        %v4448 = vpop.f32.mrb[0].mxu0
        %4449 = vdwg.mxu0
        %4450 = vst [vmem:[%s278] sm:$0xff] %v4300
        %4451 = vst [vmem:[%s278 + $0x8] sm:$0xff] %v4303
        %4452 = vst [vmem:[%s278 + $0x10] sm:$0xff] %v4308
        %4453 = vst [vmem:[%s278 + $0x18] sm:$0xff] %v4311
        %4454 = vst [vmem:[%s278 + $0x20] sm:$0xff] %v4316
        %4455 = vst [vmem:[%s278 + $0x28] sm:$0xff] %v4319
        %4456 = vst [vmem:[%s278 + $0x30] sm:$0xff] %v4324
        %4457 = vst [vmem:[%s278 + $0x38] sm:$0xff] %v4327
        %4458 = vst [vmem:[%s278 + $0x40] sm:$0xff] %v4332
        %4459 = vst [vmem:[%s278 + $0x48] sm:$0xff] %v4335
        %4460 = vst [vmem:[%s278 + $0x50] sm:$0xff] %v4340
        %4461 = vst [vmem:[%s278 + $0x58] sm:$0xff] %v4343
        %4462 = vst [vmem:[%s278 + $0x60] sm:$0xff] %v4348
        %4463 = vst [vmem:[%s278 + $0x68] sm:$0xff] %v4351
        %4464 = vst [vmem:[%s278 + $0x70] sm:$0xff] %v4356
        %4465 = vst [vmem:[%s278 + $0x78] sm:$0xff] %v4359
        %4466 = vst [vmem:[%s278 + $0x80] sm:$0xff] %v4364
        %4467 = vst [vmem:[%s278 + $0x88] sm:$0xff] %v4367
        %4468 = vst [vmem:[%s278 + $0x90] sm:$0xff] %v4372
        %4469 = vst [vmem:[%s278 + $0x98] sm:$0xff] %v4375
        %4470 = vst [vmem:[%s278 + $0xa0] sm:$0xff] %v4380
        %4471 = vst [vmem:[%s278 + $0xa8] sm:$0xff] %v4383
        %4472 = vst [vmem:[%s278 + $0xb0] sm:$0xff] %v4388
        %4473 = vst [vmem:[%s278 + $0xb8] sm:$0xff] %v4391
        %4474 = vst [vmem:[%s278 + $0xc0] sm:$0xff] %v4396
        %4475 = vst [vmem:[%s278 + $0xc8] sm:$0xff] %v4399
        %4476 = vst [vmem:[%s278 + $0xd0] sm:$0xff] %v4404
        %4477 = vst [vmem:[%s278 + $0xd8] sm:$0xff] %v4407
        %4478 = vst [vmem:[%s278 + $0xe0] sm:$0xff] %v4412
        %4479 = vst [vmem:[%s278 + $0xe8] sm:$0xff] %v4415
        %4480 = vst [vmem:[%s278 + $0xf0] sm:$0xff] %v4420
        %4481 = vst [vmem:[%s278 + $0xf8] sm:$0xff] %v4423
        %4482 = vst [vmem:[%s278 + $0x100] sm:$0xff] %v4428
        %4483 = vst [vmem:[%s278 + $0x108] sm:$0xff] %v4431
        %4484 = vst [vmem:[%s278 + $0x110] sm:$0xff] %v4436
        %4485 = vst [vmem:[%s278 + $0x118] sm:$0xff] %v4439
        %4486 = vst [vmem:[%s278 + $0x120] sm:$0xff] %v4444
        %4487 = vst [vmem:[%s278 + $0x128] sm:$0xff] %v4447
        %v4488 = vlaneseq
        %v4489 = vshrl.u32 %v4488, 7
        %v4490 = vadd.s32 %v4489, 8
        %v4491 = vadd.s32 %v4489, 16
        %v4492 = vadd.s32 %v4489, 24
        %v4493 = vadd.s32 %v4489, 32
        %v4494 = vadd.s32 %v4489, 40
        %v4495 = vadd.s32 %v4489, 48
        %v4496 = vadd.s32 %v4489, 56
        %v4497 = vadd.s32 %v4489, 64
        %v4498 = vadd.s32 %v4489, 72
        %v4499 = vadd.s32 %v4489, 80
        %v4500 = vadd.s32 %v4489, 88
        %v4501 = vadd.s32 %v4489, 96
        %v4502 = vadd.s32 %v4489, 104
        %v4503 = vadd.s32 %v4489, 112
        %v4504 = vadd.s32 %v4489, 120
        %v4505 = vadd.s32 %v4489, 128
        %v4506 = vadd.s32 %v4489, 136
        %v4507 = vadd.s32 %v4489, 144
        %v4508 = vadd.s32 %v4489, 152
        %v4509 = vadd.s32 %v4489, 160
        %v4510 = vadd.s32 %v4489, 168
        %v4511 = vadd.s32 %v4489, 176
        %v4512 = vadd.s32 %v4489, 184
        %v4513 = vadd.s32 %v4489, 192
        %v4514 = vadd.s32 %v4489, 200
        %v4515 = vadd.s32 %v4489, 208
        %v4516 = vadd.s32 %v4489, 216
        %v4517 = vadd.s32 %v4489, 224
        %v4518 = vadd.s32 %v4489, 232
        %v4519 = vadd.s32 %v4489, 240
        %v4520 = vadd.s32 %v4489, 248
        %v4521 = vadd.s32 %v4489, 256
        %v4522 = vadd.s32 %v4489, 264
        %v4523 = vadd.s32 %v4489, 272
        %v4524 = vadd.s32 %v4489, 280
        %v4525 = vadd.s32 %v4489, 288
        %v4526 = vadd.s32 %v4489, 296
        %s4527 = smul.u32 %s25, 304
        %v4528 = vstv %s4527
        %v4529 = vadd.s32 %v4489, %v4528
        %v4530 = vadd.s32 %v4490, %v4528
        %v4531 = vadd.s32 %v4491, %v4528
        %v4532 = vadd.s32 %v4492, %v4528
        %v4533 = vadd.s32 %v4493, %v4528
        %v4534 = vadd.s32 %v4494, %v4528
        %v4535 = vadd.s32 %v4495, %v4528
        %v4536 = vadd.s32 %v4496, %v4528
        %v4537 = vadd.s32 %v4497, %v4528
        %v4538 = vadd.s32 %v4498, %v4528
        %v4539 = vadd.s32 %v4499, %v4528
        %v4540 = vadd.s32 %v4500, %v4528
        %v4541 = vadd.s32 %v4501, %v4528
        %v4542 = vadd.s32 %v4502, %v4528
        %v4543 = vadd.s32 %v4503, %v4528
        %v4544 = vadd.s32 %v4504, %v4528
        %v4545 = vadd.s32 %v4505, %v4528
        %v4546 = vadd.s32 %v4506, %v4528
        %v4547 = vadd.s32 %v4507, %v4528
        %v4548 = vadd.s32 %v4508, %v4528
        %v4549 = vadd.s32 %v4509, %v4528
        %v4550 = vadd.s32 %v4510, %v4528
        %v4551 = vadd.s32 %v4511, %v4528
        %v4552 = vadd.s32 %v4512, %v4528
        %v4553 = vadd.s32 %v4513, %v4528
        %v4554 = vadd.s32 %v4514, %v4528
        %v4555 = vadd.s32 %v4515, %v4528
        %v4556 = vadd.s32 %v4516, %v4528
        %v4557 = vadd.s32 %v4517, %v4528
        %v4558 = vadd.s32 %v4518, %v4528
        %v4559 = vadd.s32 %v4519, %v4528
        %v4560 = vadd.s32 %v4520, %v4528
        %v4561 = vadd.s32 %v4521, %v4528
        %v4562 = vadd.s32 %v4522, %v4528
        %v4563 = vadd.s32 %v4523, %v4528
        %v4564 = vadd.s32 %v4524, %v4528
        %v4565 = vadd.s32 %v4525, %v4528
        %v4566 = vadd.s32 %v4526, %v4528
        %vm4567 = vcmp.lt.s32.totalorder %v4529, 600
        %vm4568 = vcmp.lt.s32.totalorder %v4530, 600
        %vm4569 = vcmp.lt.s32.totalorder %v4531, 600
        %vm4570 = vcmp.lt.s32.totalorder %v4532, 600
        %vm4571 = vcmp.lt.s32.totalorder %v4533, 600
        %vm4572 = vcmp.lt.s32.totalorder %v4534, 600
        %vm4573 = vcmp.lt.s32.totalorder %v4535, 600
        %vm4574 = vcmp.lt.s32.totalorder %v4536, 600
        %vm4575 = vcmp.lt.s32.totalorder %v4537, 600
        %vm4576 = vcmp.lt.s32.totalorder %v4538, 600
        %vm4577 = vcmp.lt.s32.totalorder %v4539, 600
        %vm4578 = vcmp.lt.s32.totalorder %v4540, 600
        %vm4579 = vcmp.lt.s32.totalorder %v4541, 600
        %vm4580 = vcmp.lt.s32.totalorder %v4542, 600
        %vm4581 = vcmp.lt.s32.totalorder %v4543, 600
        %vm4582 = vcmp.lt.s32.totalorder %v4544, 600
        %vm4583 = vcmp.lt.s32.totalorder %v4545, 600
        %vm4584 = vcmp.lt.s32.totalorder %v4546, 600
        %vm4585 = vcmp.lt.s32.totalorder %v4547, 600
        %vm4586 = vcmp.lt.s32.totalorder %v4548, 600
        %vm4587 = vcmp.lt.s32.totalorder %v4549, 600
        %vm4588 = vcmp.lt.s32.totalorder %v4550, 600
        %vm4589 = vcmp.lt.s32.totalorder %v4551, 600
        %vm4590 = vcmp.lt.s32.totalorder %v4552, 600
        %vm4591 = vcmp.lt.s32.totalorder %v4553, 600
        %vm4592 = vcmp.lt.s32.totalorder %v4554, 600
        %vm4593 = vcmp.lt.s32.totalorder %v4555, 600
        %vm4594 = vcmp.lt.s32.totalorder %v4556, 600
        %vm4595 = vcmp.lt.s32.totalorder %v4557, 600
        %vm4596 = vcmp.lt.s32.totalorder %v4558, 600
        %vm4597 = vcmp.lt.s32.totalorder %v4559, 600
        %vm4598 = vcmp.lt.s32.totalorder %v4560, 600
        %vm4599 = vcmp.lt.s32.totalorder %v4561, 600
        %vm4600 = vcmp.lt.s32.totalorder %v4562, 600
        %vm4601 = vcmp.lt.s32.totalorder %v4563, 600
        %vm4602 = vcmp.lt.s32.totalorder %v4564, 600
        %vm4603 = vcmp.lt.s32.totalorder %v4565, 600
        %vm4604 = vcmp.lt.s32.totalorder %v4566, 600
        %v4605 = vsel %vm4567, %v4300, -inf
        %v4606 = vsel %vm4568, %v4303, -inf
        %v4607 = vsel %vm4569, %v4308, -inf
        %v4608 = vsel %vm4570, %v4311, -inf
        %v4609 = vsel %vm4571, %v4316, -inf
        %v4610 = vsel %vm4572, %v4319, -inf
        %v4611 = vsel %vm4573, %v4324, -inf
        %v4612 = vsel %vm4574, %v4327, -inf
        %v4613 = vsel %vm4575, %v4332, -inf
        %v4614 = vsel %vm4576, %v4335, -inf
        %v4615 = vsel %vm4577, %v4340, -inf
        %v4616 = vsel %vm4578, %v4343, -inf
        %v4617 = vsel %vm4579, %v4348, -inf
        %v4618 = vsel %vm4580, %v4351, -inf
        %v4619 = vsel %vm4581, %v4356, -inf
        %v4620 = vsel %vm4582, %v4359, -inf
        %v4621 = vsel %vm4583, %v4364, -inf
        %v4622 = vsel %vm4584, %v4367, -inf
        %v4623 = vsel %vm4585, %v4372, -inf
        %v4624 = vsel %vm4586, %v4375, -inf
        %v4625 = vsel %vm4587, %v4380, -inf
        %v4626 = vsel %vm4588, %v4383, -inf
        %v4627 = vsel %vm4589, %v4388, -inf
        %v4628 = vsel %vm4590, %v4391, -inf
        %v4629 = vsel %vm4591, %v4396, -inf
        %v4630 = vsel %vm4592, %v4399, -inf
        %v4631 = vsel %vm4593, %v4404, -inf
        %v4632 = vsel %vm4594, %v4407, -inf
        %v4633 = vsel %vm4595, %v4412, -inf
        %v4634 = vsel %vm4596, %v4415, -inf
        %v4635 = vsel %vm4597, %v4420, -inf
        %v4636 = vsel %vm4598, %v4423, -inf
        %v4637 = vsel %vm4599, %v4428, -inf
        %v4638 = vsel %vm4600, %v4431, -inf
        %v4639 = vsel %vm4601, %v4436, -inf
        %v4640 = vsel %vm4602, %v4439, -inf
        %v4641 = vsel %vm4603, %v4444, -inf
        %v4642 = vsel %vm4604, %v4447, -inf
        %v4643 = vmax.f32 %v4605, %v4609
        %v4644 = vmax.f32 %v4606, %v4610
        %v4645 = vmax.f32 %v4607, %v4611
        %v4646 = vmax.f32 %v4608, %v4612
        %v4647 = vmax.f32 %v4643, %v4613
        %v4648 = vmax.f32 %v4644, %v4614
        %v4649 = vmax.f32 %v4645, %v4615
        %v4650 = vmax.f32 %v4646, %v4616
        %v4651 = vmax.f32 %v4647, %v4617
        %v4652 = vmax.f32 %v4648, %v4618
        %v4653 = vmax.f32 %v4649, %v4619
        %v4654 = vmax.f32 %v4650, %v4620
        %v4655 = vmax.f32 %v4651, %v4621
        %v4656 = vmax.f32 %v4652, %v4622
        %v4657 = vmax.f32 %v4653, %v4623
        %v4658 = vmax.f32 %v4654, %v4624
        %v4659 = vmax.f32 %v4655, %v4625
        %v4660 = vmax.f32 %v4656, %v4626
        %v4661 = vmax.f32 %v4657, %v4627
        %v4662 = vmax.f32 %v4658, %v4628
        %v4663 = vmax.f32 %v4659, %v4629
        %v4664 = vmax.f32 %v4660, %v4630
        %v4665 = vmax.f32 %v4661, %v4631
        %v4666 = vmax.f32 %v4662, %v4632
        %v4667 = vmax.f32 %v4663, %v4633
        %v4668 = vmax.f32 %v4664, %v4634
        %v4669 = vmax.f32 %v4665, %v4635
        %v4670 = vmax.f32 %v4666, %v4636
        %v4671 = vmax.f32 %v4667, %v4637
        %v4672 = vmax.f32 %v4668, %v4638
        %v4673 = vmax.f32 %v4669, %v4639
        %v4674 = vmax.f32 %v4670, %v4640
        %v4675 = vmax.f32 %v4671, %v4641
        %v4676 = vmax.f32 %v4672, %v4642
        %v4677 = vmax.f32 %v4675, %v4676
        %v4678 = vmax.f32 %v4673, %v4674
        %v4679 = vmax.f32 %v4677, %v4678
        %v4680 = vrot.slane %v4679, 4
        %v4681 = vmax.f32 %v4679, %v4680
        %v4682 = vrot.slane %v4681, 2
        %v4683 = vmax.f32 %v4681, %v4682
        %v4684 = vrot.slane %v4683, 1
        %v4685 = vmax.f32 %v4683, %v4684
        %v4686 = vsub.f32 %v4300, %v4685
        %v4687 = vsub.f32 %v4303, %v4685
        %v4688 = vsub.f32 %v4308, %v4685
        %v4689 = vsub.f32 %v4311, %v4685
        %v4690 = vsub.f32 %v4316, %v4685
        %v4691 = vsub.f32 %v4319, %v4685
        %v4692 = vsub.f32 %v4324, %v4685
        %v4693 = vsub.f32 %v4327, %v4685
        %v4694 = vsub.f32 %v4332, %v4685
        %v4695 = vsub.f32 %v4335, %v4685
        %v4696 = vsub.f32 %v4340, %v4685
        %v4697 = vsub.f32 %v4343, %v4685
        %v4698 = vsub.f32 %v4348, %v4685
        %v4699 = vsub.f32 %v4351, %v4685
        %v4700 = vsub.f32 %v4356, %v4685
        %v4701 = vsub.f32 %v4359, %v4685
        %v4702 = vsub.f32 %v4364, %v4685
        %v4703 = vsub.f32 %v4367, %v4685
        %v4704 = vsub.f32 %v4372, %v4685
        %v4705 = vsub.f32 %v4375, %v4685
        %v4706 = vsub.f32 %v4380, %v4685
        %v4707 = vsub.f32 %v4383, %v4685
        %v4708 = vsub.f32 %v4388, %v4685
        %v4709 = vsub.f32 %v4391, %v4685
        %v4710 = vsub.f32 %v4396, %v4685
        %v4711 = vsub.f32 %v4399, %v4685
        %v4712 = vsub.f32 %v4404, %v4685
        %v4713 = vsub.f32 %v4407, %v4685
        %v4714 = vsub.f32 %v4412, %v4685
        %v4715 = vsub.f32 %v4415, %v4685
        %v4716 = vsub.f32 %v4420, %v4685
        %v4717 = vsub.f32 %v4423, %v4685
        %v4718 = vsub.f32 %v4428, %v4685
        %v4719 = vsub.f32 %v4431, %v4685
        %v4720 = vsub.f32 %v4436, %v4685
        %v4721 = vsub.f32 %v4439, %v4685
        %v4722 = vsub.f32 %v4444, %v4685
        %v4723 = vsub.f32 %v4447, %v4685
        %v4724 = vmul.f32 %v4686, 1.442695
        %v4725 = vpow.pop %v4724
        %v4726 = vmul.f32 %v4687, 1.442695
        %v4727 = vpow.pop %v4726
        %v4728 = vmul.f32 %v4688, 1.442695
        %v4729 = vpow.pop %v4728
        %v4730 = vmul.f32 %v4689, 1.442695
        %v4731 = vpow.pop %v4730
        %v4732 = vmul.f32 %v4690, 1.442695
        %v4733 = vpow.pop %v4732
        %v4734 = vmul.f32 %v4691, 1.442695
        %v4735 = vpow.pop %v4734
        %v4736 = vmul.f32 %v4692, 1.442695
        %v4737 = vpow.pop %v4736
        %v4738 = vmul.f32 %v4693, 1.442695
        %v4739 = vpow.pop %v4738
        %v4740 = vmul.f32 %v4694, 1.442695
        %v4741 = vpow.pop %v4740
        %v4742 = vmul.f32 %v4695, 1.442695
        %v4743 = vpow.pop %v4742
        %v4744 = vmul.f32 %v4696, 1.442695
        %v4745 = vpow.pop %v4744
        %v4746 = vmul.f32 %v4697, 1.442695
        %v4747 = vpow.pop %v4746
        %v4748 = vmul.f32 %v4698, 1.442695
        %v4749 = vpow.pop %v4748
        %v4750 = vmul.f32 %v4699, 1.442695
        %v4751 = vpow.pop %v4750
        %v4752 = vmul.f32 %v4700, 1.442695
        %v4753 = vpow.pop %v4752
        %v4754 = vmul.f32 %v4701, 1.442695
        %v4755 = vpow.pop %v4754
        %v4756 = vmul.f32 %v4702, 1.442695
        %v4757 = vpow.pop %v4756
        %v4758 = vmul.f32 %v4703, 1.442695
        %v4759 = vpow.pop %v4758
        %v4760 = vmul.f32 %v4704, 1.442695
        %v4761 = vpow.pop %v4760
        %v4762 = vmul.f32 %v4705, 1.442695
        %v4763 = vpow.pop %v4762
        %v4764 = vmul.f32 %v4706, 1.442695
        %v4765 = vpow.pop %v4764
        %v4766 = vmul.f32 %v4707, 1.442695
        %v4767 = vpow.pop %v4766
        %v4768 = vmul.f32 %v4708, 1.442695
        %v4769 = vpow.pop %v4768
        %v4770 = vmul.f32 %v4709, 1.442695
        %v4771 = vpow.pop %v4770
        %v4772 = vmul.f32 %v4710, 1.442695
        %v4773 = vpow.pop %v4772
        %v4774 = vmul.f32 %v4711, 1.442695
        %v4775 = vpow.pop %v4774
        %v4776 = vmul.f32 %v4712, 1.442695
        %v4777 = vpow.pop %v4776
        %v4778 = vmul.f32 %v4713, 1.442695
        %v4779 = vpow.pop %v4778
        %v4780 = vmul.f32 %v4714, 1.442695
        %v4781 = vpow.pop %v4780
        %v4782 = vmul.f32 %v4715, 1.442695
        %v4783 = vpow.pop %v4782
        %v4784 = vmul.f32 %v4716, 1.442695
        %v4785 = vpow.pop %v4784
        %v4786 = vmul.f32 %v4717, 1.442695
        %v4787 = vpow.pop %v4786
        %v4788 = vmul.f32 %v4718, 1.442695
        %v4789 = vpow.pop %v4788
        %v4790 = vmul.f32 %v4719, 1.442695
        %v4791 = vpow.pop %v4790
        %v4792 = vmul.f32 %v4720, 1.442695
        %v4793 = vpow.pop %v4792
        %v4794 = vmul.f32 %v4721, 1.442695
        %v4795 = vpow.pop %v4794
        %v4796 = vmul.f32 %v4722, 1.442695
        %v4797 = vpow.pop %v4796
        %v4798 = vmul.f32 %v4723, 1.442695
        %v4799 = vpow.pop %v4798
        %v4800 = vsel %vm4567, %v4725, 0.0
        %v4801 = vsel %vm4568, %v4727, 0.0
        %v4802 = vsel %vm4569, %v4729, 0.0
        %v4803 = vsel %vm4570, %v4731, 0.0
        %v4804 = vsel %vm4571, %v4733, 0.0
        %v4805 = vsel %vm4572, %v4735, 0.0
        %v4806 = vsel %vm4573, %v4737, 0.0
        %v4807 = vsel %vm4574, %v4739, 0.0
        %v4808 = vsel %vm4575, %v4741, 0.0
        %v4809 = vsel %vm4576, %v4743, 0.0
        %v4810 = vsel %vm4577, %v4745, 0.0
        %v4811 = vsel %vm4578, %v4747, 0.0
        %v4812 = vsel %vm4579, %v4749, 0.0
        %v4813 = vsel %vm4580, %v4751, 0.0
        %v4814 = vsel %vm4581, %v4753, 0.0
        %v4815 = vsel %vm4582, %v4755, 0.0
        %v4816 = vsel %vm4583, %v4757, 0.0
        %v4817 = vsel %vm4584, %v4759, 0.0
        %v4818 = vsel %vm4585, %v4761, 0.0
        %v4819 = vsel %vm4586, %v4763, 0.0
        %v4820 = vsel %vm4587, %v4765, 0.0
        %v4821 = vsel %vm4588, %v4767, 0.0
        %v4822 = vsel %vm4589, %v4769, 0.0
        %v4823 = vsel %vm4590, %v4771, 0.0
        %v4824 = vsel %vm4591, %v4773, 0.0
        %v4825 = vsel %vm4592, %v4775, 0.0
        %v4826 = vsel %vm4593, %v4777, 0.0
        %v4827 = vsel %vm4594, %v4779, 0.0
        %v4828 = vsel %vm4595, %v4781, 0.0
        %v4829 = vsel %vm4596, %v4783, 0.0
        %v4830 = vsel %vm4597, %v4785, 0.0
        %v4831 = vsel %vm4598, %v4787, 0.0
        %v4832 = vsel %vm4599, %v4789, 0.0
        %v4833 = vsel %vm4600, %v4791, 0.0
        %v4834 = vsel %vm4601, %v4793, 0.0
        %v4835 = vsel %vm4602, %v4795, 0.0
        %v4836 = vsel %vm4603, %v4797, 0.0
        %v4837 = vsel %vm4604, %v4799, 0.0
        %v4838 = vadd.f32 %v4800, %v4801
        %v4839 = vadd.f32 %v4838, %v4802
        %v4840 = vadd.f32 %v4839, %v4803
        %v4841 = vadd.f32 %v4840, %v4804
        %v4842 = vadd.f32 %v4841, %v4805
        %v4843 = vadd.f32 %v4842, %v4806
        %v4844 = vadd.f32 %v4843, %v4807
        %v4845 = vadd.f32 %v4844, %v4808
        %v4846 = vadd.f32 %v4845, %v4809
        %v4847 = vadd.f32 %v4846, %v4810
        %v4848 = vadd.f32 %v4847, %v4811
        %v4849 = vadd.f32 %v4848, %v4812
        %v4850 = vadd.f32 %v4849, %v4813
        %v4851 = vadd.f32 %v4850, %v4814
        %v4852 = vadd.f32 %v4851, %v4815
        %v4853 = vadd.f32 %v4852, %v4816
        %v4854 = vadd.f32 %v4853, %v4817
        %v4855 = vadd.f32 %v4854, %v4818
        %v4856 = vadd.f32 %v4855, %v4819
        %v4857 = vadd.f32 %v4856, %v4820
        %v4858 = vadd.f32 %v4857, %v4821
        %v4859 = vadd.f32 %v4858, %v4822
        %v4860 = vadd.f32 %v4859, %v4823
        %v4861 = vadd.f32 %v4860, %v4824
        %v4862 = vadd.f32 %v4861, %v4825
        %v4863 = vadd.f32 %v4862, %v4826
        %v4864 = vadd.f32 %v4863, %v4827
        %v4865 = vadd.f32 %v4864, %v4828
        %v4866 = vadd.f32 %v4865, %v4829
        %v4867 = vadd.f32 %v4866, %v4830
        %v4868 = vadd.f32 %v4867, %v4831
        %v4869 = vadd.f32 %v4868, %v4832
        %v4870 = vadd.f32 %v4869, %v4833
        %v4871 = vadd.f32 %v4870, %v4834
        %v4872 = vadd.f32 %v4871, %v4835
        %v4873 = vadd.f32 %v4872, %v4836
        %v4874 = vadd.f32 %v4873, %v4837
        %v4875 = vrot.slane %v4874, 4
        %v4876 = vadd.f32 %v4874, %v4875
        %v4877 = vrot.slane %v4876, 2
        %v4878 = vadd.f32 %v4876, %v4877
        %v4879 = vrot.slane %v4878, 1
        %v4880 = vadd.f32 %v4878, %v4879
        %4881 = vst [vmem:[%s285] sm:$0xff] %v4685
        %vm4882 = vcmp.eq.s32.totalorder %v4489, 0
        %v4883 = vsel %vm4882, %v4880, 0.0
        %4884 = vst [vmem:[%s292] sm:$0xff] %v4883
        %s4885 = sand.u32 %s143, 1
        %s4886 = scalar_lea.sflag [#allocation3], %s4885
        %s4887 = sand.u32 %s143, 1
        %s4888 = smul.addr %s4887, 304
        %s4889 = scalar_lea.vmem [#allocation2], %s4888
        %s4890 = sand.u32 %s25, 1
        %s4891 = scalar_lea.sflag [#allocation5], %s4890
        %s4892 = sand.u32 %s169, 1
        %s4893 = smul.addr %s4892, 8
        %s4894 = scalar_lea.vmem [#allocation4], %s4893
        %s4895 = sand.u32 %s25, 1
        %s4896 = scalar_lea.sflag [#allocation5], %s4895
        %s4897 = sand.u32 %s195, 1
        %s4898 = smul.addr %s4897, 8
        %s4899 = scalar_lea.vmem [#allocation6], %s4898
        // Predicated region
        $region41: #{tpu_custom_call.1} parent=39 // pred_check
          %p4900 = pneg %p153
        $region42: #{tpu_custom_call.1} parent=39 // pred_check_branch
          %4902 = sbr.rel (%p4900) target = $region44
        $region43: #{tpu_custom_call.1} parent=39 // pred_region
          %s4903 = smul.u32 38, %s25
          %s4905 = ssub.s32 4864, 4864
          %4906 = vsyncadd %s4886, %s4905
          %s4907 = smul.addr %s4903, 128
          %s4908 = scalar_lea.hbm %s5, %s4907
          %s4909 = sshll.u32 %s4889, 4
          %s4910 = int_to_ptr.vmem [resolvable:$true] %s4909
          %4915 = dma.vmem_to_hbm [thread:$0]  %s4910, 4864, %s4908, %s4886, 128, 128, 8
        $region44: #{tpu_custom_call.1} parent=39 // pred_fallthru
          _
        // Predicated region
        $region45: #{tpu_custom_call.1} parent=39 // pred_check
          %p4916 = pneg %p179
        $region46: #{tpu_custom_call.1} parent=39 // pred_check_branch
          %4918 = sbr.rel (%p4916) target = $region48
        $region47: #{tpu_custom_call.1} parent=39 // pred_region
          %s4920 = ssub.s32 128, 128
          %4921 = vsyncadd %s4891, %s4920
          %s4922 = smul.addr %s25, 128
          %s4923 = scalar_lea.hbm %s6, %s4922
          %s4925 = sshll.u32 %s4894, 4
          %s4926 = int_to_ptr.vmem [resolvable:$true] %s4925
          %4928 = dma.vmem_to_hbm [thread:$0]  %s4926, 128, %s4923, %s4891
        $region48: #{tpu_custom_call.1} parent=39 // pred_fallthru
          _
        // Predicated region
        $region49: #{tpu_custom_call.1} parent=39 // pred_check
          %p4929 = pneg %p205
        $region50: #{tpu_custom_call.1} parent=39 // pred_check_branch
          %4931 = sbr.rel (%p4929) target = $region52
        $region51: #{tpu_custom_call.1} parent=39 // pred_region
          %s4933 = ssub.s32 128, 128
          %4934 = vsyncadd %s4896, %s4933
          %s4935 = smul.addr %s25, 128
          %s4936 = scalar_lea.hbm %s7, %s4935
          %s4938 = sshll.u32 %s4899, 4
          %s4939 = int_to_ptr.vmem [resolvable:$true] %s4938
          %4941 = dma.vmem_to_hbm [thread:$0]  %s4939, 128, %s4936, %s4896
        $region52: #{tpu_custom_call.1} parent=39 // pred_fallthru
          _
      $region40: #{tpu_custom_call.1} parent=5 // pred_fallthru
        _
      %p4942 = scmp.le.s32.totalorder 2, %s20
      // Predicated region
      $region53: #{tpu_custom_call.1} parent=5 // pred_check
        %p4943 = pneg %p4942
      $region54: #{tpu_custom_call.1} parent=5 // pred_check_branch
        %4945 = sbr.rel (%p4943) target = $region56
      $region55: #{tpu_custom_call.1} parent=5 // pred_region
        %s4946 = ssub.s32 %s20, 2
        // Predicated region
        $region57: #{tpu_custom_call.1} parent=55 // pred_check
          %p4947 = pneg %p159
        $region58: #{tpu_custom_call.1} parent=55 // pred_check_branch
          %4949 = sbr.rel (%p4947) target = $region60
        $region59: #{tpu_custom_call.1} parent=55 // pred_region
          %s4950 = sand.u32 %s144, 1
          %s4951 = scalar_lea.sflag [#allocation3], %s4950
          %s4952 = sand.u32 %s144, 1
          %s4953 = smul.addr %s4952, 304
          %s4954 = scalar_lea.vmem [#allocation2], %s4953
          %4955 = dma.done %s4951, 4864
        $region60: #{tpu_custom_call.1} parent=55 // pred_fallthru
          _
        // Predicated region
        $region61: #{tpu_custom_call.1} parent=55 // pred_check
          %p4956 = pneg %p185
        $region62: #{tpu_custom_call.1} parent=55 // pred_check_branch
          %4958 = sbr.rel (%p4956) target = $region64
        $region63: #{tpu_custom_call.1} parent=55 // pred_region
          %s4959 = sand.u32 %s26, 1
          %s4960 = scalar_lea.sflag [#allocation5], %s4959
          %s4961 = sand.u32 %s170, 1
          %s4962 = smul.addr %s4961, 8
          %s4963 = scalar_lea.vmem [#allocation4], %s4962
          %4964 = dma.done %s4960, 128
        $region64: #{tpu_custom_call.1} parent=55 // pred_fallthru
          _
        // Predicated region
        $region65: #{tpu_custom_call.1} parent=55 // pred_check
          %p4965 = pneg %p211
        $region66: #{tpu_custom_call.1} parent=55 // pred_check_branch
          %4967 = sbr.rel (%p4965) target = $region68
        $region67: #{tpu_custom_call.1} parent=55 // pred_region
          %s4968 = sand.u32 %s26, 1
          %s4969 = scalar_lea.sflag [#allocation5], %s4968
          %s4970 = sand.u32 %s196, 1
          %s4971 = smul.addr %s4970, 8
          %s4972 = scalar_lea.vmem [#allocation6], %s4971
          %4973 = dma.done %s4969, 128
        $region68: #{tpu_custom_call.1} parent=55 // pred_fallthru
          _
      $region56: #{tpu_custom_call.1} parent=5 // pred_fallthru
        _
    $region6: #{tpu_custom_call.1} parent=1 // loop_footer
      %s24 = sadd.s32 1, %s20
    $region7: #{tpu_custom_call.1} parent=1 // loop_footer_branch
      %19 = sbr.rel target = $region3
    $region8: #{tpu_custom_call.1} parent=1 // loop_exit
      _
    %4974 = vsyncpa [#allocation3], 1
    %s4975 = scalar_lea.sflag [#allocation3], 1
    %4976 = vsyncpa %s4975, 1
    %4977 = vsyncpa [#allocation5], 1
    %s4978 = scalar_lea.sflag [#allocation5], 1
    %4979 = vsyncpa %s4978, 1

</llo_original>
